<compile_context>
chip_gen: v7x
topology: tpu7x:2x2x1
jax: 0.10.0
libtpu: 0.0.40
codegen_flags: <defaults>
</compile_context>

<pallas_src>
import math

import jax
import jax.numpy as jnp
from jax.experimental import pallas as pl
from jax.experimental.pallas import tpu as pltpu

SOURCE_INTENSITY = 240.0                 # module default source_intensity
SCALE = 255.0 / SOURCE_INTENSITY         # folds x*255 and /240 into one multiply
CLIP_LO = 1.0 / 255.0                    # = (240/255)/240 : float-image clip floor
LANE = 128
PIX_BUDGET = 2048 * 128                  # pixels per channel-plane per block (sweep on v6e/v7x)
_PCA_MAX_PIXELS = 1 << 16                # pixel subsample cap for stain PCA

REF_STAIN_COEFF = ((0.5626, 0.2159), (0.7201, 0.8012), (0.4062, 0.5581))
STAIN_MATRIX_MINS = ((0.4, 0.3), (0.5, 0.5), (0.3, 0.3))
STAIN_MATRIX_MAXS = ((0.7, 0.5), (1.0, 1.0), (0.7, 0.7))


# ----------------------------------------------------------------------------
# Pallas kernel
# ----------------------------------------------------------------------------
def _stain_aug_kernel(flags_ref, params_ref, x_ref, o_ref):
    """Per-image, per-row-tile stain augmentation.

    flags_ref  : (N,)    SMEM i32 — 0: augment, 1: keep original (uint8-trunc), 2: return x
    params_ref : (N, 16) SMEM f32 — [pinv(2x3 row-major) | a0 b0 a1 b1 | stain(3x2 row-major)]
    x_ref      : (1, 3, TH, W) VMEM — input image tile in [0, 1]
    o_ref      : (1, 3, TH, W) VMEM — output image tile in [0, 1]
    """
    b = pl.program_id(0)
    flag = flags_ref[b]

    @pl.when(flag == 2)                  # whole-batch NaN fallback: return x unchanged
    def _():
        o_ref[...] = x_ref[...].astype(o_ref.dtype)

    @pl.when(flag == 1)                  # per-sample dropout: uint8-truncated original
    def _():
        # floor == trunc for non-negative images.
        o_ref[0] = (jnp.floor(x_ref[0].astype(jnp.float32) * 255.0)
                    * (1.0 / 255.0)).astype(o_ref.dtype)

    @pl.when(flag == 0)                  # augmented path
    def _():
        # All 16 scalars read once from one SMEM row (hoisted out of the loops).
        npinv = [-params_ref[b, i] for i in range(6)]          # -pinv, (2,3) row-major
        a0 = params_ref[b, 6]
        b0 = params_ref[b, 7]
        a1 = params_ref[b, 8]
        b1 = params_ref[b, 9]
        nsm = [-params_ref[b, 10 + i] for i in range(6)]        # -stain_aug, (3,2) row-major

        # HE = pinv @ absorbance, accumulated one input channel at a time so only
        # acc0/acc1 persist in VMEM (absorbance planes are transient).
        acc0 = None
        acc1 = None
        for c in range(3):
            t = jnp.clip(x_ref[0, c].astype(jnp.float32) * SCALE, CLIP_LO, 1.0)
            lt = jnp.log(t)                                     # absorbance = -lt (folded)
            acc0 = npinv[c] * lt if acc0 is None else acc0 + npinv[c] * lt
            acc1 = npinv[3 + c] * lt if acc1 is None else acc1 + npinv[3 + c] * lt

        he0 = jnp.where(acc0 > 0.2, acc0 * a0 + b0, acc0)
        he1 = jnp.where(acc1 > 0.2, acc1 * a1 + b1, acc1)

        # Reconstruction A' = stain_aug @ HE, uint8 quantization, back to [0, 1].
        # Contraction dim is 2 → scalar-broadcast VPU FMAs (no MXU).
        for c in range(3):
            neg_an = nsm[2 * c] * he0 + nsm[2 * c + 1] * he1
            rgb = jnp.round(jnp.minimum(jnp.exp(neg_an) * SOURCE_INTENSITY, 255.0))
            o_ref[0, c] = (rgb * (1.0 / 255.0)).astype(o_ref.dtype)


def _run_stain_kernel(x, flags, params):
    n, c, h, w = x.shape
    w_pad = ((w + LANE - 1) // LANE) * LANE          # lane footprint in VMEM
    rows_budget = max(1, PIX_BUDGET // w_pad)
    if rows_budget >= h:
        th = h                                        # full image height in one block
    else:
        th = min(max(8, (rows_budget // 8) * 8), h)   # multiple of 8 (or == h)
    # Guarantee >=2 grid steps for small single-image calls so both v7x TCs get work.
    if n == 1 and pl.cdiv(h, th) == 1 and h >= 16:
        th = ((pl.cdiv(h, 2) + 7) // 8) * 8

    grid = (n, pl.cdiv(h, th))
    block_bytes = 3 * th * w_pad * 4
    # 2x in + 2x out double-buffered + kernel temporaries, with margin.
    vmem_limit = int(min(max(8 * block_bytes, 32 << 20), 100 << 20))

    return pl.pallas_call(
        _stain_aug_kernel,
        out_shape=jax.ShapeDtypeStruct((n, c, h, w), x.dtype),
        grid=grid,
        in_specs=[
            pl.BlockSpec(memory_space=pltpu.MemorySpace.SMEM),   # flags
            pl.BlockSpec(memory_space=pltpu.MemorySpace.SMEM),   # packed per-image params
            pl.BlockSpec((1, 3, th, w), lambda i, j: (i, 0, j, 0)),
        ],
        out_specs=pl.BlockSpec((1, 3, th, w), lambda i, j: (i, 0, j, 0)),
        compiler_params=pltpu.CompilerParams(
            dimension_semantics=("parallel", "parallel"),
            vmem_limit_bytes=vmem_limit),
    )(flags, params, x)


# ----------------------------------------------------------------------------
# Batched PCA stain-vector extraction (plain JAX, fully vectorized — no host syncs)
# ----------------------------------------------------------------------------
# TODO(synk): 3x3 eigh / atan2 / top_k tail-quantile have no clean Pallas
# equivalent; they run as batched JAX ops on small (N,3,3)/(N,M) data inside
# the same jit.
def _masked_tail_quantiles(vals, mask, q_low):
    """(quantile(q_low), quantile(1-q_low)) of vals restricted to mask, per row.

    Linear interpolation (matches torch.quantile). Uses lax.top_k tails instead
    of a full sort — only O(q_low*M) order statistics are materialized.
    """
    n, m = vals.shape
    dt = vals.dtype
    k = min(m, math.ceil(q_low * (m - 1)) + 2)
    cnt = jnp.sum(mask, axis=1).astype(dt)                       # (N,)
    pos = jnp.maximum(q_low * (cnt - 1.0), 0.0)                  # position from either end
    lo = jnp.clip(jnp.floor(pos).astype(jnp.int32), 0, k - 1)[:, None]
    hi = jnp.clip(jnp.ceil(pos).astype(jnp.int32), 0, k - 1)[:, None]
    frac = (pos - jnp.floor(pos))[:, None]
    asc = -jax.lax.top_k(jnp.where(mask, -vals, -jnp.inf), k)[0]   # k smallest, ascending
    desc = jax.lax.top_k(jnp.where(mask, vals, -jnp.inf), k)[0]    # k largest, descending
    q_min = (jnp.take_along_axis(asc, lo, axis=1) * (1.0 - frac)
             + jnp.take_along_axis(asc, hi, axis=1) * frac)[:, 0]
    q_max = (jnp.take_along_axis(desc, lo, axis=1) * (1.0 - frac)
             + jnp.take_along_axis(desc, hi, axis=1) * frac)[:, 0]
    return q_min, q_max


def _batched_stain_pca(absorb, ref_sc, alpha=1.0, beta=0.345):
    """absorb: (N, 3, M) f32 absorbance samples. Returns (N, 3, 2) stain matrices."""
    dt = absorb.dtype
    mask = jnp.all(absorb > beta, axis=1)                        # (N, M) tissue pixels
    w = mask.astype(dt)
    cnt = jnp.sum(w, axis=1)                                     # (N,)
    mean = jnp.sum(absorb * w[:, None, :], axis=2) / jnp.maximum(cnt, 1.0)[:, None]
    cen = (absorb - mean[:, :, None]) * w[:, None, :]
    cov = jnp.einsum("nim,njm->nij", cen, cen) / jnp.maximum(cnt - 1.0, 1.0)[:, None, None]
    _, ev = jnp.linalg.eigh(cov)                                 # eigvals ascending
    ev = ev[:, :, 2:0:-1]                                        # columns [2, 1] → (N, 3, 2)
    sign = jnp.where(ev[:, 0:1, :] < 0, -1.0, 1.0).astype(dt)
    ev = ev * sign
    proj = jnp.einsum("nij,nim->njm", ev, absorb)                # (N, 2, M)
    phi = jnp.arctan2(proj[:, 1, :], proj[:, 0, :])              # (N, M)
    min_phi, max_phi = _masked_tail_quantiles(phi, mask, alpha / 100.0)
    v_min = jnp.stack([jnp.cos(min_phi), jnp.sin(min_phi)], axis=1)   # (N, 2)
    v_max = jnp.stack([jnp.cos(max_phi), jnp.sin(max_phi)], axis=1)
    v1 = jnp.einsum("nij,nj->ni", ev, v_min)                     # (N, 3)
    v2 = jnp.einsum("nij,nj->ni", ev, v_max)
    swap = (v1[:, 0] < v2[:, 0])[:, None]
    first = jnp.where(swap, v2, v1)
    second = jnp.where(swap, v1, v2)
    sc = jnp.stack([first, second], axis=-1)                     # (N, 3, 2)
    sc = sc / jnp.linalg.norm(sc, axis=1, keepdims=True)
    gram = jnp.einsum("nij,nik->njk", sc, sc)                    # (N, 2, 2)
    det = jnp.linalg.det(gram)
    # Fallback to the reference stain matrix: too few tissue pixels, non-finite
    # PCA, or (near-)singular stain matrix.
    valid = (cnt >= 2.0) & jnp.all(jnp.isfinite(sc), axis=(1, 2)) & (jnp.abs(det) > 1e-8)
    return jnp.where(valid[:, None, None], sc, ref_sc[None])


# ----------------------------------------------------------------------------
# Full forward (mirrors StainAugmentor.forward) — jittable end to end
# ----------------------------------------------------------------------------
def stain_augmentor_forward(x, key, p=0.5,
                            alpha_range=(0.5, 2.0), beta_range=(-0.15, 0.15)):
    N, C, H, W = x.shape
    assert C == 3, "Expected an RGB image (C == 3)"
    dtype = x.dtype

    # --- stain-vector PCA on a row-subsample (contiguous rows; exact for small images) ---
    rows = min(H, max(1, _PCA_MAX_PIXELS // W))
    stride = max(1, H // rows)
    xs = x[:, :, ::stride, :].astype(jnp.float32)                # (N, 3, Hs, W), full rows
    Hs = xs.shape[2]
    absorb_s = -jnp.log(jnp.clip(xs * SCALE, CLIP_LO, 1.0)).reshape(N, 3, Hs * W)
    ref_sc = jnp.asarray(REF_STAIN_COEFF, dtype=jnp.float32)
    src_stain = _batched_stain_pca(absorb_s, ref_sc)             # (N, 3, 2)

    # coeff_pinv = inv(S^T S) @ S^T → (N, 2, 3); whole-batch fallback if any NaN.
    st = jnp.swapaxes(src_stain, 1, 2)
    pinv = jnp.linalg.inv(st @ src_stain) @ st
    any_nan = jnp.any(jnp.isnan(pinv))

    # --- random augmentation parameters (same distributions as get_params) ---
    k_a, k_b, k_s, k_keep = jax.random.split(key, 4)
    alpha = ((alpha_range[1] - alpha_range[0])
             * jax.random.uniform(k_a, (N, 2), dtype=jnp.float32) + alpha_range[0])
    beta = ((beta_range[1] - beta_range[0])
            * jax.random.uniform(k_b, (N, 2), dtype=jnp.float32) + beta_range[0])
    mins = jnp.asarray(STAIN_MATRIX_MINS, dtype=jnp.float32)[None]
    maxs = jnp.asarray(STAIN_MATRIX_MAXS, dtype=jnp.float32)[None]
    sm_aug = (maxs - mins) * jax.random.uniform(k_s, (N, 3, 2), dtype=jnp.float32) + mins

    # Per-sample "keep original" dropout + whole-batch NaN fallback, as a flag code.
    keep_orig = jax.random.uniform(k_keep, (N,)) > p
    flags = jnp.where(any_nan, 2, jnp.where(keep_orig, 1, 0)).astype(jnp.int32)

    # One (N, 16) SMEM row per image: [pinv(6) | a0 b0 a1 b1 | stain_aug(6)].
    params = jnp.concatenate(
        [pinv.reshape(N, 6),
         jnp.stack([alpha[:, 0], beta[:, 0], alpha[:, 1], beta[:, 1]], axis=1),
         sm_aug.reshape(N, 6)], axis=1).astype(jnp.float32)

    out = _run_stain_kernel(x, flags, params)                    # single full-image pass
    return out.astype(dtype)


if __name__ == "__main__":
    key = jax.random.PRNGKey(0)
    k_img, k_params = jax.random.split(key)
    N, C, H, W = 2, 3, 16, 16
    x = jax.random.uniform(k_img, (N, C, H, W), dtype=jnp.float32)   # image in [0, 1]

    fwd = jax.jit(stain_augmentor_forward)
    out = jax.block_until_ready(fwd(x, k_params))

    assert out.shape == x.shape and out.dtype == x.dtype
    assert bool(jnp.all(jnp.isfinite(out)))
    assert bool(jnp.all((out >= 0.0) & (out <= 1.0)))
    print("KERNEL_OK")
</pallas_src>

<mosaic_0001>
module attributes {stable_mosaic.version = 11 : i64} {
  func.func @_stain_aug_kernel(%arg0: i32, %arg1: i32, %arg2: memref<2xi32, #tpu.memory_space<smem>>, %arg3: memref<2x16xf32, #tpu.memory_space<smem>>, %arg4: memref<1x3x16x16xf32, #tpu.memory_space<vmem>>, %arg5: memref<1x3x16x16xf32, #tpu.memory_space<vmem>>) attributes {dimension_semantics = [#tpu.dimension_semantics<parallel>, #tpu.dimension_semantics<parallel>], iteration_bounds = array<i64: 2, 1>, scalar_prefetch = 0 : i64, scratch_operands = 0 : i64, tpu.core_type = #tpu.core_type<tc>, window_params = [{transform_indices = @transform_0, window_bounds = array<i64: 2>}, {transform_indices = @transform_1, window_bounds = array<i64: 2, 16>}, {transform_indices = @transform_2, window_bounds = array<i64: 1, 3, 16, 16>}, {transform_indices = @transform_3, window_bounds = array<i64: 1, 3, 16, 16>}]} {
    %0 = arith.index_cast %arg0 : i32 to index
    %1 = memref.load %arg2[%0] : memref<2xi32, #tpu.memory_space<smem>>
    %c2_i32 = arith.constant 2 : i32
    %2 = arith.cmpi eq, %1, %c2_i32 : i32
    %3 = arith.extui %2 : i1 to i32
    %c0_i32 = arith.constant 0 : i32
    %4 = arith.cmpi ne, %3, %c0_i32 : i32
    scf.if %4 {
      %c0 = arith.constant 0 : index
      %c0_3 = arith.constant 0 : index
      %c0_4 = arith.constant 0 : index
      %c0_5 = arith.constant 0 : index
      %11 = vector.load %arg4[%c0, %c0_3, %c0_4, %c0_5] : memref<1x3x16x16xf32, #tpu.memory_space<vmem>>, vector<1x3x16x16xf32>
      %c0_6 = arith.constant 0 : index
      %c0_7 = arith.constant 0 : index
      %c0_8 = arith.constant 0 : index
      %c0_9 = arith.constant 0 : index
      %12 = vector.load %arg5[%c0_6, %c0_7, %c0_8, %c0_9] : memref<1x3x16x16xf32, #tpu.memory_space<vmem>>, vector<1x3x16x16xf32>
      tpu.vector_store %arg5[%c0_6, %c0_7, %c0_8, %c0_9], %11 {strides = array<i32>} : memref<1x3x16x16xf32, #tpu.memory_space<vmem>>, vector<1x3x16x16xf32>,
    } else {
    }
    %c1_i32 = arith.constant 1 : i32
    %5 = arith.cmpi eq, %1, %c1_i32 : i32
    %6 = arith.extui %5 : i1 to i32
    %c0_i32_0 = arith.constant 0 : i32
    %7 = arith.cmpi ne, %6, %c0_i32_0 : i32
    scf.if %7 {
      %c0 = arith.constant 0 : index
      %c0_3 = arith.constant 0 : index
      %c0_4 = arith.constant 0 : index
      %c0_5 = arith.constant 0 : index
      %11 = vector.load %arg4[%c0, %c0_3, %c0_4, %c0_5] : memref<1x3x16x16xf32, #tpu.memory_space<vmem>>, vector<1x3x16x16xf32>
      %12 = vector.shape_cast %11 : vector<1x3x16x16xf32> to vector<3x16x16xf32>
      %cst = arith.constant 2.550000e+02 : f32
      %13 = vector.broadcast %cst : f32 to vector<3x16x16xf32>
      %14 = arith.mulf %12, %13 : vector<3x16x16xf32>
      %15 = math.floor %14 : vector<3x16x16xf32>
      %cst_6 = arith.constant 0.00392156886 : f32
      %16 = vector.broadcast %cst_6 : f32 to vector<3x16x16xf32>
      %17 = arith.mulf %15, %16 : vector<3x16x16xf32>
      %c0_7 = arith.constant 0 : index
      %c0_8 = arith.constant 0 : index
      %c0_9 = arith.constant 0 : index
      %c0_10 = arith.constant 0 : index
      %18 = vector.load %arg5[%c0_7, %c0_8, %c0_9, %c0_10] : memref<1x3x16x16xf32, #tpu.memory_space<vmem>>, vector<1x3x16x16xf32>
      %19 = vector.shape_cast %18 : vector<1x3x16x16xf32> to vector<3x16x16xf32>
      %20 = vector.shape_cast %17 : vector<3x16x16xf32> to vector<1x3x16x16xf32>
      tpu.vector_store %arg5[%c0_7, %c0_8, %c0_9, %c0_10], %20 {strides = array<i32>} : memref<1x3x16x16xf32, #tpu.memory_space<vmem>>, vector<1x3x16x16xf32>,
    } else {
    }
    %c0_i32_1 = arith.constant 0 : i32
    %8 = arith.cmpi eq, %1, %c0_i32_1 : i32
    %9 = arith.extui %8 : i1 to i32
    %c0_i32_2 = arith.constant 0 : i32
    %10 = arith.cmpi ne, %9, %c0_i32_2 : i32
    scf.if %10 {
      %11 = arith.index_cast %arg0 : i32 to index
      %c0 = arith.constant 0 : index
      %12 = memref.load %arg3[%11, %c0] : memref<2x16xf32, #tpu.memory_space<smem>>
      %cst = arith.constant 0.000000e+00 : f32
      %13 = arith.subf %cst, %12 : f32
      %14 = arith.index_cast %arg0 : i32 to index
      %c1 = arith.constant 1 : index
      %15 = memref.load %arg3[%14, %c1] : memref<2x16xf32, #tpu.memory_space<smem>>
      %cst_3 = arith.constant 0.000000e+00 : f32
      %16 = arith.subf %cst_3, %15 : f32
      %17 = arith.index_cast %arg0 : i32 to index
      %c2 = arith.constant 2 : index
      %18 = memref.load %arg3[%17, %c2] : memref<2x16xf32, #tpu.memory_space<smem>>
      %cst_4 = arith.constant 0.000000e+00 : f32
      %19 = arith.subf %cst_4, %18 : f32
      %20 = arith.index_cast %arg0 : i32 to index
      %c3 = arith.constant 3 : index
      %21 = memref.load %arg3[%20, %c3] : memref<2x16xf32, #tpu.memory_space<smem>>
      %cst_5 = arith.constant 0.000000e+00 : f32
      %22 = arith.subf %cst_5, %21 : f32
      %23 = arith.index_cast %arg0 : i32 to index
      %c4 = arith.constant 4 : index
      %24 = memref.load %arg3[%23, %c4] : memref<2x16xf32, #tpu.memory_space<smem>>
      %cst_6 = arith.constant 0.000000e+00 : f32
      %25 = arith.subf %cst_6, %24 : f32
      %26 = arith.index_cast %arg0 : i32 to index
      %c5 = arith.constant 5 : index
      %27 = memref.load %arg3[%26, %c5] : memref<2x16xf32, #tpu.memory_space<smem>>
      %cst_7 = arith.constant 0.000000e+00 : f32
      %28 = arith.subf %cst_7, %27 : f32
      %29 = arith.index_cast %arg0 : i32 to index
      %c6 = arith.constant 6 : index
      %30 = memref.load %arg3[%29, %c6] : memref<2x16xf32, #tpu.memory_space<smem>>
      %31 = arith.index_cast %arg0 : i32 to index
      %c7 = arith.constant 7 : index
      %32 = memref.load %arg3[%31, %c7] : memref<2x16xf32, #tpu.memory_space<smem>>
      %33 = arith.index_cast %arg0 : i32 to index
      %c8 = arith.constant 8 : index
      %34 = memref.load %arg3[%33, %c8] : memref<2x16xf32, #tpu.memory_space<smem>>
      %35 = arith.index_cast %arg0 : i32 to index
      %c9 = arith.constant 9 : index
      %36 = memref.load %arg3[%35, %c9] : memref<2x16xf32, #tpu.memory_space<smem>>
      %37 = arith.index_cast %arg0 : i32 to index
      %c10 = arith.constant 10 : index
      %38 = memref.load %arg3[%37, %c10] : memref<2x16xf32, #tpu.memory_space<smem>>
      %cst_8 = arith.constant 0.000000e+00 : f32
      %39 = arith.subf %cst_8, %38 : f32
      %40 = arith.index_cast %arg0 : i32 to index
      %c11 = arith.constant 11 : index
      %41 = memref.load %arg3[%40, %c11] : memref<2x16xf32, #tpu.memory_space<smem>>
      %cst_9 = arith.constant 0.000000e+00 : f32
      %42 = arith.subf %cst_9, %41 : f32
      %43 = arith.index_cast %arg0 : i32 to index
      %c12 = arith.constant 12 : index
      %44 = memref.load %arg3[%43, %c12] : memref<2x16xf32, #tpu.memory_space<smem>>
      %cst_10 = arith.constant 0.000000e+00 : f32
      %45 = arith.subf %cst_10, %44 : f32
      %46 = arith.index_cast %arg0 : i32 to index
      %c13 = arith.constant 13 : index
      %47 = memref.load %arg3[%46, %c13] : memref<2x16xf32, #tpu.memory_space<smem>>
      %cst_11 = arith.constant 0.000000e+00 : f32
      %48 = arith.subf %cst_11, %47 : f32
      %49 = arith.index_cast %arg0 : i32 to index
      %c14 = arith.constant 14 : index
      %50 = memref.load %arg3[%49, %c14] : memref<2x16xf32, #tpu.memory_space<smem>>
      %cst_12 = arith.constant 0.000000e+00 : f32
      %51 = arith.subf %cst_12, %50 : f32
      %52 = arith.index_cast %arg0 : i32 to index
      %c15 = arith.constant 15 : index
      %53 = memref.load %arg3[%52, %c15] : memref<2x16xf32, #tpu.memory_space<smem>>
      %cst_13 = arith.constant 0.000000e+00 : f32
      %54 = arith.subf %cst_13, %53 : f32
      %c0_14 = arith.constant 0 : index
      %c0_15 = arith.constant 0 : index
      %c0_16 = arith.constant 0 : index
      %c0_17 = arith.constant 0 : index
      %55 = vector.load %arg4[%c0_14, %c0_15, %c0_16, %c0_17] : memref<1x3x16x16xf32, #tpu.memory_space<vmem>>, vector<1x1x16x16xf32>
      %56 = vector.shape_cast %55 : vector<1x1x16x16xf32> to vector<16x16xf32>
      %cst_18 = arith.constant 1.062500e+00 : f32
      %57 = vector.broadcast %cst_18 : f32 to vector<16x16xf32>
      %58 = arith.mulf %56, %57 : vector<16x16xf32>
      %cst_19 = arith.constant 0.00392156886 : f32
      %cst_20 = arith.constant 1.000000e+00 : f32
      %59 = vector.broadcast %cst_19 : f32 to vector<16x16xf32>
      %60 = arith.maximumf %59, %58 : vector<16x16xf32>
      %61 = vector.broadcast %cst_20 : f32 to vector<16x16xf32>
      %62 = arith.minimumf %61, %60 : vector<16x16xf32>
      %63 = math.log %62 : vector<16x16xf32>
      %64 = vector.broadcast %13 : f32 to vector<16x16xf32>
      %65 = arith.mulf %64, %63 : vector<16x16xf32>
      %66 = vector.broadcast %22 : f32 to vector<16x16xf32>
      %67 = arith.mulf %66, %63 : vector<16x16xf32>
      %c0_21 = arith.constant 0 : index
      %c1_22 = arith.constant 1 : index
      %c0_23 = arith.constant 0 : index
      %c0_24 = arith.constant 0 : index
      %68 = vector.load %arg4[%c0_21, %c1_22, %c0_23, %c0_24] : memref<1x3x16x16xf32, #tpu.memory_space<vmem>>, vector<1x1x16x16xf32>
      %69 = vector.shape_cast %68 : vector<1x1x16x16xf32> to vector<16x16xf32>
      %cst_25 = arith.constant 1.062500e+00 : f32
      %70 = vector.broadcast %cst_25 : f32 to vector<16x16xf32>
      %71 = arith.mulf %69, %70 : vector<16x16xf32>
      %cst_26 = arith.constant 0.00392156886 : f32
      %cst_27 = arith.constant 1.000000e+00 : f32
      %72 = vector.broadcast %cst_26 : f32 to vector<16x16xf32>
      %73 = arith.maximumf %72, %71 : vector<16x16xf32>
      %74 = vector.broadcast %cst_27 : f32 to vector<16x16xf32>
      %75 = arith.minimumf %74, %73 : vector<16x16xf32>
      %76 = math.log %75 : vector<16x16xf32>
      %77 = vector.broadcast %16 : f32 to vector<16x16xf32>
      %78 = arith.mulf %77, %76 : vector<16x16xf32>
      %79 = arith.addf %65, %78 : vector<16x16xf32>
      %80 = vector.broadcast %25 : f32 to vector<16x16xf32>
      %81 = arith.mulf %80, %76 : vector<16x16xf32>
      %82 = arith.addf %67, %81 : vector<16x16xf32>
      %c0_28 = arith.constant 0 : index
      %c2_29 = arith.constant 2 : index
      %c0_30 = arith.constant 0 : index
      %c0_31 = arith.constant 0 : index
      %83 = vector.load %arg4[%c0_28, %c2_29, %c0_30, %c0_31] : memref<1x3x16x16xf32, #tpu.memory_space<vmem>>, vector<1x1x16x16xf32>
      %84 = vector.shape_cast %83 : vector<1x1x16x16xf32> to vector<16x16xf32>
      %cst_32 = arith.constant 1.062500e+00 : f32
      %85 = vector.broadcast %cst_32 : f32 to vector<16x16xf32>
      %86 = arith.mulf %84, %85 : vector<16x16xf32>
      %cst_33 = arith.constant 0.00392156886 : f32
      %cst_34 = arith.constant 1.000000e+00 : f32
      %87 = vector.broadcast %cst_33 : f32 to vector<16x16xf32>
      %88 = arith.maximumf %87, %86 : vector<16x16xf32>
      %89 = vector.broadcast %cst_34 : f32 to vector<16x16xf32>
      %90 = arith.minimumf %89, %88 : vector<16x16xf32>
      %91 = math.log %90 : vector<16x16xf32>
      %92 = vector.broadcast %19 : f32 to vector<16x16xf32>
      %93 = arith.mulf %92, %91 : vector<16x16xf32>
      %94 = arith.addf %79, %93 : vector<16x16xf32>
      %95 = vector.broadcast %28 : f32 to vector<16x16xf32>
      %96 = arith.mulf %95, %91 : vector<16x16xf32>
      %97 = arith.addf %82, %96 : vector<16x16xf32>
      %cst_35 = arith.constant 2.000000e-01 : f32
      %98 = vector.broadcast %cst_35 : f32 to vector<16x16xf32>
      %99 = arith.cmpf ogt, %94, %98 : vector<16x16xf32>
      %100 = vector.broadcast %30 : f32 to vector<16x16xf32>
      %101 = arith.mulf %94, %100 : vector<16x16xf32>
      %102 = vector.broadcast %32 : f32 to vector<16x16xf32>
      %103 = arith.addf %101, %102 : vector<16x16xf32>
      %104 = arith.select %99, %103, %94 : vector<16x16xi1>, vector<16x16xf32>
      %cst_36 = arith.constant 2.000000e-01 : f32
      %105 = vector.broadcast %cst_36 : f32 to vector<16x16xf32>
      %106 = arith.cmpf ogt, %97, %105 : vector<16x16xf32>
      %107 = vector.broadcast %34 : f32 to vector<16x16xf32>
      %108 = arith.mulf %97, %107 : vector<16x16xf32>
      %109 = vector.broadcast %36 : f32 to vector<16x16xf32>
      %110 = arith.addf %108, %109 : vector<16x16xf32>
      %111 = arith.select %106, %110, %97 : vector<16x16xi1>, vector<16x16xf32>
      %112 = vector.broadcast %39 : f32 to vector<16x16xf32>
      %113 = arith.mulf %112, %104 : vector<16x16xf32>
      %114 = vector.broadcast %42 : f32 to vector<16x16xf32>
      %115 = arith.mulf %114, %111 : vector<16x16xf32>
      %116 = arith.addf %113, %115 : vector<16x16xf32>
      %117 = math.exp %116 : vector<16x16xf32>
      %cst_37 = arith.constant 2.400000e+02 : f32
      %118 = vector.broadcast %cst_37 : f32 to vector<16x16xf32>
      %119 = arith.mulf %117, %118 : vector<16x16xf32>
      %cst_38 = arith.constant 2.550000e+02 : f32
      %120 = vector.broadcast %cst_38 : f32 to vector<16x16xf32>
      %121 = arith.minimumf %119, %120 : vector<16x16xf32>
      %122 = math.roundeven %121 : vector<16x16xf32>
      %cst_39 = arith.constant 0.00392156886 : f32
      %123 = vector.broadcast %cst_39 : f32 to vector<16x16xf32>
      %124 = arith.mulf %122, %123 : vector<16x16xf32>
      %c0_40 = arith.constant 0 : index
      %c0_41 = arith.constant 0 : index
      %c0_42 = arith.constant 0 : index
      %c0_43 = arith.constant 0 : index
      %125 = vector.load %arg5[%c0_40, %c0_41, %c0_42, %c0_43] : memref<1x3x16x16xf32, #tpu.memory_space<vmem>>, vector<1x1x16x16xf32>
      %126 = vector.shape_cast %125 : vector<1x1x16x16xf32> to vector<16x16xf32>
      %127 = vector.shape_cast %124 : vector<16x16xf32> to vector<1x1x16x16xf32>
      tpu.vector_store %arg5[%c0_40, %c0_41, %c0_42, %c0_43], %127 {strides = array<i32>} : memref<1x3x16x16xf32, #tpu.memory_space<vmem>>, vector<1x1x16x16xf32>,
      %128 = vector.broadcast %45 : f32 to vector<16x16xf32>
      %129 = arith.mulf %128, %104 : vector<16x16xf32>
      %130 = vector.broadcast %48 : f32 to vector<16x16xf32>
      %131 = arith.mulf %130, %111 : vector<16x16xf32>
      %132 = arith.addf %129, %131 : vector<16x16xf32>
      %133 = math.exp %132 : vector<16x16xf32>
      %cst_44 = arith.constant 2.400000e+02 : f32
      %134 = vector.broadcast %cst_44 : f32 to vector<16x16xf32>
      %135 = arith.mulf %133, %134 : vector<16x16xf32>
      %cst_45 = arith.constant 2.550000e+02 : f32
      %136 = vector.broadcast %cst_45 : f32 to vector<16x16xf32>
      %137 = arith.minimumf %135, %136 : vector<16x16xf32>
      %138 = math.roundeven %137 : vector<16x16xf32>
      %cst_46 = arith.constant 0.00392156886 : f32
      %139 = vector.broadcast %cst_46 : f32 to vector<16x16xf32>
      %140 = arith.mulf %138, %139 : vector<16x16xf32>
      %c0_47 = arith.constant 0 : index
      %c1_48 = arith.constant 1 : index
      %c0_49 = arith.constant 0 : index
      %c0_50 = arith.constant 0 : index
      %141 = vector.load %arg5[%c0_47, %c1_48, %c0_49, %c0_50] : memref<1x3x16x16xf32, #tpu.memory_space<vmem>>, vector<1x1x16x16xf32>
      %142 = vector.shape_cast %141 : vector<1x1x16x16xf32> to vector<16x16xf32>
      %143 = vector.shape_cast %140 : vector<16x16xf32> to vector<1x1x16x16xf32>
      tpu.vector_store %arg5[%c0_47, %c1_48, %c0_49, %c0_50], %143 {strides = array<i32>} : memref<1x3x16x16xf32, #tpu.memory_space<vmem>>, vector<1x1x16x16xf32>,
      %144 = vector.broadcast %51 : f32 to vector<16x16xf32>
      %145 = arith.mulf %144, %104 : vector<16x16xf32>
      %146 = vector.broadcast %54 : f32 to vector<16x16xf32>
      %147 = arith.mulf %146, %111 : vector<16x16xf32>
      %148 = arith.addf %145, %147 : vector<16x16xf32>
      %149 = math.exp %148 : vector<16x16xf32>
      %cst_51 = arith.constant 2.400000e+02 : f32
      %150 = vector.broadcast %cst_51 : f32 to vector<16x16xf32>
      %151 = arith.mulf %149, %150 : vector<16x16xf32>
      %cst_52 = arith.constant 2.550000e+02 : f32
      %152 = vector.broadcast %cst_52 : f32 to vector<16x16xf32>
      %153 = arith.minimumf %151, %152 : vector<16x16xf32>
      %154 = math.roundeven %153 : vector<16x16xf32>
      %cst_53 = arith.constant 0.00392156886 : f32
      %155 = vector.broadcast %cst_53 : f32 to vector<16x16xf32>
      %156 = arith.mulf %154, %155 : vector<16x16xf32>
      %c0_54 = arith.constant 0 : index
      %c2_55 = arith.constant 2 : index
      %c0_56 = arith.constant 0 : index
      %c0_57 = arith.constant 0 : index
      %157 = vector.load %arg5[%c0_54, %c2_55, %c0_56, %c0_57] : memref<1x3x16x16xf32, #tpu.memory_space<vmem>>, vector<1x1x16x16xf32>
      %158 = vector.shape_cast %157 : vector<1x1x16x16xf32> to vector<16x16xf32>
      %159 = vector.shape_cast %156 : vector<16x16xf32> to vector<1x1x16x16xf32>
      tpu.vector_store %arg5[%c0_54, %c2_55, %c0_56, %c0_57], %159 {strides = array<i32>} : memref<1x3x16x16xf32, #tpu.memory_space<vmem>>, vector<1x1x16x16xf32>,
    } else {
    }
    return
  }
  func.func @transform_0(%arg0: i32, %arg1: i32) -> i32 {
    %c0_i32 = arith.constant 0 : i32
    %c0_i32_0 = arith.constant 0 : i32
    return %c0_i32 : i32
  }
  func.func @transform_1(%arg0: i32, %arg1: i32) -> (i32, i32) {
    %c0_i32 = arith.constant 0 : i32
    %c0_i32_0 = arith.constant 0 : i32
    %c0_i32_1 = arith.constant 0 : i32
    return %c0_i32, %c0_i32_0 : i32, i32
  }
  func.func @transform_2(%arg0: i32, %arg1: i32) -> (i32, i32, i32, i32) {
    %c0_i32 = arith.constant 0 : i32
    %c0_i32_0 = arith.constant 0 : i32
    %c0_i32_1 = arith.constant 0 : i32
    return %arg0, %c0_i32, %arg1, %c0_i32_0 : i32, i32, i32, i32
  }
  func.func @transform_3(%arg0: i32, %arg1: i32) -> (i32, i32, i32, i32) {
    %c0_i32 = arith.constant 0 : i32
    %c0_i32_0 = arith.constant 0 : i32
    %c0_i32_1 = arith.constant 0 : i32
    return %arg0, %c0_i32, %arg1, %c0_i32_0 : i32, i32, i32, i32
  }
}

</mosaic_0001>

<llo_original>
// kernel: custom-call.13
$region0: #{custom-call.13}
  %s0 = inlined_call_operand.vmem [shape: f32[2,2,2], index: 0, kind: input, shape index: {}]
  %s1 = inlined_call_operand.vmem [shape: f32[2,2,2], index: 1, kind: input, shape index: {}]
  %s2 = inlined_call_operand.vmem [shape: f32[2,2,2], index: 2, kind: input, shape index: {}]
  %s3 = inlined_call_operand.vmem [shape: f32[2,2,2], index: 3, kind: input, shape index: {}]
  %s4 = inlined_call_operand.vmem [shape: f32[2,2], index: 4, kind: output, shape index: {0}]
  %s5 = inlined_call_operand.vmem [shape: f32[2,2], index: 5, kind: output, shape index: {1}]
  %s6 = inlined_call_operand.vmem [shape: f32[2,2,2], index: 6, kind: output, shape index: {2}]
  %s7 = inlined_call_operand.vmem [shape: f32[2,2,2], index: 7, kind: output, shape index: {3}]
  %s8 = inlined_call_operand.vmem [shape: f32[2,2,2], index: 8, kind: output, shape index: {4}]
  %s9 = inlined_call_operand.vmem [shape: f32[2,2,2], index: 9, kind: output, shape index: {5}]
  %10 = xla_tuple %s4, %s5, %s6, %s7, %s8, %s9
  $region1: #{custom-call.13} parent=0
    #allocation0 [shape = 'u8[4096]{0}', space=vmem, size = 0x1000, scoped, tag = 'operand span for operand 0']
    #allocation1 [shape = 'u8[2048]{0}', space=vmem, size = 0x800, scoped, tag = 'packed  for operand 0']
    #allocation2 [shape = 'u8[4096]{0}', space=vmem, size = 0x1000, scoped, tag = 'operand span for operand 1']
    #allocation3 [shape = 'u8[2048]{0}', space=vmem, size = 0x800, scoped, tag = 'packed  for operand 1']
    #allocation4 [shape = 'u8[4096]{0}', space=vmem, size = 0x1000, scoped, tag = 'operand span for operand 2']
    #allocation5 [shape = 'u8[2048]{0}', space=vmem, size = 0x800, scoped, tag = 'packed  for operand 2']
    #allocation6 [shape = 'u8[4096]{0}', space=vmem, size = 0x1000, scoped, tag = 'operand span for operand 3']
    #allocation7 [shape = 'u8[2048]{0}', space=vmem, size = 0x800, scoped, tag = 'packed  for operand 3']
    #allocation8 [shape = 'u8[4096]{0}', space=vmem, size = 0x1000, scoped, tag = 'operand span for operand 4']
    #allocation9 [shape = 'u8[2048]{0}', space=vmem, size = 0x800, scoped, tag = 'packed  for operand 4']
    #allocation10 [shape = 'u8[4096]{0}', space=vmem, size = 0x1000, scoped, tag = 'operand span for operand 5']
    #allocation11 [shape = 'u8[2048]{0}', space=vmem, size = 0x800, scoped, tag = 'packed  for operand 5']
    #allocation12 [shape = 'u8[4096]{0}', space=vmem, size = 0x1000, scoped, tag = 'operand span for operand 6']
    #allocation13 [shape = 'u8[2048]{0}', space=vmem, size = 0x800, scoped, tag = 'packed  for operand 6']
    #allocation14 [shape = 'u8[4096]{0}', space=vmem, size = 0x1000, scoped, tag = 'operand span for operand 7']
    #allocation15 [shape = 'u8[2048]{0}', space=vmem, size = 0x800, scoped, tag = 'packed  for operand 7']
    #allocation16 [shape = 'u8[4096]{0}', space=vmem, size = 0x1000, scoped, tag = 'operand span for operand 8']
    #allocation17 [shape = 'u8[2048]{0}', space=vmem, size = 0x800, scoped, tag = 'packed  for operand 8']
    #allocation18 [shape = 'u8[4096]{0}', space=vmem, size = 0x1000, scoped, tag = 'operand span for operand 9']
    #allocation19 [shape = 'u8[2048]{0}', space=vmem, size = 0x800, scoped, tag = 'packed  for operand 9']
    loop: start=0, step=1, limit=4
    $region2: #{custom-call.13} parent=1 // loop_pre_header
      _
    $region3: #{custom-call.13} parent=1 // loop_header
      %s12 = sphi 0, %s16
      %p13 = scmp.ge.s32.totalorder %s12, 4
      %s24 = sphi 0, %s26
      %s27 = sphi 0, %s24
      %s28 = sphi 0, %s27
      %s44 = sphi 0, %s28
      %s52 = sphi 0, %s54
      %s55 = sphi 0, %s52
      %s56 = sphi 0, %s55
      %s72 = sphi 0, %s56
    $region4: #{custom-call.13} parent=1 // loop_header_branch
      %15 = sbr.rel (%p13) target = $region8
    $region5: #{custom-call.13} parent=1 // loop_body
      %s17 = ssub.s32 %s12, 1
      %s18 = ssub.s32 %s12, 2
      %s19 = sadd.s32 %s12, 1
      %s20 = sshrl.u32 %s12, 3
      %s21 = sshrl.u32 %s19, 3
      %s22 = ssub.s32 %s20, %s21
      %p23 = scmp.eq.s32.totalorder %s22, 0
      %s25 = sadd.s32 %s24, 1
      %s26 = scalar_select %p23, %s24, %s25
      %p29 = pneg %p23
      %p30 = scmp.eq.s32.totalorder %s12, 1
      %p31 = por %p29, %p30
      %p32 = scmp.ne.s32.totalorder %s24, %s27
      %p33 = scmp.eq.s32.totalorder %s12, 0
      %p34 = por %p32, %p33
      %p35 = scmp.ne.s32.totalorder %s24, %s27
      %p36 = scmp.eq.s32.totalorder %s17, 1
      %p37 = por %p35, %p36
      %p38 = scmp.ne.s32.totalorder %s27, %s28
      %p39 = scmp.eq.s32.totalorder %s17, 0
      %p40 = por %p38, %p39
      %p41 = scmp.ne.s32.totalorder %s27, %s28
      %p42 = scmp.eq.s32.totalorder %s18, 1
      %p43 = por %p41, %p42
      %p45 = scmp.ne.s32.totalorder %s28, %s44
      %p46 = scmp.eq.s32.totalorder %s18, 0
      %p47 = por %p45, %p46
      %s48 = sshrl.u32 %s12, 3
      %s49 = sshrl.u32 %s19, 3
      %s50 = ssub.s32 %s48, %s49
      %p51 = scmp.eq.s32.totalorder %s50, 0
      %s53 = sadd.s32 %s52, 1
      %s54 = scalar_select %p51, %s52, %s53
      %p57 = pneg %p51
      %p58 = scmp.eq.s32.totalorder %s12, 1
      %p59 = por %p57, %p58
      %p60 = scmp.ne.s32.totalorder %s52, %s55
      %p61 = scmp.eq.s32.totalorder %s12, 0
      %p62 = por %p60, %p61
      %p63 = scmp.ne.s32.totalorder %s52, %s55
      %p64 = scmp.eq.s32.totalorder %s17, 1
      %p65 = por %p63, %p64
      %p66 = scmp.ne.s32.totalorder %s55, %s56
      %p67 = scmp.eq.s32.totalorder %s17, 0
      %p68 = por %p66, %p67
      %p69 = scmp.ne.s32.totalorder %s55, %s56
      %p70 = scmp.eq.s32.totalorder %s18, 1
      %p71 = por %p69, %p70
      %p73 = scmp.ne.s32.totalorder %s56, %s72
      %p74 = scmp.eq.s32.totalorder %s18, 0
      %p75 = por %p73, %p74
      %p76 = scmp.le.s32.totalorder 1, %s12
      %p77 = scmp.lt.s32.totalorder %s12, 3
      %p78 = pnand %p76, %p77
      %p79 = pneg %p78
      // Predicated region
      $region9: #{custom-call.13} parent=5 // pred_check
        _
      $region10: #{custom-call.13} parent=5 // pred_check_branch
        %81 = sbr.rel (%p78) target = $region12
      $region11: #{custom-call.13} parent=5 // pred_region
        %s82 = ssub.s32 %s12, 1
      $region12: #{custom-call.13} parent=5 // pred_fallthru
        _
      %p83 = scmp.lt.s32.totalorder %s12, 2
      // Predicated region
      $region13: #{custom-call.13} parent=5 // pred_check
        %p84 = pneg %p83
      $region14: #{custom-call.13} parent=5 // pred_check_branch
        %86 = sbr.rel (%p84) target = $region16
      $region15: #{custom-call.13} parent=5 // pred_region
        %s87 = sand.u32 %s12, 1
        %s88 = sand.u32 %s12, 1
        %s89 = smul.addr %s88, 2
        %s90 = scalar_lea.vmem [#allocation1], %s89
        %s91 = smul.addr %s12, 2
        %s92 = scalar_lea.vmem %s0, %s91
        // Predicated region
        $region17: #{custom-call.13} parent=15 // pred_check
          _
        $region18: #{custom-call.13} parent=15 // pred_check_branch
          %94 = sbr.rel (0) target = $region20
        $region19: #{custom-call.13} parent=15 // pred_region
          // Predicated region
          $region21: #{custom-call.13} parent=19 // pred_check
            _
          $region22: #{custom-call.13} parent=19 // pred_check_branch
            %96 = sbr.rel target = $region24
          $region23: #{custom-call.13} parent=19 // pred_region
            // Predicated region
            $region36: #{custom-call.13} parent=23 // pred_check
              _
            $region37: #{custom-call.13} parent=23 // pred_check_branch
              %111 = sbr.rel (0) target = $region39
            $region38: #{custom-call.13} parent=23 // pred_region
              loop: start=0, step=1, limit=1
              $region40: #{custom-call.13} parent=38 // loop_pre_header
                _
              $region41: #{custom-call.13} parent=38 // loop_header
                %s114 = sphi 0, %s118
                %p115 = scmp.ge.s32.totalorder %s114, 1
                %s119 = sphi %s92, %s92
                %s120 = sphi %s90, %s90
              $region42: #{custom-call.13} parent=38 // loop_header_branch
                %117 = sbr.rel (%p115) target = $region46
              $region43: #{custom-call.13} parent=38 // loop_body
                %v121 = vld [vmem:[%s119] sm:$0x3]
                %122 = vst [vmem:[%s120] sm:$0x3] %v121
              $region44: #{custom-call.13} parent=38 // loop_footer
                %s118 = sadd.s32 1, %s114
              $region45: #{custom-call.13} parent=38 // loop_footer_branch
                %113 = sbr.rel target = $region41
              $region46: #{custom-call.13} parent=38 // loop_exit
                _
            $region39: #{custom-call.13} parent=23 // pred_fallthru
              _
          $region24: #{custom-call.13} parent=19 // pred_fallthru
            _
          // Predicated region
          $region25: #{custom-call.13} parent=19 // pred_check
            _
          $region26: #{custom-call.13} parent=19 // pred_check_branch
            %98 = sbr.rel (0) target = $region28
          $region27: #{custom-call.13} parent=19 // pred_region
            loop: start=0, step=1, limit=1
            $region29: #{custom-call.13} parent=27 // loop_pre_header
              _
            $region30: #{custom-call.13} parent=27 // loop_header
              %s101 = sphi 0, %s105
              %p102 = scmp.ge.s32.totalorder %s101, 1
              %s106 = sphi %s92, %s92
              %s107 = sphi %s90, %s90
            $region31: #{custom-call.13} parent=27 // loop_header_branch
              %104 = sbr.rel (%p102) target = $region35
            $region32: #{custom-call.13} parent=27 // loop_body
              %v108 = vld [vmem:[%s106] sm:$0x3]
              %109 = vst [vmem:[%s107] sm:$0x3] %v108
            $region33: #{custom-call.13} parent=27 // loop_footer
              %s105 = sadd.s32 1, %s101
            $region34: #{custom-call.13} parent=27 // loop_footer_branch
              %100 = sbr.rel target = $region30
            $region35: #{custom-call.13} parent=27 // loop_exit
              _
          $region28: #{custom-call.13} parent=19 // pred_fallthru
            _
        $region20: #{custom-call.13} parent=15 // pred_fallthru
          _
        %123 = vnop
        %s124 = sand.u32 %s12, 1
        %s125 = sand.u32 %s12, 1
        %s126 = smul.addr %s125, 2
        %s127 = scalar_lea.vmem [#allocation3], %s126
        %s128 = smul.addr %s12, 2
        %s129 = scalar_lea.vmem %s1, %s128
        // Predicated region
        $region47: #{custom-call.13} parent=15 // pred_check
          _
        $region48: #{custom-call.13} parent=15 // pred_check_branch
          %131 = sbr.rel (0) target = $region50
        $region49: #{custom-call.13} parent=15 // pred_region
          // Predicated region
          $region51: #{custom-call.13} parent=49 // pred_check
            _
          $region52: #{custom-call.13} parent=49 // pred_check_branch
            %133 = sbr.rel target = $region54
          $region53: #{custom-call.13} parent=49 // pred_region
            // Predicated region
            $region66: #{custom-call.13} parent=53 // pred_check
              _
            $region67: #{custom-call.13} parent=53 // pred_check_branch
              %148 = sbr.rel (0) target = $region69
            $region68: #{custom-call.13} parent=53 // pred_region
              loop: start=0, step=1, limit=1
              $region70: #{custom-call.13} parent=68 // loop_pre_header
                _
              $region71: #{custom-call.13} parent=68 // loop_header
                %s151 = sphi 0, %s155
                %p152 = scmp.ge.s32.totalorder %s151, 1
                %s156 = sphi %s129, %s129
                %s157 = sphi %s127, %s127
              $region72: #{custom-call.13} parent=68 // loop_header_branch
                %154 = sbr.rel (%p152) target = $region76
              $region73: #{custom-call.13} parent=68 // loop_body
                %v158 = vld [vmem:[%s156] sm:$0x3]
                %159 = vst [vmem:[%s157] sm:$0x3] %v158
              $region74: #{custom-call.13} parent=68 // loop_footer
                %s155 = sadd.s32 1, %s151
              $region75: #{custom-call.13} parent=68 // loop_footer_branch
                %150 = sbr.rel target = $region71
              $region76: #{custom-call.13} parent=68 // loop_exit
                _
            $region69: #{custom-call.13} parent=53 // pred_fallthru
              _
          $region54: #{custom-call.13} parent=49 // pred_fallthru
            _
          // Predicated region
          $region55: #{custom-call.13} parent=49 // pred_check
            _
          $region56: #{custom-call.13} parent=49 // pred_check_branch
            %135 = sbr.rel (0) target = $region58
          $region57: #{custom-call.13} parent=49 // pred_region
            loop: start=0, step=1, limit=1
            $region59: #{custom-call.13} parent=57 // loop_pre_header
              _
            $region60: #{custom-call.13} parent=57 // loop_header
              %s138 = sphi 0, %s142
              %p139 = scmp.ge.s32.totalorder %s138, 1
              %s143 = sphi %s129, %s129
              %s144 = sphi %s127, %s127
            $region61: #{custom-call.13} parent=57 // loop_header_branch
              %141 = sbr.rel (%p139) target = $region65
            $region62: #{custom-call.13} parent=57 // loop_body
              %v145 = vld [vmem:[%s143] sm:$0x3]
              %146 = vst [vmem:[%s144] sm:$0x3] %v145
            $region63: #{custom-call.13} parent=57 // loop_footer
              %s142 = sadd.s32 1, %s138
            $region64: #{custom-call.13} parent=57 // loop_footer_branch
              %137 = sbr.rel target = $region60
            $region65: #{custom-call.13} parent=57 // loop_exit
              _
          $region58: #{custom-call.13} parent=49 // pred_fallthru
            _
        $region50: #{custom-call.13} parent=15 // pred_fallthru
          _
        %160 = vnop
        %s161 = sand.u32 %s12, 1
        %s162 = sand.u32 %s12, 1
        %s163 = smul.addr %s162, 2
        %s164 = scalar_lea.vmem [#allocation5], %s163
        %s165 = smul.addr %s12, 2
        %s166 = scalar_lea.vmem %s2, %s165
        // Predicated region
        $region77: #{custom-call.13} parent=15 // pred_check
          _
        $region78: #{custom-call.13} parent=15 // pred_check_branch
          %168 = sbr.rel (0) target = $region80
        $region79: #{custom-call.13} parent=15 // pred_region
          // Predicated region
          $region81: #{custom-call.13} parent=79 // pred_check
            _
          $region82: #{custom-call.13} parent=79 // pred_check_branch
            %170 = sbr.rel target = $region84
          $region83: #{custom-call.13} parent=79 // pred_region
            // Predicated region
            $region96: #{custom-call.13} parent=83 // pred_check
              _
            $region97: #{custom-call.13} parent=83 // pred_check_branch
              %185 = sbr.rel (0) target = $region99
            $region98: #{custom-call.13} parent=83 // pred_region
              loop: start=0, step=1, limit=1
              $region100: #{custom-call.13} parent=98 // loop_pre_header
                _
              $region101: #{custom-call.13} parent=98 // loop_header
                %s188 = sphi 0, %s192
                %p189 = scmp.ge.s32.totalorder %s188, 1
                %s193 = sphi %s166, %s166
                %s194 = sphi %s164, %s164
              $region102: #{custom-call.13} parent=98 // loop_header_branch
                %191 = sbr.rel (%p189) target = $region106
              $region103: #{custom-call.13} parent=98 // loop_body
                %v195 = vld [vmem:[%s193] sm:$0x3]
                %196 = vst [vmem:[%s194] sm:$0x3] %v195
              $region104: #{custom-call.13} parent=98 // loop_footer
                %s192 = sadd.s32 1, %s188
              $region105: #{custom-call.13} parent=98 // loop_footer_branch
                %187 = sbr.rel target = $region101
              $region106: #{custom-call.13} parent=98 // loop_exit
                _
            $region99: #{custom-call.13} parent=83 // pred_fallthru
              _
          $region84: #{custom-call.13} parent=79 // pred_fallthru
            _
          // Predicated region
          $region85: #{custom-call.13} parent=79 // pred_check
            _
          $region86: #{custom-call.13} parent=79 // pred_check_branch
            %172 = sbr.rel (0) target = $region88
          $region87: #{custom-call.13} parent=79 // pred_region
            loop: start=0, step=1, limit=1
            $region89: #{custom-call.13} parent=87 // loop_pre_header
              _
            $region90: #{custom-call.13} parent=87 // loop_header
              %s175 = sphi 0, %s179
              %p176 = scmp.ge.s32.totalorder %s175, 1
              %s180 = sphi %s166, %s166
              %s181 = sphi %s164, %s164
            $region91: #{custom-call.13} parent=87 // loop_header_branch
              %178 = sbr.rel (%p176) target = $region95
            $region92: #{custom-call.13} parent=87 // loop_body
              %v182 = vld [vmem:[%s180] sm:$0x3]
              %183 = vst [vmem:[%s181] sm:$0x3] %v182
            $region93: #{custom-call.13} parent=87 // loop_footer
              %s179 = sadd.s32 1, %s175
            $region94: #{custom-call.13} parent=87 // loop_footer_branch
              %174 = sbr.rel target = $region90
            $region95: #{custom-call.13} parent=87 // loop_exit
              _
          $region88: #{custom-call.13} parent=79 // pred_fallthru
            _
        $region80: #{custom-call.13} parent=15 // pred_fallthru
          _
        %197 = vnop
        %s198 = sand.u32 %s12, 1
        %s199 = sand.u32 %s12, 1
        %s200 = smul.addr %s199, 2
        %s201 = scalar_lea.vmem [#allocation7], %s200
        %s202 = smul.addr %s12, 2
        %s203 = scalar_lea.vmem %s3, %s202
        // Predicated region
        $region107: #{custom-call.13} parent=15 // pred_check
          _
        $region108: #{custom-call.13} parent=15 // pred_check_branch
          %205 = sbr.rel (0) target = $region110
        $region109: #{custom-call.13} parent=15 // pred_region
          // Predicated region
          $region111: #{custom-call.13} parent=109 // pred_check
            _
          $region112: #{custom-call.13} parent=109 // pred_check_branch
            %207 = sbr.rel target = $region114
          $region113: #{custom-call.13} parent=109 // pred_region
            // Predicated region
            $region126: #{custom-call.13} parent=113 // pred_check
              _
            $region127: #{custom-call.13} parent=113 // pred_check_branch
              %222 = sbr.rel (0) target = $region129
            $region128: #{custom-call.13} parent=113 // pred_region
              loop: start=0, step=1, limit=1
              $region130: #{custom-call.13} parent=128 // loop_pre_header
                _
              $region131: #{custom-call.13} parent=128 // loop_header
                %s225 = sphi 0, %s229
                %p226 = scmp.ge.s32.totalorder %s225, 1
                %s230 = sphi %s203, %s203
                %s231 = sphi %s201, %s201
              $region132: #{custom-call.13} parent=128 // loop_header_branch
                %228 = sbr.rel (%p226) target = $region136
              $region133: #{custom-call.13} parent=128 // loop_body
                %v232 = vld [vmem:[%s230] sm:$0x3]
                %233 = vst [vmem:[%s231] sm:$0x3] %v232
              $region134: #{custom-call.13} parent=128 // loop_footer
                %s229 = sadd.s32 1, %s225
              $region135: #{custom-call.13} parent=128 // loop_footer_branch
                %224 = sbr.rel target = $region131
              $region136: #{custom-call.13} parent=128 // loop_exit
                _
            $region129: #{custom-call.13} parent=113 // pred_fallthru
              _
          $region114: #{custom-call.13} parent=109 // pred_fallthru
            _
          // Predicated region
          $region115: #{custom-call.13} parent=109 // pred_check
            _
          $region116: #{custom-call.13} parent=109 // pred_check_branch
            %209 = sbr.rel (0) target = $region118
          $region117: #{custom-call.13} parent=109 // pred_region
            loop: start=0, step=1, limit=1
            $region119: #{custom-call.13} parent=117 // loop_pre_header
              _
            $region120: #{custom-call.13} parent=117 // loop_header
              %s212 = sphi 0, %s216
              %p213 = scmp.ge.s32.totalorder %s212, 1
              %s217 = sphi %s203, %s203
              %s218 = sphi %s201, %s201
            $region121: #{custom-call.13} parent=117 // loop_header_branch
              %215 = sbr.rel (%p213) target = $region125
            $region122: #{custom-call.13} parent=117 // loop_body
              %v219 = vld [vmem:[%s217] sm:$0x3]
              %220 = vst [vmem:[%s218] sm:$0x3] %v219
            $region123: #{custom-call.13} parent=117 // loop_footer
              %s216 = sadd.s32 1, %s212
            $region124: #{custom-call.13} parent=117 // loop_footer_branch
              %211 = sbr.rel target = $region120
            $region125: #{custom-call.13} parent=117 // loop_exit
              _
          $region118: #{custom-call.13} parent=109 // pred_fallthru
            _
        $region110: #{custom-call.13} parent=15 // pred_fallthru
          _
        %234 = vnop
      $region16: #{custom-call.13} parent=5 // pred_fallthru
        _
      %p235 = scmp.le.s32.totalorder 1, %s12
      %p236 = scmp.lt.s32.totalorder %s12, 3
      %p237 = pnand %p235, %p236
      %p238 = pneg %p237
      // Predicated region
      $region137: #{custom-call.13} parent=5 // pred_check
        _
      $region138: #{custom-call.13} parent=5 // pred_check_branch
        %240 = sbr.rel (%p237) target = $region140
      $region139: #{custom-call.13} parent=5 // pred_region
        #allocation20 [shape = 'f32[2,2]{1,0}', space=vmem, size = 0x1000, scoped, tag = 'a top-left matrix']
        #allocation21 [shape = 'f32[2,2]{1,0}', space=vmem, size = 0x1000, scoped, tag = 'a top-right matrix']
        #allocation22 [shape = 'f32[2,2]{1,0}', space=vmem, size = 0x1000, scoped, tag = 'a bottom-left matrix']
        #allocation23 [shape = 'f32[2,2]{1,0}', space=vmem, size = 0x1000, scoped, tag = 'a bottom-right matrix']
        %s241 = ssub.s32 %s12, 1
        %s242 = sand.u32 %s17, 1
        %s243 = sand.u32 %s17, 1
        %s244 = smul.addr %s243, 2
        %s245 = scalar_lea.vmem [#allocation1], %s244
        %s246 = sand.u32 %s17, 1
        %s247 = sand.u32 %s17, 1
        %s248 = smul.addr %s247, 2
        %s249 = scalar_lea.vmem [#allocation3], %s248
        %s250 = sand.u32 %s17, 1
        %s251 = sand.u32 %s17, 1
        %s252 = smul.addr %s251, 2
        %s253 = scalar_lea.vmem [#allocation5], %s252
        %s254 = sand.u32 %s17, 1
        %s255 = sand.u32 %s17, 1
        %s256 = smul.addr %s255, 2
        %s257 = scalar_lea.vmem [#allocation7], %s256
        %s258 = sand.u32 %s17, 1
        %s259 = sand.u32 %s17, 1
        %s260 = smul.addr %s259, 2
        %s261 = scalar_lea.vmem [#allocation1], %s260
        %s262 = sand.u32 %s17, 1
        %s263 = sand.u32 %s17, 1
        %s264 = smul.addr %s263, 2
        %s265 = scalar_lea.vmem [#allocation3], %s264
        %s266 = sand.u32 %s17, 1
        %s267 = sand.u32 %s17, 1
        %s268 = smul.addr %s267, 2
        %s269 = scalar_lea.vmem [#allocation5], %s268
        %s270 = sand.u32 %s17, 1
        %s271 = sand.u32 %s17, 1
        %s272 = smul.addr %s271, 2
        %s273 = scalar_lea.vmem [#allocation7], %s272
        %p274 = pneg %p40
        %p275 = pneg %p37
        %s276 = sand.u32 %s27, 1
        %s277 = sand.u32 %s27, 1
        %s278 = smul.addr %s277, 2
        %s279 = scalar_lea.vmem [#allocation9], %s278
        %p280 = pneg %p68
        %p281 = pneg %p65
        %s282 = sand.u32 %s55, 1
        %s283 = sand.u32 %s55, 1
        %s284 = smul.addr %s283, 2
        %s285 = scalar_lea.vmem [#allocation11], %s284
        %s286 = sand.u32 %s17, 1
        %s287 = sand.u32 %s17, 1
        %s288 = smul.addr %s287, 2
        %s289 = scalar_lea.vmem [#allocation13], %s288
        %s290 = sand.u32 %s17, 1
        %s291 = sand.u32 %s17, 1
        %s292 = smul.addr %s291, 2
        %s293 = scalar_lea.vmem [#allocation15], %s292
        %s294 = sand.u32 %s17, 1
        %s295 = sand.u32 %s17, 1
        %s296 = smul.addr %s295, 2
        %s297 = scalar_lea.vmem [#allocation17], %s296
        %s298 = sand.u32 %s17, 1
        %s299 = sand.u32 %s17, 1
        %s300 = smul.addr %s299, 2
        %s301 = scalar_lea.vmem [#allocation19], %s300
        %s303 = sshllo.u32 0, 2
        %v304 = vld [vmem:[%s261] sm:%s303]
        %305 = vst [vmem:[#allocation0] sm:%s303] %v304
        %s307 = sshllo.u32 0, 2
        %v308 = vld [vmem:[%s265] sm:%s307]
        %309 = vst [vmem:[#allocation2] sm:%s307] %v308
        %s311 = sshllo.u32 0, 2
        %v312 = vld [vmem:[%s269] sm:%s311]
        %313 = vst [vmem:[#allocation4] sm:%s311] %v312
        %s315 = sshllo.u32 0, 2
        %v316 = vld [vmem:[%s273] sm:%s315]
        %317 = vst [vmem:[#allocation6] sm:%s315] %v316
        %s318 = sshrl.u32 %s17, 3
        %s319 = sshrl.u32 %s17, 3
        %s320 = smov [#allocation20]
        %v321 = vld [vmem:[#allocation0] sm:$0xff]
        %322 = vst [vmem:[%s320] sm:$0xff] %v321
        %s323 = smov [#allocation21]
        %v324 = vld [vmem:[#allocation2] sm:$0xff]
        %325 = vst [vmem:[%s323] sm:$0xff] %v324
        %s326 = smov [#allocation22]
        %v327 = vld [vmem:[#allocation4] sm:$0xff]
        %328 = vst [vmem:[%s326] sm:$0xff] %v327
        %s329 = smov [#allocation23]
        %v330 = vld [vmem:[#allocation6] sm:$0xff]
        %331 = vst [vmem:[%s329] sm:$0xff] %v330
        %332 = vst [vmem:[#allocation12] sm:$0xff] 0.0
        %333 = vst [vmem:[#allocation14] sm:$0xff] 0.0
        %334 = vst [vmem:[#allocation16] sm:$0xff] 0.0
        %335 = vst [vmem:[#allocation18] sm:$0xff] 0.0
        %s336 = smov [#allocation12]
        %v337 = vlaneseq
        %v338 = vand.u32 %v337, 127
        %v339 = vmov %v338
        %v340 = vlaneseq
        %v341 = vshrl.u32 %v340, 7
        %v342 = vmov %v341
        %v343 = vld [vmem:[%s336] sm:$0x3]
        %vm346 = vcmp.eq.s32.totalorder %v342, %v339
        %v347 = vsel %vm346, 1.0, %v343
        %348 = vst [vmem:[%s336] sm:$0x3] %v347
        %s349 = smov [#allocation18]
        %v350 = vlaneseq
        %v351 = vand.u32 %v350, 127
        %v352 = vmov %v351
        %v353 = vlaneseq
        %v354 = vshrl.u32 %v353, 7
        %v355 = vmov %v354
        %v356 = vld [vmem:[%s349] sm:$0x3]
        %vm359 = vcmp.eq.s32.totalorder %v355, %v352
        %v360 = vsel %vm359, 1.0, %v356
        %361 = vst [vmem:[%s349] sm:$0x3] %v360
        // While loop
        $region141: #{custom-call.13} parent=139 // loop_pre_header
          _
        $region142: #{custom-call.13} parent=139 // loop_header
          %s363 = sphi 0, %s905
          %v364 = vlaneseq
          %v365 = vand.u32 %v364, 127
          %v366 = vmov %v365
          %v367 = vlaneseq
          %v368 = vshrl.u32 %v367, 7
          %v369 = vmov %v368
          %s370 = smov [#allocation20]
          %v371 = vlaneseq
          %v372 = vand.u32 %v371, 127
          %vm373 = vcmp.ge.s32.totalorder %v372, 0
          %vm374 = vcmp.lt.s32.totalorder %v372, 2
          %vm375 = vmand %vm373, %vm374
          %v376 = vld [vmem:[%s370] sm:$0x3]
          %v377 = vsel %vm375, %v376, 0.0
          %v378 = vmul.f32 %v377, %v377
          %vm381 = vcmp.eq.s32.totalorder %v369, %v366
          %v382 = vsel %vm381, 0.0, %v378
          %v383 = vlaneseq
          %v384 = vand.u32 %v383, 127
          %v385 = vmov %v384
          %v386 = vlaneseq
          %v387 = vshrl.u32 %v386, 7
          %v388 = vmov %v387
          %s389 = smov [#allocation21]
          %v390 = vlaneseq
          %v391 = vand.u32 %v390, 127
          %vm392 = vcmp.ge.s32.totalorder %v391, 0
          %vm393 = vcmp.lt.s32.totalorder %v391, 2
          %vm394 = vmand %vm392, %vm393
          %v395 = vld [vmem:[%s389] sm:$0x3]
          %v396 = vsel %vm394, %v395, 0.0
          %v397 = vmul.f32 %v396, %v396
          %v398 = vadd.f32 %v382, %v397
          %v399 = vadd.f32 %v378, %v397
          %v400 = vlaneseq
          %v401 = vand.u32 %v400, 127
          %v402 = vmov %v401
          %v403 = vlaneseq
          %v404 = vshrl.u32 %v403, 7
          %v405 = vmov %v404
          %s406 = smov [#allocation22]
          %v407 = vlaneseq
          %v408 = vand.u32 %v407, 127
          %vm409 = vcmp.ge.s32.totalorder %v408, 0
          %vm410 = vcmp.lt.s32.totalorder %v408, 2
          %vm411 = vmand %vm409, %vm410
          %v412 = vld [vmem:[%s406] sm:$0x3]
          %v413 = vsel %vm411, %v412, 0.0
          %v414 = vmul.f32 %v413, %v413
          %v415 = vadd.f32 %v398, %v414
          %v416 = vadd.f32 %v399, %v414
          %v417 = vlaneseq
          %v418 = vand.u32 %v417, 127
          %v419 = vmov %v418
          %v420 = vlaneseq
          %v421 = vshrl.u32 %v420, 7
          %v422 = vmov %v421
          %s423 = smov [#allocation23]
          %v424 = vlaneseq
          %v425 = vand.u32 %v424, 127
          %vm426 = vcmp.ge.s32.totalorder %v425, 0
          %vm427 = vcmp.lt.s32.totalorder %v425, 2
          %vm428 = vmand %vm426, %vm427
          %v429 = vld [vmem:[%s423] sm:$0x3]
          %v430 = vsel %vm428, %v429, 0.0
          %v431 = vmul.f32 %v430, %v430
          %vm434 = vcmp.eq.s32.totalorder %v422, %v419
          %v435 = vsel %vm434, 0.0, %v431
          %v436 = vadd.f32 %v415, %v435
          %v437 = vadd.f32 %v416, %v431
          %438 = vadd.xlane.f32.xlu0 %v437
          %v439 = vpop.xlane.xlu0 %438
          %v440 = vrot.slane %v439, 4
          %v441 = vadd.f32 %v439, %v440
          %v442 = vrot.slane %v441, 2
          %v443 = vadd.f32 %v441, %v442
          %v444 = vrot.slane %v443, 1
          %v445 = vadd.f32 %v443, %v444
          %446 = vadd.xlane.f32.xlu0 %v436
          %v447 = vpop.xlane.xlu0 %446
          %v448 = vrot.slane %v447, 4
          %v449 = vadd.f32 %v447, %v448
          %v450 = vrot.slane %v449, 2
          %v451 = vadd.f32 %v449, %v450
          %v452 = vrot.slane %v451, 1
          %v453 = vadd.f32 %v451, %v452
          %s454 = vtos %v453
          %s455 = vtos %v445
          %s456 = smul.f32 1e-10, %s455
          %p457 = scmp.le.f32.partialorder %s454, %s456
          %p458 = scmp.ge.s32.totalorder %s363, 15
          %p459 = por %p457, %p458
        $region143: #{custom-call.13} parent=139 // loop_header_branch
          %907 = sbr.rel (%p459) target = $region147
        $region144: #{custom-call.13} parent=139 // loop_body
          loop: start=0, step=1, limit=3
          $region148: #{custom-call.13} parent=144 // loop_pre_header
            _
          $region149: #{custom-call.13} parent=144 // loop_header
            %s461 = sphi 0, %s465
            %p462 = scmp.ge.s32.totalorder %s461, 3
          $region150: #{custom-call.13} parent=144 // loop_header_branch
            %464 = sbr.rel (%p462) target = $region154
          $region151: #{custom-call.13} parent=144 // loop_body
            #allocation24 [shape = 'f32[1024]{0}', space=vmem, size = 0x1000, scoped, tag = 'a_tl_diag vmem']
            #allocation25 [shape = 'f32[1024]{0}', space=vmem, size = 0x1000, scoped, tag = 'a_tr_diag vmem']
            #allocation26 [shape = 'f32[1024]{0}', space=vmem, size = 0x1000, scoped, tag = 'a_br_diag vmem']
            #allocation27 [shape = 'f32[1024]{0}', space=vmem, size = 0x1000, scoped, tag = 'rt1 vmem']
            #allocation28 [shape = 'f32[1024]{0}', space=vmem, size = 0x1000, scoped, tag = 'rt2 vmem']
            #allocation29 [shape = 'f32[1024]{0}', space=vmem, size = 0x1000, scoped, tag = 'c vmem']
            #allocation30 [shape = 'f32[1024]{0}', space=vmem, size = 0x1000, scoped, tag = 's vmem']
            #allocation31 [shape = 'f32[4096]{0}', space=vmem, size = 0x4000, scoped, tag = 'c broadcast']
            #allocation32 [shape = 'f32[4096]{0}', space=vmem, size = 0x4000, scoped, tag = 's broadcast']
            %s466 = smov [#allocation20]
            %s467 = smov [#allocation24]
            %v468 = vlaneseq
            %v469 = vand.u32 %v468, 127
            %v470 = vmov %v469
            %v471 = vlaneseq
            %v472 = vshrl.u32 %v471, 7
            %v473 = vmov %v472
            %v474 = vld [vmem:[%s466] sm:$0x3]
            %vm477 = vcmp.eq.s32.totalorder %v473, %v470
            %v478 = vsel %vm477, %v474, 0.0
            %v479 = vrot.slane %v478, 4
            %v480 = vadd.f32 %v478, %v479
            %v481 = vrot.slane %v480, 2
            %v482 = vadd.f32 %v480, %v481
            %v483 = vrot.slane %v482, 1
            %v484 = vadd.f32 %v482, %v483
            %485 = vst [vmem:[%s467] sm:$0x1] %v484
            %s486 = smov [#allocation21]
            %s487 = smov [#allocation25]
            %v488 = vlaneseq
            %v489 = vand.u32 %v488, 127
            %v490 = vmov %v489
            %v491 = vlaneseq
            %v492 = vshrl.u32 %v491, 7
            %v493 = vmov %v492
            %v494 = vld [vmem:[%s486] sm:$0x3]
            %vm497 = vcmp.eq.s32.totalorder %v493, %v490
            %v498 = vsel %vm497, %v494, 0.0
            %v499 = vrot.slane %v498, 4
            %v500 = vadd.f32 %v498, %v499
            %v501 = vrot.slane %v500, 2
            %v502 = vadd.f32 %v500, %v501
            %v503 = vrot.slane %v502, 1
            %v504 = vadd.f32 %v502, %v503
            %505 = vst [vmem:[%s487] sm:$0x1] %v504
            %s506 = smov [#allocation23]
            %s507 = smov [#allocation26]
            %v508 = vlaneseq
            %v509 = vand.u32 %v508, 127
            %v510 = vmov %v509
            %v511 = vlaneseq
            %v512 = vshrl.u32 %v511, 7
            %v513 = vmov %v512
            %v514 = vld [vmem:[%s506] sm:$0x3]
            %vm517 = vcmp.eq.s32.totalorder %v513, %v510
            %v518 = vsel %vm517, %v514, 0.0
            %v519 = vrot.slane %v518, 4
            %v520 = vadd.f32 %v518, %v519
            %v521 = vrot.slane %v520, 2
            %v522 = vadd.f32 %v520, %v521
            %v523 = vrot.slane %v522, 1
            %v524 = vadd.f32 %v522, %v523
            %525 = vst [vmem:[%s507] sm:$0x1] %v524
            %s526 = smov [#allocation29]
            %s527 = smov [#allocation30]
            %s528 = smov [#allocation24]
            %v529 = vld [vmem:[%s528] sm:$0xff]
            %s530 = smov [#allocation25]
            %v531 = vld [vmem:[%s530] sm:$0xff]
            %s532 = smov [#allocation26]
            %v533 = vld [vmem:[%s532] sm:$0xff]
            %v534 = vsub.f32 %v533, %v529
            %v535 = vmul.f32 2.0, %v531
            %v536 = vrcp.pop %v535
            %v537 = vmul.f32 %v534, %v536
            %vm538 = vcmp.ge.f32.partialorder %v537, 0.0
            %v539 = vmul.f32 %v537, %v537
            %v540 = vadd.f32 1.0, %v539
            %v541 = vrsqrt.pop %v540
            %v542 = vmul.f32 %v540, %v541
            %vm543 = vcmp.eq.f32.partialorder %v540, inf
            %v544 = vsel %vm543, %v540, %v542
            %vm545 = vcmp.eq.f32.partialorder %v540, 0.0
            %v546 = vand.u32 %v540, 2147483648
            %v547 = vsel %vm545, %v546, %v544
            %v548 = vxor.u32 %v547, 2147483648
            %v549 = vsel %vm538, %v547, %v548
            %v550 = vadd.f32 %v537, %v549
            %v551 = vrcp.pop %v550
            %v552 = vand.u32 2147483647, %v529
            %v553 = vand.u32 2147483647, %v531
            %v554 = vand.u32 2147483647, %v533
            %v555 = vmin.f32 %v552, %v554
            %v556 = vmul.f32 1.1920929e-08, %v555
            %vm557 = vcmp.le.f32.partialorder %v553, %v556
            %v558 = vsel %vm557, 0.0, %v551
            %v559 = vmul.f32 %v558, %v558
            %v560 = vadd.f32 1.0, %v559
            %v561 = vrsqrt.pop %v560
            %v562 = vmul.f32 %v558, %v561
            %v563 = vmul.f32 %v558, %v531
            %v564 = vsub.f32 %v529, %v563
            %v565 = vmul.f32 %v558, %v531
            %v566 = vadd.f32 %v533, %v565
            %s567 = smov [#allocation27]
            %568 = vst [vmem:[%s567] sm:$0xff] %v564
            %s569 = smov [#allocation28]
            %570 = vst [vmem:[%s569] sm:$0xff] %v566
            %s571 = smov %s526
            %572 = vst [vmem:[%s571] sm:$0xff] %v561
            %s573 = smov %s527
            %574 = vst [vmem:[%s573] sm:$0xff] %v562
            %s575 = smov [#allocation29]
            %v576 = vld [vmem:[%s575] ss:$0 sm:$0xff]
            %v577 = vlaneseq
            %v578 = vand.u32 %v577, 127
            %v579 = vmov %v578
            %v580 = vlaneseq
            %v581 = vshrl.u32 %v580, 7
            %v582 = vmov %v581
            %vm584 = vcmp.eq.s32.totalorder %v582, %v579
            %v585 = vsel %vm584, %v576, 0.0
            %586 = vadd.xlane.f32.xlu0 %v585
            %v587 = vpop.xlane.xlu0 %586
            %s588 = smov [#allocation31]
            %589 = vst [vmem:[%s588] sm:$0xff] %v587
            %s590 = smov [#allocation30]
            %v591 = vld [vmem:[%s590] ss:$0 sm:$0xff]
            %v592 = vlaneseq
            %v593 = vand.u32 %v592, 127
            %v594 = vmov %v593
            %v595 = vlaneseq
            %v596 = vshrl.u32 %v595, 7
            %v597 = vmov %v596
            %vm599 = vcmp.eq.s32.totalorder %v597, %v594
            %v600 = vsel %vm599, %v591, 0.0
            %601 = vadd.xlane.f32.xlu0 %v600
            %v602 = vpop.xlane.xlu0 %601
            %s603 = smov [#allocation32]
            %604 = vst [vmem:[%s603] sm:$0xff] %v602
            %s605 = smov [#allocation31]
            %v606 = vld [vmem:[%s605] sm:$0xff]
            %s607 = smov [#allocation32]
            %v608 = vld [vmem:[%s607] sm:$0xff]
            %s609 = smov [#allocation20]
            %s610 = smov [#allocation21]
            %s611 = smov [#allocation22]
            %s612 = smov [#allocation23]
            %v613 = vld [vmem:[%s609] sm:$0x3]
            %v614 = vld [vmem:[%s610] sm:$0x3]
            %v615 = vld [vmem:[%s611] sm:$0x3]
            %v616 = vld [vmem:[%s612] sm:$0x3]
            %v617 = vmul.f32 %v606, %v613
            %v618 = vmul.f32 %v608, %v615
            %v619 = vsub.f32 %v617, %v618
            %v620 = vmul.f32 %v606, %v614
            %v621 = vmul.f32 %v608, %v616
            %v622 = vsub.f32 %v620, %v621
            %v623 = vmul.f32 %v608, %v613
            %v624 = vmul.f32 %v606, %v615
            %v625 = vadd.f32 %v623, %v624
            %v626 = vmul.f32 %v608, %v614
            %v627 = vmul.f32 %v606, %v616
            %v628 = vadd.f32 %v626, %v627
            %629 = vst [vmem:[%s609] sm:$0x3] %v619
            %630 = vst [vmem:[%s610] sm:$0x3] %v622
            %631 = vst [vmem:[%s611] sm:$0x3] %v625
            %632 = vst [vmem:[%s612] sm:$0x3] %v628
            %s633 = smov [#allocation29]
            %v634 = vld [vmem:[%s633] ss:$0 sm:$0xff]
            %s635 = smov [#allocation30]
            %v636 = vld [vmem:[%s635] ss:$0 sm:$0xff]
            %s637 = smov [#allocation20]
            %s638 = smov [#allocation21]
            %s639 = smov [#allocation22]
            %s640 = smov [#allocation23]
            %v641 = vld [vmem:[%s637] sm:$0x3]
            %v642 = vld [vmem:[%s638] sm:$0x3]
            %v643 = vld [vmem:[%s639] sm:$0x3]
            %v644 = vld [vmem:[%s640] sm:$0x3]
            %v645 = vmul.f32 %v634, %v641
            %v646 = vmul.f32 %v636, %v642
            %v647 = vsub.f32 %v645, %v646
            %v648 = vmul.f32 %v636, %v641
            %v649 = vmul.f32 %v634, %v642
            %v650 = vadd.f32 %v648, %v649
            %v651 = vmul.f32 %v634, %v643
            %v652 = vmul.f32 %v636, %v644
            %v653 = vsub.f32 %v651, %v652
            %v654 = vmul.f32 %v636, %v643
            %v655 = vmul.f32 %v634, %v644
            %v656 = vadd.f32 %v654, %v655
            %657 = vst [vmem:[%s637] sm:$0x3] %v647
            %658 = vst [vmem:[%s638] sm:$0x3] %v650
            %659 = vst [vmem:[%s639] sm:$0x3] %v653
            %660 = vst [vmem:[%s640] sm:$0x3] %v656
            %s661 = smov [#allocation20]
            %s662 = smov [#allocation27]
            %v663 = vlaneseq
            %v664 = vand.u32 %v663, 127
            %v665 = vmov %v664
            %v666 = vlaneseq
            %v667 = vshrl.u32 %v666, 7
            %v668 = vmov %v667
            %v669 = vld [vmem:[%s662] ss:$0 sm:$0xff]
            %v670 = vld [vmem:[%s661] sm:$0x3]
            %vm673 = vcmp.eq.s32.totalorder %v668, %v665
            %v674 = vsel %vm673, %v669, %v670
            %675 = vst [vmem:[%s661] sm:$0x3] %v674
            %s676 = smov [#allocation21]
            %v677 = vlaneseq
            %v678 = vand.u32 %v677, 127
            %v679 = vmov %v678
            %v680 = vlaneseq
            %v681 = vshrl.u32 %v680, 7
            %v682 = vmov %v681
            %v683 = vld [vmem:[%s676] sm:$0x3]
            %vm686 = vcmp.eq.s32.totalorder %v682, %v679
            %v687 = vsel %vm686, 0.0, %v683
            %688 = vst [vmem:[%s676] sm:$0x3] %v687
            %s689 = smov [#allocation22]
            %v690 = vlaneseq
            %v691 = vand.u32 %v690, 127
            %v692 = vmov %v691
            %v693 = vlaneseq
            %v694 = vshrl.u32 %v693, 7
            %v695 = vmov %v694
            %v696 = vld [vmem:[%s689] sm:$0x3]
            %vm699 = vcmp.eq.s32.totalorder %v695, %v692
            %v700 = vsel %vm699, 0.0, %v696
            %701 = vst [vmem:[%s689] sm:$0x3] %v700
            %s702 = smov [#allocation23]
            %s703 = smov [#allocation28]
            %v704 = vlaneseq
            %v705 = vand.u32 %v704, 127
            %v706 = vmov %v705
            %v707 = vlaneseq
            %v708 = vshrl.u32 %v707, 7
            %v709 = vmov %v708
            %v710 = vld [vmem:[%s703] ss:$0 sm:$0xff]
            %v711 = vld [vmem:[%s702] sm:$0x3]
            %vm714 = vcmp.eq.s32.totalorder %v709, %v706
            %v715 = vsel %vm714, %v710, %v711
            %716 = vst [vmem:[%s702] sm:$0x3] %v715
            %s717 = smov [#allocation20]
            %s718 = smov [#allocation21]
            %v719 = vld [vmem:[%s718] sm:$0x3]
            %720 = vrot.lane.b32.xlu0 %v719, 1
            %v721 = vpop.permute.xlu0 %720
            %v722 = vld [vmem:[%s717] sm:$0x3]
            %v723 = vld [vmem:[%s717] sm:$0x3]
            %724 = vrot.lane.b32.xlu0 %v723, 1
            %v725 = vpop.permute.xlu0 %724
            %v726 = vlaneseq
            %v727 = vand.u32 %v726, 127
            %vm728 = vcmp.eq.s32.totalorder %v727, 0
            %v729 = vsel %vm728, %v723, %v725
            %v730 = vlaneseq
            %v731 = vand.u32 %v730, 127
            %vm732 = vcmp.eq.s32.totalorder %v731, 1
            %v733 = vsel %vm732, %v721, %v729
            %v734 = vlaneseq
            %v735 = vand.u32 %v734, 127
            %vm736 = vcmp.ge.s32.totalorder %v735, 0
            %vm737 = vcmp.lt.s32.totalorder %v735, 2
            %vm738 = vmand %vm736, %vm737
            %v739 = vsel %vm738, %v733, 0.0
            %v740 = vld [vmem:[%s718] sm:$0x3]
            %741 = vrot.lane.b32.xlu0 %v740, 127
            %v742 = vpop.permute.xlu0 %741
            %v743 = vlaneseq
            %v744 = vand.u32 %v743, 127
            %vm745 = vcmp.eq.s32.totalorder %v744, 1
            %v746 = vsel %vm745, %v722, %v742
            %747 = vst [vmem:[%s717] sm:$0x3] %v739
            %748 = vst [vmem:[%s718] sm:$0x3] %v746
            %s749 = smov [#allocation22]
            %s750 = smov [#allocation23]
            %v751 = vld [vmem:[%s750] sm:$0x3]
            %752 = vrot.lane.b32.xlu0 %v751, 1
            %v753 = vpop.permute.xlu0 %752
            %v754 = vld [vmem:[%s749] sm:$0x3]
            %v755 = vld [vmem:[%s749] sm:$0x3]
            %756 = vrot.lane.b32.xlu0 %v755, 1
            %v757 = vpop.permute.xlu0 %756
            %v758 = vlaneseq
            %v759 = vand.u32 %v758, 127
            %vm760 = vcmp.eq.s32.totalorder %v759, 0
            %v761 = vsel %vm760, %v755, %v757
            %v762 = vlaneseq
            %v763 = vand.u32 %v762, 127
            %vm764 = vcmp.eq.s32.totalorder %v763, 1
            %v765 = vsel %vm764, %v753, %v761
            %v766 = vlaneseq
            %v767 = vand.u32 %v766, 127
            %vm768 = vcmp.ge.s32.totalorder %v767, 0
            %vm769 = vcmp.lt.s32.totalorder %v767, 2
            %vm770 = vmand %vm768, %vm769
            %v771 = vsel %vm770, %v765, 0.0
            %v772 = vld [vmem:[%s750] sm:$0x3]
            %773 = vrot.lane.b32.xlu0 %v772, 127
            %v774 = vpop.permute.xlu0 %773
            %v775 = vlaneseq
            %v776 = vand.u32 %v775, 127
            %vm777 = vcmp.eq.s32.totalorder %v776, 1
            %v778 = vsel %vm777, %v754, %v774
            %779 = vst [vmem:[%s749] sm:$0x3] %v771
            %780 = vst [vmem:[%s750] sm:$0x3] %v778
            %s781 = smov [#allocation20]
            %s782 = smov [#allocation22]
            %v783 = vld [vmem:[%s781] ss:$0 sm:$0xff]
            %s785 = scalar_lea.vmem %s781, 4294967295
            %v786 = vld [vmem:[%s785] sm:$0x2]
            %v787 = vlaneseq
            %v788 = vshrl.u32 %v787, 7
            %vm789 = vcmp.eq.s32.totalorder %v788, 0
            %v790 = vsel %vm789, %v783, %v786
            %s791 = scalar_lea.vmem %s781, 1
            %v792 = vld [vmem:[%s791] ss:$0 sm:$0xff]
            %793 = vst [vmem:[%s781] sm:$0x3] %v790
            %v794 = vld [vmem:[%s782] ss:$0 sm:$0xff]
            %s795 = scalar_lea.vmem %s781, 1
            %796 = vst [vmem:[%s795] sm:$0x1] %v794
            %s797 = scalar_lea.vmem %s782, 1
            %v798 = vld [vmem:[%s797] sm:$0x1]
            %v799 = vlaneseq
            %v800 = vshrl.u32 %v799, 7
            %vm801 = vcmp.eq.s32.totalorder %v800, 1
            %v802 = vsel %vm801, %v792, %v798
            %v803 = vld [vmem:[%s782] ss:$0 sm:$0xff]
            %804 = vst [vmem:[%s782] sm:$0x3] %v802
            %s805 = smov [#allocation21]
            %s806 = smov [#allocation23]
            %v807 = vld [vmem:[%s805] ss:$0 sm:$0xff]
            %s809 = scalar_lea.vmem %s805, 4294967295
            %v810 = vld [vmem:[%s809] sm:$0x2]
            %v811 = vlaneseq
            %v812 = vshrl.u32 %v811, 7
            %vm813 = vcmp.eq.s32.totalorder %v812, 0
            %v814 = vsel %vm813, %v807, %v810
            %s815 = scalar_lea.vmem %s805, 1
            %v816 = vld [vmem:[%s815] ss:$0 sm:$0xff]
            %817 = vst [vmem:[%s805] sm:$0x3] %v814
            %v818 = vld [vmem:[%s806] ss:$0 sm:$0xff]
            %s819 = scalar_lea.vmem %s805, 1
            %820 = vst [vmem:[%s819] sm:$0x1] %v818
            %s821 = scalar_lea.vmem %s806, 1
            %v822 = vld [vmem:[%s821] sm:$0x1]
            %v823 = vlaneseq
            %v824 = vshrl.u32 %v823, 7
            %vm825 = vcmp.eq.s32.totalorder %v824, 1
            %v826 = vsel %vm825, %v816, %v822
            %v827 = vld [vmem:[%s806] ss:$0 sm:$0xff]
            %828 = vst [vmem:[%s806] sm:$0x3] %v826
            %s829 = smov [#allocation31]
            %v830 = vld [vmem:[%s829] sm:$0xff]
            %s831 = smov [#allocation32]
            %v832 = vld [vmem:[%s831] sm:$0xff]
            %s833 = smov [#allocation12]
            %s834 = smov [#allocation14]
            %s835 = smov [#allocation16]
            %s836 = smov [#allocation18]
            %v837 = vld [vmem:[%s833] sm:$0x3]
            %v838 = vld [vmem:[%s834] sm:$0x3]
            %v839 = vld [vmem:[%s835] sm:$0x3]
            %v840 = vld [vmem:[%s836] sm:$0x3]
            %v841 = vmul.f32 %v830, %v837
            %v842 = vmul.f32 %v832, %v839
            %v843 = vsub.f32 %v841, %v842
            %v844 = vmul.f32 %v830, %v838
            %v845 = vmul.f32 %v832, %v840
            %v846 = vsub.f32 %v844, %v845
            %v847 = vmul.f32 %v832, %v837
            %v848 = vmul.f32 %v830, %v839
            %v849 = vadd.f32 %v847, %v848
            %v850 = vmul.f32 %v832, %v838
            %v851 = vmul.f32 %v830, %v840
            %v852 = vadd.f32 %v850, %v851
            %853 = vst [vmem:[%s833] sm:$0x3] %v843
            %854 = vst [vmem:[%s834] sm:$0x3] %v846
            %855 = vst [vmem:[%s835] sm:$0x3] %v849
            %856 = vst [vmem:[%s836] sm:$0x3] %v852
            %s857 = smov [#allocation12]
            %s858 = smov [#allocation16]
            %v859 = vld [vmem:[%s857] ss:$0 sm:$0xff]
            %s861 = scalar_lea.vmem %s857, 4294967295
            %v862 = vld [vmem:[%s861] sm:$0x2]
            %v863 = vlaneseq
            %v864 = vshrl.u32 %v863, 7
            %vm865 = vcmp.eq.s32.totalorder %v864, 0
            %v866 = vsel %vm865, %v859, %v862
            %s867 = scalar_lea.vmem %s857, 1
            %v868 = vld [vmem:[%s867] ss:$0 sm:$0xff]
            %869 = vst [vmem:[%s857] sm:$0x3] %v866
            %v870 = vld [vmem:[%s858] ss:$0 sm:$0xff]
            %s871 = scalar_lea.vmem %s857, 1
            %872 = vst [vmem:[%s871] sm:$0x1] %v870
            %s873 = scalar_lea.vmem %s858, 1
            %v874 = vld [vmem:[%s873] sm:$0x1]
            %v875 = vlaneseq
            %v876 = vshrl.u32 %v875, 7
            %vm877 = vcmp.eq.s32.totalorder %v876, 1
            %v878 = vsel %vm877, %v868, %v874
            %v879 = vld [vmem:[%s858] ss:$0 sm:$0xff]
            %880 = vst [vmem:[%s858] sm:$0x3] %v878
            %s881 = smov [#allocation14]
            %s882 = smov [#allocation18]
            %v883 = vld [vmem:[%s881] ss:$0 sm:$0xff]
            %s885 = scalar_lea.vmem %s881, 4294967295
            %v886 = vld [vmem:[%s885] sm:$0x2]
            %v887 = vlaneseq
            %v888 = vshrl.u32 %v887, 7
            %vm889 = vcmp.eq.s32.totalorder %v888, 0
            %v890 = vsel %vm889, %v883, %v886
            %s891 = scalar_lea.vmem %s881, 1
            %v892 = vld [vmem:[%s891] ss:$0 sm:$0xff]
            %893 = vst [vmem:[%s881] sm:$0x3] %v890
            %v894 = vld [vmem:[%s882] ss:$0 sm:$0xff]
            %s895 = scalar_lea.vmem %s881, 1
            %896 = vst [vmem:[%s895] sm:$0x1] %v894
            %s897 = scalar_lea.vmem %s882, 1
            %v898 = vld [vmem:[%s897] sm:$0x1]
            %v899 = vlaneseq
            %v900 = vshrl.u32 %v899, 7
            %vm901 = vcmp.eq.s32.totalorder %v900, 1
            %v902 = vsel %vm901, %v892, %v898
            %v903 = vld [vmem:[%s882] ss:$0 sm:$0xff]
            %904 = vst [vmem:[%s882] sm:$0x3] %v902
          $region152: #{custom-call.13} parent=144 // loop_footer
            %s465 = sadd.s32 1, %s461
          $region153: #{custom-call.13} parent=144 // loop_footer_branch
            %460 = sbr.rel target = $region149
          $region154: #{custom-call.13} parent=144 // loop_exit
            _
          %s905 = sadd.s32 %s363, 1
        $region145: #{custom-call.13} parent=139 // loop_footer
          _
        $region146: #{custom-call.13} parent=139 // loop_footer_branch
          %362 = sbr.rel target = $region142
        $region147: #{custom-call.13} parent=139 // loop_exit
          _
        %s908 = sand.u32 %s17, 7
        %s909 = scalar_lea.vmem [#allocation8], %s908
        %s910 = sand.u32 %s17, 7
        %s911 = scalar_lea.vmem [#allocation10], %s910
        %s912 = smov [#allocation20]
        %s913 = smov %s909
        %v914 = vlaneseq
        %v915 = vand.u32 %v914, 127
        %v916 = vmov %v915
        %v917 = vlaneseq
        %v918 = vshrl.u32 %v917, 7
        %v919 = vmov %v918
        %v920 = vld [vmem:[%s912] sm:$0x3]
        %vm923 = vcmp.eq.s32.totalorder %v919, %v916
        %v924 = vsel %vm923, %v920, 0.0
        %v925 = vrot.slane %v924, 4
        %v926 = vadd.f32 %v924, %v925
        %v927 = vrot.slane %v926, 2
        %v928 = vadd.f32 %v926, %v927
        %v929 = vrot.slane %v928, 1
        %v930 = vadd.f32 %v928, %v929
        %931 = vst [vmem:[%s913] sm:$0x1] %v930
        %s932 = smov [#allocation23]
        %s933 = smov %s911
        %v934 = vlaneseq
        %v935 = vand.u32 %v934, 127
        %v936 = vmov %v935
        %v937 = vlaneseq
        %v938 = vshrl.u32 %v937, 7
        %v939 = vmov %v938
        %v940 = vld [vmem:[%s932] sm:$0x3]
        %vm943 = vcmp.eq.s32.totalorder %v939, %v936
        %v944 = vsel %vm943, %v940, 0.0
        %v945 = vrot.slane %v944, 4
        %v946 = vadd.f32 %v944, %v945
        %v947 = vrot.slane %v946, 2
        %v948 = vadd.f32 %v946, %v947
        %v949 = vrot.slane %v948, 1
        %v950 = vadd.f32 %v948, %v949
        %951 = vst [vmem:[%s933] sm:$0x1] %v950
        %s953 = sshllo.u32 0, 2
        %v955 = vld [vmem:[#allocation8] sm:%s953]
        %s956 = sshllo.u32 0, 2
        %957 = vst [vmem:[%s279] sm:%s956] %v955
        %s959 = sshllo.u32 0, 2
        %v961 = vld [vmem:[#allocation10] sm:%s959]
        %s962 = sshllo.u32 0, 2
        %963 = vst [vmem:[%s285] sm:%s962] %v961
        %s965 = sshllo.u32 0, 2
        %v967 = vld [vmem:[#allocation12] sm:%s965]
        %s968 = sshllo.u32 0, 2
        %969 = vst [vmem:[%s289] sm:%s968] %v967
        %s971 = sshllo.u32 0, 2
        %v973 = vld [vmem:[#allocation14] sm:%s971]
        %s974 = sshllo.u32 0, 2
        %975 = vst [vmem:[%s293] sm:%s974] %v973
        %s977 = sshllo.u32 0, 2
        %v979 = vld [vmem:[#allocation16] sm:%s977]
        %s980 = sshllo.u32 0, 2
        %981 = vst [vmem:[%s297] sm:%s980] %v979
        %s983 = sshllo.u32 0, 2
        %v985 = vld [vmem:[#allocation18] sm:%s983]
        %s986 = sshllo.u32 0, 2
        %987 = vst [vmem:[%s301] sm:%s986] %v985
        %s988 = sand.u32 %s27, 1
        %s989 = sand.u32 %s27, 1
        %s990 = smul.addr %s989, 2
        %s991 = scalar_lea.vmem [#allocation9], %s990
        %s992 = sand.u32 %s55, 1
        %s993 = sand.u32 %s55, 1
        %s994 = smul.addr %s993, 2
        %s995 = scalar_lea.vmem [#allocation11], %s994
        %s996 = sand.u32 %s17, 1
        %s997 = sand.u32 %s17, 1
        %s998 = smul.addr %s997, 2
        %s999 = scalar_lea.vmem [#allocation13], %s998
        %s1000 = sand.u32 %s17, 1
        %s1001 = sand.u32 %s17, 1
        %s1002 = smul.addr %s1001, 2
        %s1003 = scalar_lea.vmem [#allocation15], %s1002
        %s1004 = sand.u32 %s17, 1
        %s1005 = sand.u32 %s17, 1
        %s1006 = smul.addr %s1005, 2
        %s1007 = scalar_lea.vmem [#allocation17], %s1006
        %s1008 = sand.u32 %s17, 1
        %s1009 = sand.u32 %s17, 1
        %s1010 = smul.addr %s1009, 2
        %s1011 = scalar_lea.vmem [#allocation19], %s1010
        // Predicated region
        $region155: #{custom-call.13} parent=139 // pred_check
          %p1012 = pneg %p37
        $region156: #{custom-call.13} parent=139 // pred_check_branch
          %1014 = sbr.rel (%p1012) target = $region158
        $region157: #{custom-call.13} parent=139 // pred_region
          %s1015 = sshrl.u32 %s17, 3
          %s1016 = smul.addr %s1015, 2
          %s1017 = scalar_lea.vmem %s4, %s1016
          // Predicated region
          $region159: #{custom-call.13} parent=157 // pred_check
            _
          $region160: #{custom-call.13} parent=157 // pred_check_branch
            %1019 = sbr.rel (0) target = $region162
          $region161: #{custom-call.13} parent=157 // pred_region
            // Predicated region
            $region163: #{custom-call.13} parent=161 // pred_check
              _
            $region164: #{custom-call.13} parent=161 // pred_check_branch
              %1021 = sbr.rel target = $region166
            $region165: #{custom-call.13} parent=161 // pred_region
              // Predicated region
              $region178: #{custom-call.13} parent=165 // pred_check
                _
              $region179: #{custom-call.13} parent=165 // pred_check_branch
                %1036 = sbr.rel (0) target = $region181
              $region180: #{custom-call.13} parent=165 // pred_region
                loop: start=0, step=1, limit=1
                $region182: #{custom-call.13} parent=180 // loop_pre_header
                  _
                $region183: #{custom-call.13} parent=180 // loop_header
                  %s1039 = sphi 0, %s1043
                  %p1040 = scmp.ge.s32.totalorder %s1039, 1
                  %s1044 = sphi %s991, %s991
                  %s1045 = sphi %s1017, %s1017
                $region184: #{custom-call.13} parent=180 // loop_header_branch
                  %1042 = sbr.rel (%p1040) target = $region188
                $region185: #{custom-call.13} parent=180 // loop_body
                  %v1046 = vld [vmem:[%s1044] sm:$0x3]
                  %1047 = vst [vmem:[%s1045] sm:$0x3] %v1046
                $region186: #{custom-call.13} parent=180 // loop_footer
                  %s1043 = sadd.s32 1, %s1039
                $region187: #{custom-call.13} parent=180 // loop_footer_branch
                  %1038 = sbr.rel target = $region183
                $region188: #{custom-call.13} parent=180 // loop_exit
                  _
              $region181: #{custom-call.13} parent=165 // pred_fallthru
                _
            $region166: #{custom-call.13} parent=161 // pred_fallthru
              _
            // Predicated region
            $region167: #{custom-call.13} parent=161 // pred_check
              _
            $region168: #{custom-call.13} parent=161 // pred_check_branch
              %1023 = sbr.rel (0) target = $region170
            $region169: #{custom-call.13} parent=161 // pred_region
              loop: start=0, step=1, limit=1
              $region171: #{custom-call.13} parent=169 // loop_pre_header
                _
              $region172: #{custom-call.13} parent=169 // loop_header
                %s1026 = sphi 0, %s1030
                %p1027 = scmp.ge.s32.totalorder %s1026, 1
                %s1031 = sphi %s991, %s991
                %s1032 = sphi %s1017, %s1017
              $region173: #{custom-call.13} parent=169 // loop_header_branch
                %1029 = sbr.rel (%p1027) target = $region177
              $region174: #{custom-call.13} parent=169 // loop_body
                %v1033 = vld [vmem:[%s1031] sm:$0x3]
                %1034 = vst [vmem:[%s1032] sm:$0x3] %v1033
              $region175: #{custom-call.13} parent=169 // loop_footer
                %s1030 = sadd.s32 1, %s1026
              $region176: #{custom-call.13} parent=169 // loop_footer_branch
                %1025 = sbr.rel target = $region172
              $region177: #{custom-call.13} parent=169 // loop_exit
                _
            $region170: #{custom-call.13} parent=161 // pred_fallthru
              _
          $region162: #{custom-call.13} parent=157 // pred_fallthru
            _
          %1048 = vnop
        $region158: #{custom-call.13} parent=139 // pred_fallthru
          _
        // Predicated region
        $region189: #{custom-call.13} parent=139 // pred_check
          %p1049 = pneg %p65
        $region190: #{custom-call.13} parent=139 // pred_check_branch
          %1051 = sbr.rel (%p1049) target = $region192
        $region191: #{custom-call.13} parent=139 // pred_region
          %s1052 = sshrl.u32 %s17, 3
          %s1053 = smul.addr %s1052, 2
          %s1054 = scalar_lea.vmem %s5, %s1053
          // Predicated region
          $region193: #{custom-call.13} parent=191 // pred_check
            _
          $region194: #{custom-call.13} parent=191 // pred_check_branch
            %1056 = sbr.rel (0) target = $region196
          $region195: #{custom-call.13} parent=191 // pred_region
            // Predicated region
            $region197: #{custom-call.13} parent=195 // pred_check
              _
            $region198: #{custom-call.13} parent=195 // pred_check_branch
              %1058 = sbr.rel target = $region200
            $region199: #{custom-call.13} parent=195 // pred_region
              // Predicated region
              $region212: #{custom-call.13} parent=199 // pred_check
                _
              $region213: #{custom-call.13} parent=199 // pred_check_branch
                %1073 = sbr.rel (0) target = $region215
              $region214: #{custom-call.13} parent=199 // pred_region
                loop: start=0, step=1, limit=1
                $region216: #{custom-call.13} parent=214 // loop_pre_header
                  _
                $region217: #{custom-call.13} parent=214 // loop_header
                  %s1076 = sphi 0, %s1080
                  %p1077 = scmp.ge.s32.totalorder %s1076, 1
                  %s1081 = sphi %s995, %s995
                  %s1082 = sphi %s1054, %s1054
                $region218: #{custom-call.13} parent=214 // loop_header_branch
                  %1079 = sbr.rel (%p1077) target = $region222
                $region219: #{custom-call.13} parent=214 // loop_body
                  %v1083 = vld [vmem:[%s1081] sm:$0x3]
                  %1084 = vst [vmem:[%s1082] sm:$0x3] %v1083
                $region220: #{custom-call.13} parent=214 // loop_footer
                  %s1080 = sadd.s32 1, %s1076
                $region221: #{custom-call.13} parent=214 // loop_footer_branch
                  %1075 = sbr.rel target = $region217
                $region222: #{custom-call.13} parent=214 // loop_exit
                  _
              $region215: #{custom-call.13} parent=199 // pred_fallthru
                _
            $region200: #{custom-call.13} parent=195 // pred_fallthru
              _
            // Predicated region
            $region201: #{custom-call.13} parent=195 // pred_check
              _
            $region202: #{custom-call.13} parent=195 // pred_check_branch
              %1060 = sbr.rel (0) target = $region204
            $region203: #{custom-call.13} parent=195 // pred_region
              loop: start=0, step=1, limit=1
              $region205: #{custom-call.13} parent=203 // loop_pre_header
                _
              $region206: #{custom-call.13} parent=203 // loop_header
                %s1063 = sphi 0, %s1067
                %p1064 = scmp.ge.s32.totalorder %s1063, 1
                %s1068 = sphi %s995, %s995
                %s1069 = sphi %s1054, %s1054
              $region207: #{custom-call.13} parent=203 // loop_header_branch
                %1066 = sbr.rel (%p1064) target = $region211
              $region208: #{custom-call.13} parent=203 // loop_body
                %v1070 = vld [vmem:[%s1068] sm:$0x3]
                %1071 = vst [vmem:[%s1069] sm:$0x3] %v1070
              $region209: #{custom-call.13} parent=203 // loop_footer
                %s1067 = sadd.s32 1, %s1063
              $region210: #{custom-call.13} parent=203 // loop_footer_branch
                %1062 = sbr.rel target = $region206
              $region211: #{custom-call.13} parent=203 // loop_exit
                _
            $region204: #{custom-call.13} parent=195 // pred_fallthru
              _
          $region196: #{custom-call.13} parent=191 // pred_fallthru
            _
          %1085 = vnop
        $region192: #{custom-call.13} parent=139 // pred_fallthru
          _
        %s1086 = smul.addr %s17, 2
        %s1087 = scalar_lea.vmem %s6, %s1086
        // Predicated region
        $region223: #{custom-call.13} parent=139 // pred_check
          _
        $region224: #{custom-call.13} parent=139 // pred_check_branch
          %1089 = sbr.rel (0) target = $region226
        $region225: #{custom-call.13} parent=139 // pred_region
          // Predicated region
          $region227: #{custom-call.13} parent=225 // pred_check
            _
          $region228: #{custom-call.13} parent=225 // pred_check_branch
            %1091 = sbr.rel target = $region230
          $region229: #{custom-call.13} parent=225 // pred_region
            // Predicated region
            $region242: #{custom-call.13} parent=229 // pred_check
              _
            $region243: #{custom-call.13} parent=229 // pred_check_branch
              %1106 = sbr.rel (0) target = $region245
            $region244: #{custom-call.13} parent=229 // pred_region
              loop: start=0, step=1, limit=1
              $region246: #{custom-call.13} parent=244 // loop_pre_header
                _
              $region247: #{custom-call.13} parent=244 // loop_header
                %s1109 = sphi 0, %s1113
                %p1110 = scmp.ge.s32.totalorder %s1109, 1
                %s1114 = sphi %s999, %s999
                %s1115 = sphi %s1087, %s1087
              $region248: #{custom-call.13} parent=244 // loop_header_branch
                %1112 = sbr.rel (%p1110) target = $region252
              $region249: #{custom-call.13} parent=244 // loop_body
                %v1116 = vld [vmem:[%s1114] sm:$0x3]
                %1117 = vst [vmem:[%s1115] sm:$0x3] %v1116
              $region250: #{custom-call.13} parent=244 // loop_footer
                %s1113 = sadd.s32 1, %s1109
              $region251: #{custom-call.13} parent=244 // loop_footer_branch
                %1108 = sbr.rel target = $region247
              $region252: #{custom-call.13} parent=244 // loop_exit
                _
            $region245: #{custom-call.13} parent=229 // pred_fallthru
              _
          $region230: #{custom-call.13} parent=225 // pred_fallthru
            _
          // Predicated region
          $region231: #{custom-call.13} parent=225 // pred_check
            _
          $region232: #{custom-call.13} parent=225 // pred_check_branch
            %1093 = sbr.rel (0) target = $region234
          $region233: #{custom-call.13} parent=225 // pred_region
            loop: start=0, step=1, limit=1
            $region235: #{custom-call.13} parent=233 // loop_pre_header
              _
            $region236: #{custom-call.13} parent=233 // loop_header
              %s1096 = sphi 0, %s1100
              %p1097 = scmp.ge.s32.totalorder %s1096, 1
              %s1101 = sphi %s999, %s999
              %s1102 = sphi %s1087, %s1087
            $region237: #{custom-call.13} parent=233 // loop_header_branch
              %1099 = sbr.rel (%p1097) target = $region241
            $region238: #{custom-call.13} parent=233 // loop_body
              %v1103 = vld [vmem:[%s1101] sm:$0x3]
              %1104 = vst [vmem:[%s1102] sm:$0x3] %v1103
            $region239: #{custom-call.13} parent=233 // loop_footer
              %s1100 = sadd.s32 1, %s1096
            $region240: #{custom-call.13} parent=233 // loop_footer_branch
              %1095 = sbr.rel target = $region236
            $region241: #{custom-call.13} parent=233 // loop_exit
              _
          $region234: #{custom-call.13} parent=225 // pred_fallthru
            _
        $region226: #{custom-call.13} parent=139 // pred_fallthru
          _
        %1118 = vnop
        %s1119 = smul.addr %s17, 2
        %s1120 = scalar_lea.vmem %s7, %s1119
        // Predicated region
        $region253: #{custom-call.13} parent=139 // pred_check
          _
        $region254: #{custom-call.13} parent=139 // pred_check_branch
          %1122 = sbr.rel (0) target = $region256
        $region255: #{custom-call.13} parent=139 // pred_region
          // Predicated region
          $region257: #{custom-call.13} parent=255 // pred_check
            _
          $region258: #{custom-call.13} parent=255 // pred_check_branch
            %1124 = sbr.rel target = $region260
          $region259: #{custom-call.13} parent=255 // pred_region
            // Predicated region
            $region272: #{custom-call.13} parent=259 // pred_check
              _
            $region273: #{custom-call.13} parent=259 // pred_check_branch
              %1139 = sbr.rel (0) target = $region275
            $region274: #{custom-call.13} parent=259 // pred_region
              loop: start=0, step=1, limit=1
              $region276: #{custom-call.13} parent=274 // loop_pre_header
                _
              $region277: #{custom-call.13} parent=274 // loop_header
                %s1142 = sphi 0, %s1146
                %p1143 = scmp.ge.s32.totalorder %s1142, 1
                %s1147 = sphi %s1003, %s1003
                %s1148 = sphi %s1120, %s1120
              $region278: #{custom-call.13} parent=274 // loop_header_branch
                %1145 = sbr.rel (%p1143) target = $region282
              $region279: #{custom-call.13} parent=274 // loop_body
                %v1149 = vld [vmem:[%s1147] sm:$0x3]
                %1150 = vst [vmem:[%s1148] sm:$0x3] %v1149
              $region280: #{custom-call.13} parent=274 // loop_footer
                %s1146 = sadd.s32 1, %s1142
              $region281: #{custom-call.13} parent=274 // loop_footer_branch
                %1141 = sbr.rel target = $region277
              $region282: #{custom-call.13} parent=274 // loop_exit
                _
            $region275: #{custom-call.13} parent=259 // pred_fallthru
              _
          $region260: #{custom-call.13} parent=255 // pred_fallthru
            _
          // Predicated region
          $region261: #{custom-call.13} parent=255 // pred_check
            _
          $region262: #{custom-call.13} parent=255 // pred_check_branch
            %1126 = sbr.rel (0) target = $region264
          $region263: #{custom-call.13} parent=255 // pred_region
            loop: start=0, step=1, limit=1
            $region265: #{custom-call.13} parent=263 // loop_pre_header
              _
            $region266: #{custom-call.13} parent=263 // loop_header
              %s1129 = sphi 0, %s1133
              %p1130 = scmp.ge.s32.totalorder %s1129, 1
              %s1134 = sphi %s1003, %s1003
              %s1135 = sphi %s1120, %s1120
            $region267: #{custom-call.13} parent=263 // loop_header_branch
              %1132 = sbr.rel (%p1130) target = $region271
            $region268: #{custom-call.13} parent=263 // loop_body
              %v1136 = vld [vmem:[%s1134] sm:$0x3]
              %1137 = vst [vmem:[%s1135] sm:$0x3] %v1136
            $region269: #{custom-call.13} parent=263 // loop_footer
              %s1133 = sadd.s32 1, %s1129
            $region270: #{custom-call.13} parent=263 // loop_footer_branch
              %1128 = sbr.rel target = $region266
            $region271: #{custom-call.13} parent=263 // loop_exit
              _
          $region264: #{custom-call.13} parent=255 // pred_fallthru
            _
        $region256: #{custom-call.13} parent=139 // pred_fallthru
          _
        %1151 = vnop
        %s1152 = smul.addr %s17, 2
        %s1153 = scalar_lea.vmem %s8, %s1152
        // Predicated region
        $region283: #{custom-call.13} parent=139 // pred_check
          _
        $region284: #{custom-call.13} parent=139 // pred_check_branch
          %1155 = sbr.rel (0) target = $region286
        $region285: #{custom-call.13} parent=139 // pred_region
          // Predicated region
          $region287: #{custom-call.13} parent=285 // pred_check
            _
          $region288: #{custom-call.13} parent=285 // pred_check_branch
            %1157 = sbr.rel target = $region290
          $region289: #{custom-call.13} parent=285 // pred_region
            // Predicated region
            $region302: #{custom-call.13} parent=289 // pred_check
              _
            $region303: #{custom-call.13} parent=289 // pred_check_branch
              %1172 = sbr.rel (0) target = $region305
            $region304: #{custom-call.13} parent=289 // pred_region
              loop: start=0, step=1, limit=1
              $region306: #{custom-call.13} parent=304 // loop_pre_header
                _
              $region307: #{custom-call.13} parent=304 // loop_header
                %s1175 = sphi 0, %s1179
                %p1176 = scmp.ge.s32.totalorder %s1175, 1
                %s1180 = sphi %s1007, %s1007
                %s1181 = sphi %s1153, %s1153
              $region308: #{custom-call.13} parent=304 // loop_header_branch
                %1178 = sbr.rel (%p1176) target = $region312
              $region309: #{custom-call.13} parent=304 // loop_body
                %v1182 = vld [vmem:[%s1180] sm:$0x3]
                %1183 = vst [vmem:[%s1181] sm:$0x3] %v1182
              $region310: #{custom-call.13} parent=304 // loop_footer
                %s1179 = sadd.s32 1, %s1175
              $region311: #{custom-call.13} parent=304 // loop_footer_branch
                %1174 = sbr.rel target = $region307
              $region312: #{custom-call.13} parent=304 // loop_exit
                _
            $region305: #{custom-call.13} parent=289 // pred_fallthru
              _
          $region290: #{custom-call.13} parent=285 // pred_fallthru
            _
          // Predicated region
          $region291: #{custom-call.13} parent=285 // pred_check
            _
          $region292: #{custom-call.13} parent=285 // pred_check_branch
            %1159 = sbr.rel (0) target = $region294
          $region293: #{custom-call.13} parent=285 // pred_region
            loop: start=0, step=1, limit=1
            $region295: #{custom-call.13} parent=293 // loop_pre_header
              _
            $region296: #{custom-call.13} parent=293 // loop_header
              %s1162 = sphi 0, %s1166
              %p1163 = scmp.ge.s32.totalorder %s1162, 1
              %s1167 = sphi %s1007, %s1007
              %s1168 = sphi %s1153, %s1153
            $region297: #{custom-call.13} parent=293 // loop_header_branch
              %1165 = sbr.rel (%p1163) target = $region301
            $region298: #{custom-call.13} parent=293 // loop_body
              %v1169 = vld [vmem:[%s1167] sm:$0x3]
              %1170 = vst [vmem:[%s1168] sm:$0x3] %v1169
            $region299: #{custom-call.13} parent=293 // loop_footer
              %s1166 = sadd.s32 1, %s1162
            $region300: #{custom-call.13} parent=293 // loop_footer_branch
              %1161 = sbr.rel target = $region296
            $region301: #{custom-call.13} parent=293 // loop_exit
              _
          $region294: #{custom-call.13} parent=285 // pred_fallthru
            _
        $region286: #{custom-call.13} parent=139 // pred_fallthru
          _
        %1184 = vnop
        %s1185 = smul.addr %s17, 2
        %s1186 = scalar_lea.vmem %s9, %s1185
        // Predicated region
        $region313: #{custom-call.13} parent=139 // pred_check
          _
        $region314: #{custom-call.13} parent=139 // pred_check_branch
          %1188 = sbr.rel (0) target = $region316
        $region315: #{custom-call.13} parent=139 // pred_region
          // Predicated region
          $region317: #{custom-call.13} parent=315 // pred_check
            _
          $region318: #{custom-call.13} parent=315 // pred_check_branch
            %1190 = sbr.rel target = $region320
          $region319: #{custom-call.13} parent=315 // pred_region
            // Predicated region
            $region332: #{custom-call.13} parent=319 // pred_check
              _
            $region333: #{custom-call.13} parent=319 // pred_check_branch
              %1205 = sbr.rel (0) target = $region335
            $region334: #{custom-call.13} parent=319 // pred_region
              loop: start=0, step=1, limit=1
              $region336: #{custom-call.13} parent=334 // loop_pre_header
                _
              $region337: #{custom-call.13} parent=334 // loop_header
                %s1208 = sphi 0, %s1212
                %p1209 = scmp.ge.s32.totalorder %s1208, 1
                %s1213 = sphi %s1011, %s1011
                %s1214 = sphi %s1186, %s1186
              $region338: #{custom-call.13} parent=334 // loop_header_branch
                %1211 = sbr.rel (%p1209) target = $region342
              $region339: #{custom-call.13} parent=334 // loop_body
                %v1215 = vld [vmem:[%s1213] sm:$0x3]
                %1216 = vst [vmem:[%s1214] sm:$0x3] %v1215
              $region340: #{custom-call.13} parent=334 // loop_footer
                %s1212 = sadd.s32 1, %s1208
              $region341: #{custom-call.13} parent=334 // loop_footer_branch
                %1207 = sbr.rel target = $region337
              $region342: #{custom-call.13} parent=334 // loop_exit
                _
            $region335: #{custom-call.13} parent=319 // pred_fallthru
              _
          $region320: #{custom-call.13} parent=315 // pred_fallthru
            _
          // Predicated region
          $region321: #{custom-call.13} parent=315 // pred_check
            _
          $region322: #{custom-call.13} parent=315 // pred_check_branch
            %1192 = sbr.rel (0) target = $region324
          $region323: #{custom-call.13} parent=315 // pred_region
            loop: start=0, step=1, limit=1
            $region325: #{custom-call.13} parent=323 // loop_pre_header
              _
            $region326: #{custom-call.13} parent=323 // loop_header
              %s1195 = sphi 0, %s1199
              %p1196 = scmp.ge.s32.totalorder %s1195, 1
              %s1200 = sphi %s1011, %s1011
              %s1201 = sphi %s1186, %s1186
            $region327: #{custom-call.13} parent=323 // loop_header_branch
              %1198 = sbr.rel (%p1196) target = $region331
            $region328: #{custom-call.13} parent=323 // loop_body
              %v1202 = vld [vmem:[%s1200] sm:$0x3]
              %1203 = vst [vmem:[%s1201] sm:$0x3] %v1202
            $region329: #{custom-call.13} parent=323 // loop_footer
              %s1199 = sadd.s32 1, %s1195
            $region330: #{custom-call.13} parent=323 // loop_footer_branch
              %1194 = sbr.rel target = $region326
            $region331: #{custom-call.13} parent=323 // loop_exit
              _
          $region324: #{custom-call.13} parent=315 // pred_fallthru
            _
        $region316: #{custom-call.13} parent=139 // pred_fallthru
          _
        %1217 = vnop
      $region140: #{custom-call.13} parent=5 // pred_fallthru
        _
      %p1218 = scmp.le.s32.totalorder 2, %s12
      // Predicated region
      $region343: #{custom-call.13} parent=5 // pred_check
        %p1219 = pneg %p1218
      $region344: #{custom-call.13} parent=5 // pred_check_branch
        %1221 = sbr.rel (%p1219) target = $region346
      $region345: #{custom-call.13} parent=5 // pred_region
        %s1222 = ssub.s32 %s12, 2
        // Predicated region
        $region347: #{custom-call.13} parent=345 // pred_check
          %p1223 = pneg %p43
        $region348: #{custom-call.13} parent=345 // pred_check_branch
          %1225 = sbr.rel (%p1223) target = $region350
        $region349: #{custom-call.13} parent=345 // pred_region
          %s1226 = sand.u32 %s28, 1
          %s1227 = sand.u32 %s28, 1
          %s1228 = smul.addr %s1227, 2
          %s1229 = scalar_lea.vmem [#allocation9], %s1228
        $region350: #{custom-call.13} parent=345 // pred_fallthru
          _
        // Predicated region
        $region351: #{custom-call.13} parent=345 // pred_check
          %p1230 = pneg %p71
        $region352: #{custom-call.13} parent=345 // pred_check_branch
          %1232 = sbr.rel (%p1230) target = $region354
        $region353: #{custom-call.13} parent=345 // pred_region
          %s1233 = sand.u32 %s56, 1
          %s1234 = sand.u32 %s56, 1
          %s1235 = smul.addr %s1234, 2
          %s1236 = scalar_lea.vmem [#allocation11], %s1235
        $region354: #{custom-call.13} parent=345 // pred_fallthru
          _
        %s1237 = sand.u32 %s18, 1
        %s1238 = sand.u32 %s18, 1
        %s1239 = smul.addr %s1238, 2
        %s1240 = scalar_lea.vmem [#allocation13], %s1239
        %s1241 = sand.u32 %s18, 1
        %s1242 = sand.u32 %s18, 1
        %s1243 = smul.addr %s1242, 2
        %s1244 = scalar_lea.vmem [#allocation15], %s1243
        %s1245 = sand.u32 %s18, 1
        %s1246 = sand.u32 %s18, 1
        %s1247 = smul.addr %s1246, 2
        %s1248 = scalar_lea.vmem [#allocation17], %s1247
        %s1249 = sand.u32 %s18, 1
        %s1250 = sand.u32 %s18, 1
        %s1251 = smul.addr %s1250, 2
        %s1252 = scalar_lea.vmem [#allocation19], %s1251
      $region346: #{custom-call.13} parent=5 // pred_fallthru
        _
    $region6: #{custom-call.13} parent=1 // loop_footer
      %s16 = sadd.s32 1, %s12
    $region7: #{custom-call.13} parent=1 // loop_footer_branch
      %11 = sbr.rel target = $region3
    $region8: #{custom-call.13} parent=1 // loop_exit
      _

// kernel: reverse
$region0: #{reverse}
  %s0 = inlined_call_operand.vmem [shape: f32[2,1,2], index: 0, kind: input, shape index: {}]
  %s1 = inlined_call_operand.vmem [shape: f32[2,1,2], index: 1, kind: output, shape index: {}]
  $region1: #{reverse} parent=0
    #allocation0 [shape = 'u8[16384]{0}', space=vmem, size = 0x4000, scoped, tag = 'operand span for operand 0']
    #allocation1 [shape = 'u8[4096]{0}', space=vmem, size = 0x1000, scoped, tag = 'packed  for operand 0']
    #allocation2 [shape = 'u8[8192]{0}', space=vmem, size = 0x2000, scoped, tag = 'operand span for operand 1']
    #allocation3 [shape = 'u8[2048]{0}', space=vmem, size = 0x800, scoped, tag = 'packed  for operand 1']
    %s2 = scalar_lea.vmem [#allocation1], 2
    // Predicated region
    $region2: #{reverse} parent=1 // pred_check
      _
    $region3: #{reverse} parent=1 // pred_check_branch
      %4 = sbr.rel (0) target = $region5
    $region4: #{reverse} parent=1 // pred_region
      // Predicated region
      $region6: #{reverse} parent=4 // pred_check
        _
      $region7: #{reverse} parent=4 // pred_check_branch
        %6 = sbr.rel target = $region9
      $region8: #{reverse} parent=4 // pred_region
        // Predicated region
        $region21: #{reverse} parent=8 // pred_check
          _
        $region22: #{reverse} parent=8 // pred_check_branch
          %23 = sbr.rel (0) target = $region24
        $region23: #{reverse} parent=8 // pred_region
          loop: start=0, step=1, limit=1
          $region25: #{reverse} parent=23 // loop_pre_header
            _
          $region26: #{reverse} parent=23 // loop_header
            %s26 = sphi 0, %s30
            %p27 = scmp.ge.s32.totalorder %s26, 1
            %s31 = sphi %s0, %s0
            %s32 = sphi %s2, %s2
          $region27: #{reverse} parent=23 // loop_header_branch
            %29 = sbr.rel (%p27) target = $region31
          $region28: #{reverse} parent=23 // loop_body
            %v33 = vld [vmem:[%s31] sm:$0x3]
            %34 = vst [vmem:[%s32] sm:$0x3] %v33
            %v35 = vld [vmem:[%s31 + $0x2] sm:$0x3]
            %36 = vst [vmem:[%s32 + $0x4] sm:$0x3] %v35
          $region29: #{reverse} parent=23 // loop_footer
            %s30 = sadd.s32 1, %s26
          $region30: #{reverse} parent=23 // loop_footer_branch
            %25 = sbr.rel target = $region26
          $region31: #{reverse} parent=23 // loop_exit
            _
        $region24: #{reverse} parent=8 // pred_fallthru
          _
      $region9: #{reverse} parent=4 // pred_fallthru
        _
      // Predicated region
      $region10: #{reverse} parent=4 // pred_check
        _
      $region11: #{reverse} parent=4 // pred_check_branch
        %8 = sbr.rel (0) target = $region13
      $region12: #{reverse} parent=4 // pred_region
        loop: start=0, step=1, limit=1
        $region14: #{reverse} parent=12 // loop_pre_header
          _
        $region15: #{reverse} parent=12 // loop_header
          %s11 = sphi 0, %s15
          %p12 = scmp.ge.s32.totalorder %s11, 1
          %s16 = sphi %s0, %s0
          %s17 = sphi %s2, %s2
        $region16: #{reverse} parent=12 // loop_header_branch
          %14 = sbr.rel (%p12) target = $region20
        $region17: #{reverse} parent=12 // loop_body
          %v18 = vld [vmem:[%s16] sm:$0x3]
          %19 = vst [vmem:[%s17] sm:$0x3] %v18
          %v20 = vld [vmem:[%s16 + $0x2] sm:$0x3]
          %21 = vst [vmem:[%s17 + $0x4] sm:$0x3] %v20
        $region18: #{reverse} parent=12 // loop_footer
          %s15 = sadd.s32 1, %s11
        $region19: #{reverse} parent=12 // loop_footer_branch
          %10 = sbr.rel target = $region15
        $region20: #{reverse} parent=12 // loop_exit
          _
      $region13: #{reverse} parent=4 // pred_fallthru
        _
    $region5: #{reverse} parent=1 // pred_fallthru
      _
    %37 = vnop
    %s39 = sshllo.u32 0, 2
    %s40 = smul.addr 2, 3
    %s41 = scalar_lea.vmem [#allocation1], %s40
    %v42 = vld [vmem:[%s41] sm:%s39]
    %s43 = scalar_lea.vmem [#allocation0], 24
    %44 = vst [vmem:[%s43] sm:%s39] %v42
    %s45 = smul.addr 2, 2
    %s46 = scalar_lea.vmem [#allocation1], %s45
    %v47 = vld [vmem:[%s46] sm:%s39]
    %s48 = scalar_lea.vmem [#allocation0], 16
    %49 = vst [vmem:[%s48] sm:%s39] %v47
    %s50 = scalar_lea.vmem [#allocation1], 2
    %v51 = vld [vmem:[%s50] sm:%s39]
    %s52 = scalar_lea.vmem [#allocation0], 8
    %53 = vst [vmem:[%s52] sm:%s39] %v51
    %v54 = vld [vmem:[#allocation1] sm:%s39]
    %55 = vst [vmem:[#allocation0] sm:%s39] %v54
    %s56 = scalar_lea.vmem [#allocation0], 7
    %v57 = vld [vmem:[%s56] ss:$-1 sm:$0xff]
    %v58 = vrot.slane %v57, 6
    %59 = vst [vmem:[#allocation2] sm:$0xff] %v58
    %s60 = scalar_lea.vmem [#allocation0], 8
    %s61 = scalar_lea.vmem %s60, 7 [#allocation0]
    %v62 = vld [vmem:[%s61] ss:$-1 sm:$0xff]
    %v63 = vrot.slane %v62, 6
    %v64 = vlaneseq
    %v65 = vshrl.u32 %v64, 7
    %vm66 = vcmp.lt.s32.totalorder %v65, 2
    %67 = vst.msk [vmem:[#allocation2] sm:$0xff] %vm66, %v63
    %s68 = scalar_lea.vmem [#allocation2], 8
    %s69 = scalar_lea.vmem [#allocation0], 16
    %s70 = scalar_lea.vmem %s69, 7 [#allocation0]
    %v71 = vld [vmem:[%s70] ss:$-1 sm:$0xff]
    %v72 = vrot.slane %v71, 6
    %73 = vst [vmem:[%s68] sm:$0xff] %v72
    %s74 = scalar_lea.vmem %s69, 8 [#allocation0]
    %s75 = scalar_lea.vmem %s74, 7 [#allocation0]
    %v76 = vld [vmem:[%s75] ss:$-1 sm:$0xff]
    %v77 = vrot.slane %v76, 6
    %v78 = vlaneseq
    %v79 = vshrl.u32 %v78, 7
    %vm80 = vcmp.lt.s32.totalorder %v79, 2
    %81 = vst.msk [vmem:[%s68] sm:$0xff] %vm80, %v77
    %s83 = sshllo.u32 0, 2
    %v85 = vld [vmem:[#allocation2] sm:%s83]
    %s86 = sshllo.u32 0, 2
    %87 = vst [vmem:[#allocation3] sm:%s86] %v85
    %s88 = scalar_lea.vmem [#allocation2], 8
    %v89 = vld [vmem:[%s88] sm:%s83]
    %s90 = sshllo.u32 0, 2
    %s91 = scalar_lea.vmem [#allocation3], 2
    %92 = vst [vmem:[%s91] sm:%s90] %v89
    // Predicated region
    $region32: #{reverse} parent=1 // pred_check
      _
    $region33: #{reverse} parent=1 // pred_check_branch
      %94 = sbr.rel (0) target = $region35
    $region34: #{reverse} parent=1 // pred_region
      // Predicated region
      $region36: #{reverse} parent=34 // pred_check
        _
      $region37: #{reverse} parent=34 // pred_check_branch
        %96 = sbr.rel target = $region39
      $region38: #{reverse} parent=34 // pred_region
        // Predicated region
        $region51: #{reverse} parent=38 // pred_check
          _
        $region52: #{reverse} parent=38 // pred_check_branch
          %113 = sbr.rel (0) target = $region54
        $region53: #{reverse} parent=38 // pred_region
          loop: start=0, step=1, limit=1
          $region55: #{reverse} parent=53 // loop_pre_header
            _
          $region56: #{reverse} parent=53 // loop_header
            %s116 = sphi 0, %s120
            %p117 = scmp.ge.s32.totalorder %s116, 1
            %s121 = sphi [#allocation3], [#allocation3]
            %s122 = sphi %s1, %s1
          $region57: #{reverse} parent=53 // loop_header_branch
            %119 = sbr.rel (%p117) target = $region61
          $region58: #{reverse} parent=53 // loop_body
            %v123 = vld [vmem:[%s121] sm:$0x3]
            %124 = vst [vmem:[%s122] sm:$0x3] %v123
            %v125 = vld [vmem:[%s121 + $0x2] sm:$0x3]
            %126 = vst [vmem:[%s122 + $0x2] sm:$0x3] %v125
          $region59: #{reverse} parent=53 // loop_footer
            %s120 = sadd.s32 1, %s116
          $region60: #{reverse} parent=53 // loop_footer_branch
            %115 = sbr.rel target = $region56
          $region61: #{reverse} parent=53 // loop_exit
            _
        $region54: #{reverse} parent=38 // pred_fallthru
          _
      $region39: #{reverse} parent=34 // pred_fallthru
        _
      // Predicated region
      $region40: #{reverse} parent=34 // pred_check
        _
      $region41: #{reverse} parent=34 // pred_check_branch
        %98 = sbr.rel (0) target = $region43
      $region42: #{reverse} parent=34 // pred_region
        loop: start=0, step=1, limit=1
        $region44: #{reverse} parent=42 // loop_pre_header
          _
        $region45: #{reverse} parent=42 // loop_header
          %s101 = sphi 0, %s105
          %p102 = scmp.ge.s32.totalorder %s101, 1
          %s106 = sphi [#allocation3], [#allocation3]
          %s107 = sphi %s1, %s1
        $region46: #{reverse} parent=42 // loop_header_branch
          %104 = sbr.rel (%p102) target = $region50
        $region47: #{reverse} parent=42 // loop_body
          %v108 = vld [vmem:[%s106] sm:$0x3]
          %109 = vst [vmem:[%s107] sm:$0x3] %v108
          %v110 = vld [vmem:[%s106 + $0x2] sm:$0x3]
          %111 = vst [vmem:[%s107 + $0x2] sm:$0x3] %v110
        $region48: #{reverse} parent=42 // loop_footer
          %s105 = sadd.s32 1, %s101
        $region49: #{reverse} parent=42 // loop_footer_branch
          %100 = sbr.rel target = $region45
        $region50: #{reverse} parent=42 // loop_exit
          _
      $region43: #{reverse} parent=34 // pred_fallthru
        _
    $region35: #{reverse} parent=1 // pred_fallthru
      _
    %127 = vnop

// kernel: sin.0
$region0: #{sin.0}
  #allocation0 [shape = 's32[1]{0}', space=sflag, size = 0x4, scoped, tag = 'scoped memory for sin.0']
  %s0 = inlined_call_operand.vmem [shape: f32[2,1], index: 0, kind: input, shape index: {}]
  %s1 = inlined_call_operand.vmem [shape: f32[2,1], index: 1, kind: output, shape index: {}]
  %v2 = vld [vmem:[%s0] sm:$0x1]
  %v3 = vand.u32 2147483647, %v2
  %vm4 = vcmp.le.f32.partialorder %v3, 0.7853982
  %vm5 = vcmp.lt.s32.totalorder %v2, 0
  %v6 = vand.u32 %v2, 2139095040
  %v7 = vshrl.u32 %v6, 23
  %v8 = vsub.s32 %v7, 127
  %v9 = vand.u32 2147483647, %v2
  %v10 = vand.u32 %v9, 8388607
  %v11 = vor.u32 %v10, 8388608
  %v12 = vsub.s32 0, %v11
  %v13 = vadd.s32 %v8, 1
  %vm14 = vcmp.gt.s32.totalorder %v13, 0
  %v15 = vsel %vm14, %v13, 0
  %v16 = vshrl.u32 %v15, 5
  %v17 = vand.u32 %v15, 31
  %v18 = vsub.s32 32, %v17
  %v19 = vshrl.u32 683565275, %v18
  %v20 = vshll.u32 683565275, %v17
  %v21 = vshrl.u32 2475754826, %v18
  %v22 = vor.u32 %v20, %v21
  %v23 = vshll.u32 2475754826, %v17
  %v24 = vshrl.u32 2131351028, %v18
  %v25 = vor.u32 %v23, %v24
  %v26 = vshll.u32 2131351028, %v17
  %v27 = vshrl.u32 2102212464, %v18
  %v28 = vor.u32 %v26, %v27
  %v29 = vshll.u32 2102212464, %v17
  %v30 = vshrl.u32 920167782, %v18
  %v31 = vor.u32 %v29, %v30
  %v32 = vshll.u32 920167782, %v17
  %v33 = vshrl.u32 1326507024, %v18
  %v34 = vor.u32 %v32, %v33
  %vm35 = vcmp.lt.s32.totalorder %v16, 1
  %vm36 = vcmp.lt.s32.totalorder %v16, 2
  %vm37 = vcmp.lt.s32.totalorder %v16, 3
  %vm38 = vcmp.lt.s32.totalorder %v16, 4
  %v39 = vsel %vm35, %v19, %v22
  %v40 = vsel %vm38, %v28, 2102212464
  %v41 = vsel %vm37, %v25, %v40
  %v42 = vsel %vm36, %v39, %v41
  %v43 = vsel %vm35, %v22, %v25
  %v44 = vsel %vm38, %v31, 920167782
  %v45 = vsel %vm37, %v28, %v44
  %v46 = vsel %vm36, %v43, %v45
  %v47 = vsel %vm35, %v25, %v28
  %v48 = vsel %vm38, %v34, 1326507024
  %v49 = vsel %vm37, %v31, %v48
  %v50 = vsel %vm36, %v47, %v49
  %v51 = vshll.u32 %v11, 8
  %v52 = vmul.u32.u64.compose %v51, %v50
  %v53 = vextract.low.u32 %v52
  %v54 = vextract.high.u32 %v52
  %v55 = vmul.u32.u64.compose %v51, %v46
  %v56 = vextract.low.u32 %v55
  %v57 = vextract.high.u32 %v55
  %v58 = vmul.u32 %v51, %v42
  %v59 = vadd.s32 %v54, %v56
  %vm60 = vc.u32 %v54, %v56
  %v61 = vadd.s32 %v57, 1
  %v62 = vsel %vm60, %v61, %v57
  %v63 = vadd.s32 %v58, %v62
  %v64 = vadd.s32 %v63, 536870912
  %v65 = vshrl.u32 %v64, 30
  %v66 = vshll.u32 %v65, 30
  %v67 = vsub.s32 %v63, %v66
  %vm68 = vcmp.lt.s32.totalorder %v67, 0
  %v69 = vsub.s32 0, %v67
  %v70 = vsel %vm68, %v69, %v67
  %v71 = vclz %v70
  %v72 = vsub.s32 %v71, 2
  %vm73 = vcmp.gt.s32.totalorder 0, %v72
  %v74 = vsel %vm73, 0, %v72
  %v75 = vsub.s32 32, %v74
  %v76 = vshll.u32 %v67, %v74
  %v77 = vshrl.u32 %v59, %v75
  %v78 = vor.u32 %v76, %v77
  %v79 = vsub.s32 4294967266, %v74
  %v80 = vadd.s32 %v79, 127
  %v81 = vshll.u32 %v80, 23
  %v82 = vor.u32 4788187, %v81
  %v83 = vand.u32 2147483647, %v82
  %v85 = vcvt.s32.f32 %v78
  %v86 = vmul.f32 %v85, %v83
  %v87 = vxor.u32 %v86, 2147483648
  %v88 = vsel %vm5, %v87, %v86
  %v89 = vsub.s32 4, %v65
  %v90 = vsel %vm5, %v89, %v65
  %v91 = vsel %vm4, %v2, %v88
  %v92 = vsel %vm4, 0, %v90
  %v93 = vcosq.f32.pop %v91
  %v94 = vsinq.f32.pop %v91
  %vm95 = vweird.f32 %v2
  %v96 = vadd.s32 %v92, 3
  %v97 = vand.u32 %v96, 3
  %vm98 = vcmp.lt.s32.totalorder %v97, 2
  %vm99 = vcmp.eq.s32.totalorder %v97, 0
  %v100 = vxor.u32 %v94, 2147483648
  %v101 = vsel %vm99, %v93, %v100
  %vm102 = vcmp.eq.s32.totalorder %v97, 2
  %v103 = vxor.u32 %v93, 2147483648
  %v104 = vsel %vm102, %v103, %v94
  %v105 = vsel %vm98, %v101, %v104
  %v106 = vsel %vm95, nan, %v105
  %107 = vst [vmem:[%s1] sm:$0x1] %v106

// kernel: custom-call.14
$region0: #{custom-call.14}
  %s0 = inlined_call_operand.vmem [shape: f32[2,2,2], index: 0, kind: input, shape index: {}]
  %s1 = inlined_call_operand.vmem [shape: f32[2,2,2], index: 1, kind: output, shape index: {0}]
  %s2 = inlined_call_operand.hbm [shape: s32[2,2], index: 2, kind: output, shape index: {1}]
  %s3 = inlined_call_operand.vmem [shape: s32[2,2], index: 3, kind: output, shape index: {2}]
  %4 = xla_tuple %s1, %s2, %s3
  $region1: #{custom-call.14} parent=0
    #allocation0 [shape = 'u8[4096]{0}', space=vmem, size = 0x1000, scoped, tag = 'operand span for operand 0']
    #allocation1 [shape = 'u8[2048]{0}', space=vmem, size = 0x800, scoped, tag = 'packed  for operand 0']
    #allocation2 [shape = 'u8[4096]{0}', space=vmem, size = 0x1000, scoped, tag = 'operand span for operand 1']
    #allocation3 [shape = 'u8[2048]{0}', space=vmem, size = 0x800, scoped, tag = 'packed  for operand 1']
    #allocation4 [shape = 'u8[4096]{0}', space=vmem, size = 0x1000, scoped, tag = 'operand span for operand 2']
    #allocation5 [shape = 'u8[2048]{0}', space=vmem, size = 0x800, scoped, tag = 'packed  for operand 2']
    #allocation6 [shape = 's32[2]{0}', space=sflag, size = 0x8, scoped, tag = 'scoped memory for custom-call.14']
    #allocation7 [shape = 'u8[4096]{0}', space=vmem, size = 0x1000, scoped, tag = 'operand span for operand 3']
    #allocation8 [shape = 'u8[2048]{0}', space=vmem, size = 0x800, scoped, tag = 'packed  for operand 3']
    %5 = vsyncpa [#allocation6], 0
    %s6 = scalar_lea.sflag [#allocation6], 1
    %7 = vsyncpa %s6, 0
    loop: start=0, step=1, limit=4
    $region2: #{custom-call.14} parent=1 // loop_pre_header
      _
    $region3: #{custom-call.14} parent=1 // loop_header
      %s9 = sphi 0, %s13
      %p10 = scmp.ge.s32.totalorder %s9, 4
      %s21 = sphi 0, %s23
      %s24 = sphi 0, %s21
      %s25 = sphi 0, %s24
      %s41 = sphi 0, %s25
      %s49 = sphi 0, %s51
      %s52 = sphi 0, %s49
      %s53 = sphi 0, %s52
      %s69 = sphi 0, %s53
    $region4: #{custom-call.14} parent=1 // loop_header_branch
      %12 = sbr.rel (%p10) target = $region8
    $region5: #{custom-call.14} parent=1 // loop_body
      %s14 = ssub.s32 %s9, 1
      %s15 = ssub.s32 %s9, 2
      %s16 = sadd.s32 %s9, 1
      %s17 = sshrl.u32 %s9, 3
      %s18 = sshrl.u32 %s16, 3
      %s19 = ssub.s32 %s17, %s18
      %p20 = scmp.eq.s32.totalorder %s19, 0
      %s22 = sadd.s32 %s21, 1
      %s23 = scalar_select %p20, %s21, %s22
      %p26 = pneg %p20
      %p27 = scmp.eq.s32.totalorder %s9, 1
      %p28 = por %p26, %p27
      %p29 = scmp.ne.s32.totalorder %s21, %s24
      %p30 = scmp.eq.s32.totalorder %s9, 0
      %p31 = por %p29, %p30
      %p32 = scmp.ne.s32.totalorder %s21, %s24
      %p33 = scmp.eq.s32.totalorder %s14, 1
      %p34 = por %p32, %p33
      %p35 = scmp.ne.s32.totalorder %s24, %s25
      %p36 = scmp.eq.s32.totalorder %s14, 0
      %p37 = por %p35, %p36
      %p38 = scmp.ne.s32.totalorder %s24, %s25
      %p39 = scmp.eq.s32.totalorder %s15, 1
      %p40 = por %p38, %p39
      %p42 = scmp.ne.s32.totalorder %s25, %s41
      %p43 = scmp.eq.s32.totalorder %s15, 0
      %p44 = por %p42, %p43
      %s45 = sshrl.u32 %s9, 3
      %s46 = sshrl.u32 %s16, 3
      %s47 = ssub.s32 %s45, %s46
      %p48 = scmp.eq.s32.totalorder %s47, 0
      %s50 = sadd.s32 %s49, 1
      %s51 = scalar_select %p48, %s49, %s50
      %p54 = pneg %p48
      %p55 = scmp.eq.s32.totalorder %s9, 1
      %p56 = por %p54, %p55
      %p57 = scmp.ne.s32.totalorder %s49, %s52
      %p58 = scmp.eq.s32.totalorder %s9, 0
      %p59 = por %p57, %p58
      %p60 = scmp.ne.s32.totalorder %s49, %s52
      %p61 = scmp.eq.s32.totalorder %s14, 1
      %p62 = por %p60, %p61
      %p63 = scmp.ne.s32.totalorder %s52, %s53
      %p64 = scmp.eq.s32.totalorder %s14, 0
      %p65 = por %p63, %p64
      %p66 = scmp.ne.s32.totalorder %s52, %s53
      %p67 = scmp.eq.s32.totalorder %s15, 1
      %p68 = por %p66, %p67
      %p70 = scmp.ne.s32.totalorder %s53, %s69
      %p71 = scmp.eq.s32.totalorder %s15, 0
      %p72 = por %p70, %p71
      %p73 = scmp.le.s32.totalorder 1, %s9
      %p74 = scmp.lt.s32.totalorder %s9, 3
      %p75 = pnand %p73, %p74
      %p76 = pneg %p75
      // Predicated region
      $region9: #{custom-call.14} parent=5 // pred_check
        _
      $region10: #{custom-call.14} parent=5 // pred_check_branch
        %78 = sbr.rel (%p75) target = $region12
      $region11: #{custom-call.14} parent=5 // pred_region
        %s79 = ssub.s32 %s9, 1
      $region12: #{custom-call.14} parent=5 // pred_fallthru
        _
      %p80 = scmp.lt.s32.totalorder %s9, 2
      // Predicated region
      $region13: #{custom-call.14} parent=5 // pred_check
        %p81 = pneg %p80
      $region14: #{custom-call.14} parent=5 // pred_check_branch
        %83 = sbr.rel (%p81) target = $region16
      $region15: #{custom-call.14} parent=5 // pred_region
        %s84 = sand.u32 %s9, 1
        %s85 = sand.u32 %s9, 1
        %s86 = smul.addr %s85, 2
        %s87 = scalar_lea.vmem [#allocation1], %s86
        %s88 = smul.addr %s9, 2
        %s89 = scalar_lea.vmem %s0, %s88
        // Predicated region
        $region17: #{custom-call.14} parent=15 // pred_check
          _
        $region18: #{custom-call.14} parent=15 // pred_check_branch
          %91 = sbr.rel (0) target = $region20
        $region19: #{custom-call.14} parent=15 // pred_region
          // Predicated region
          $region21: #{custom-call.14} parent=19 // pred_check
            _
          $region22: #{custom-call.14} parent=19 // pred_check_branch
            %93 = sbr.rel target = $region24
          $region23: #{custom-call.14} parent=19 // pred_region
            // Predicated region
            $region36: #{custom-call.14} parent=23 // pred_check
              _
            $region37: #{custom-call.14} parent=23 // pred_check_branch
              %108 = sbr.rel (0) target = $region39
            $region38: #{custom-call.14} parent=23 // pred_region
              loop: start=0, step=1, limit=1
              $region40: #{custom-call.14} parent=38 // loop_pre_header
                _
              $region41: #{custom-call.14} parent=38 // loop_header
                %s111 = sphi 0, %s115
                %p112 = scmp.ge.s32.totalorder %s111, 1
                %s116 = sphi %s89, %s89
                %s117 = sphi %s87, %s87
              $region42: #{custom-call.14} parent=38 // loop_header_branch
                %114 = sbr.rel (%p112) target = $region46
              $region43: #{custom-call.14} parent=38 // loop_body
                %v118 = vld [vmem:[%s116] sm:$0x3]
                %119 = vst [vmem:[%s117] sm:$0x3] %v118
              $region44: #{custom-call.14} parent=38 // loop_footer
                %s115 = sadd.s32 1, %s111
              $region45: #{custom-call.14} parent=38 // loop_footer_branch
                %110 = sbr.rel target = $region41
              $region46: #{custom-call.14} parent=38 // loop_exit
                _
            $region39: #{custom-call.14} parent=23 // pred_fallthru
              _
          $region24: #{custom-call.14} parent=19 // pred_fallthru
            _
          // Predicated region
          $region25: #{custom-call.14} parent=19 // pred_check
            _
          $region26: #{custom-call.14} parent=19 // pred_check_branch
            %95 = sbr.rel (0) target = $region28
          $region27: #{custom-call.14} parent=19 // pred_region
            loop: start=0, step=1, limit=1
            $region29: #{custom-call.14} parent=27 // loop_pre_header
              _
            $region30: #{custom-call.14} parent=27 // loop_header
              %s98 = sphi 0, %s102
              %p99 = scmp.ge.s32.totalorder %s98, 1
              %s103 = sphi %s89, %s89
              %s104 = sphi %s87, %s87
            $region31: #{custom-call.14} parent=27 // loop_header_branch
              %101 = sbr.rel (%p99) target = $region35
            $region32: #{custom-call.14} parent=27 // loop_body
              %v105 = vld [vmem:[%s103] sm:$0x3]
              %106 = vst [vmem:[%s104] sm:$0x3] %v105
            $region33: #{custom-call.14} parent=27 // loop_footer
              %s102 = sadd.s32 1, %s98
            $region34: #{custom-call.14} parent=27 // loop_footer_branch
              %97 = sbr.rel target = $region30
            $region35: #{custom-call.14} parent=27 // loop_exit
              _
          $region28: #{custom-call.14} parent=19 // pred_fallthru
            _
        $region20: #{custom-call.14} parent=15 // pred_fallthru
          _
        %120 = vnop
      $region16: #{custom-call.14} parent=5 // pred_fallthru
        _
      %p121 = scmp.le.s32.totalorder 1, %s9
      %p122 = scmp.lt.s32.totalorder %s9, 3
      %p123 = pnand %p121, %p122
      %p124 = pneg %p123
      // Predicated region
      $region47: #{custom-call.14} parent=5 // pred_check
        _
      $region48: #{custom-call.14} parent=5 // pred_check_branch
        %126 = sbr.rel (%p123) target = $region50
      $region49: #{custom-call.14} parent=5 // pred_region
        #allocation9 [shape = 's32[2,128]{1,0}', space=vmem, size = 0x1000, scoped, tag = 'scratch for permutations']
        %s127 = ssub.s32 %s9, 1
        %s128 = sand.u32 %s14, 1
        %s129 = sand.u32 %s14, 1
        %s130 = smul.addr %s129, 2
        %s131 = scalar_lea.vmem [#allocation1], %s130
        %s132 = sand.u32 %s14, 1
        %s133 = sand.u32 %s14, 1
        %s134 = smul.addr %s133, 2
        %s135 = scalar_lea.vmem [#allocation1], %s134
        %s136 = sand.u32 %s14, 1
        %s137 = sand.u32 %s14, 1
        %s138 = smul.addr %s137, 2
        %s139 = scalar_lea.vmem [#allocation3], %s138
        %p140 = pneg %p37
        %p141 = pneg %p34
        %s142 = sand.u32 %s24, 1
        %s143 = scalar_lea.sflag [#allocation6], %s142
        %s144 = sand.u32 %s24, 1
        %s145 = smul.addr %s144, 2
        %s146 = scalar_lea.vmem [#allocation5], %s145
        %p147 = pneg %p65
        %p148 = pneg %p62
        %s149 = sand.u32 %s52, 1
        %s150 = sand.u32 %s52, 1
        %s151 = smul.addr %s150, 2
        %s152 = scalar_lea.vmem [#allocation8], %s151
        %s154 = sshllo.u32 0, 2
        %v155 = vld [vmem:[%s135] sm:%s154]
        %156 = vst [vmem:[#allocation0] sm:%s154] %v155
        %s157 = sshrl.u32 %s14, 3
        %s158 = sshrl.u32 %s14, 3
        %v159 = vld [vmem:[#allocation0] sm:$0xff]
        %160 = vst [vmem:[#allocation2] sm:$0xff] %v159
        %s161 = sand.u32 %s14, 7
        %s162 = scalar_lea.vmem [#allocation4], %s161
        %s163 = sand.u32 %s14, 7
        %s164 = scalar_lea.vmem [#allocation7], %s163
        %165 = vst [vmem:[%s162] sm:$0x1] 0
        %v166 = vlaneseq
        %v167 = vshrl.u32 %v166, 7
        %v168 = vmov %v167
        %170 = vst [vmem:[#allocation9] sm:$0xff] %v168
        loop: start=0, step=1, limit=2
        $region52: #{custom-call.14} parent=49 // loop_pre_header
          _
        $region53: #{custom-call.14} parent=49 // loop_header
          %s172 = sphi 0, %s176
          %p173 = scmp.ge.s32.totalorder %s172, 2
        $region54: #{custom-call.14} parent=49 // loop_header_branch
          %175 = sbr.rel (%p173) target = $region58
        $region55: #{custom-call.14} parent=49 // loop_body
          %v177 = vstv %s172
          %v178 = vlaneseq
          %v179 = vshrl.u32 %v178, 7
          %v180 = vmov %v179
          %v181 = vld [vmem:[#allocation2] sm:$0xff]
          %v182 = vand.u32 2147483647, %v181
          %v184 = vstv %s172
          %vm185 = vcmp.ge.s32.totalorder %v180, %v184
          %vm186 = vcmp.lt.s32.totalorder %v180, 2
          %vm187 = vmand %vm185, %vm186
          %vm188 = vcmp.lt.f32.partialorder -inf, %v182
          %vm189 = vmand %vm187, %vm188
          %v190 = vsel %vm189, %v180, %v177
          %v191 = vsel %vm189, %v182, -inf
          %v192 = vrot.slane %v191, 1
          %v193 = vrot.slane %v190, 1
          %vm194 = vcmp.ge.f32.partialorder %v192, %v191
          %v195 = vsel %vm194, %v192, %v191
          %v196 = vsel %vm194, %v193, %v190
          %v197 = vrot.slane %v192, 1
          %v198 = vrot.slane %v193, 1
          %vm199 = vcmp.ge.f32.partialorder %v197, %v195
          %v200 = vsel %vm199, %v197, %v195
          %v201 = vsel %vm199, %v198, %v196
          %v202 = vrot.slane %v197, 1
          %v203 = vrot.slane %v198, 1
          %vm204 = vcmp.ge.f32.partialorder %v202, %v200
          %v205 = vsel %vm204, %v202, %v200
          %v206 = vsel %vm204, %v203, %v201
          %v207 = vrot.slane %v202, 1
          %v208 = vrot.slane %v203, 1
          %vm209 = vcmp.ge.f32.partialorder %v207, %v205
          %v210 = vsel %vm209, %v207, %v205
          %v211 = vsel %vm209, %v208, %v206
          %v212 = vrot.slane %v207, 1
          %v213 = vrot.slane %v208, 1
          %vm214 = vcmp.ge.f32.partialorder %v212, %v210
          %v215 = vsel %vm214, %v212, %v210
          %v216 = vsel %vm214, %v213, %v211
          %v217 = vrot.slane %v212, 1
          %v218 = vrot.slane %v213, 1
          %vm219 = vcmp.ge.f32.partialorder %v217, %v215
          %v220 = vsel %vm219, %v217, %v215
          %v221 = vsel %vm219, %v218, %v216
          %v222 = vrot.slane %v217, 1
          %v223 = vrot.slane %v218, 1
          %vm224 = vcmp.ge.f32.partialorder %v222, %v220
          %v225 = vsel %vm224, %v222, %v220
          %v226 = vsel %vm224, %v223, %v221
          %s227 = ssub.s32 128, %s172
          %228 = vrot.lane.b32.xlu0 %v226, %s227
          %v229 = vpop.permute.xlu0 %228
          %s230 = vtos %v229
          %v231 = vstv %s172
          %v232 = vlaneseq
          %v233 = vand.u32 %v232, 127
          %vm234 = vcmp.eq.s32.totalorder %v233, %v231
          %v235 = vstv %s230
          %v236 = vld [vmem:[%s162] ss:$0 sm:$0xff]
          %v237 = vsel %vm234, %v235, %v236
          %238 = vst [vmem:[%s162] sm:$0x1] %v237
          %s239 = scalar_lea.vmem [#allocation2], %s172
          %s240 = scalar_lea.vmem [#allocation2], %s230
          %v241 = vld [vmem:[%s239] ss:$0 sm:$0xff]
          %v242 = vld [vmem:[%s240] ss:$0 sm:$0xff]
          %243 = vst [vmem:[%s240] sm:$0x1] %v241
          %244 = vst [vmem:[%s239] sm:$0x1] %v242
          %s245 = scalar_lea.vmem [#allocation9], %s172
          %s246 = scalar_lea.vmem [#allocation9], %s230
          %v247 = vld [vmem:[%s245] ss:$0 sm:$0xff]
          %v248 = vld [vmem:[%s246] ss:$0 sm:$0xff]
          %249 = vst [vmem:[%s246] sm:$0x1] %v247
          %250 = vst [vmem:[%s245] sm:$0x1] %v248
          %vm251 = vcmp.ne.f32.partialorder %v242, 0.0
          %vm252 = vmand %vm234, %vm251
          %v253 = vsel %vm252, %v242, 1.0
          %v254 = vlaneseq
          %v255 = vand.u32 %v254, 127
          %v256 = vstv %s172
          %vm257 = vcmp.gt.s32.totalorder %v255, %v256
          %v258 = vsel %vm257, %v242, 0.0
          %v259 = vlaneseq
          %v260 = vshrl.u32 %v259, 7
          %v261 = vmov %v260
          %v262 = vld [vmem:[#allocation2] sm:$0xff]
          %v264 = vstv %s172
          %vm265 = vcmp.gt.s32.totalorder %v261, %v264
          %v266 = vsel %vm265, %v253, 1.0
          %v267 = vrcp.pop %v266
          %v268 = vmul.f32 %v262, %v267
          %vm269 = vmand %vm265, %vm234
          %v270 = vsel %vm269, %v268, 0.0
          %271 = vadd.xlane.f32.xlu0 %v270
          %v272 = vpop.xlane.xlu0 %271
          %v273 = vmul.f32 %v272, %v258
          %v274 = vsub.f32 %v268, %v273
          %275 = vst [vmem:[#allocation2] sm:$0xff] %v274
        $region56: #{custom-call.14} parent=49 // loop_footer
          %s176 = sadd.s32 1, %s172
        $region57: #{custom-call.14} parent=49 // loop_footer_branch
          %171 = sbr.rel target = $region53
        $region58: #{custom-call.14} parent=49 // loop_exit
          _
        %v276 = vld [vmem:[#allocation9] sm:$0xff]
        %s277 = scalar_lea.vmem [#allocation9], 8
        %s278 = scalar_lea.vmem [#allocation9], 16
        %s279 = scalar_lea.vmem [#allocation9], 24
        %s280 = scalar_lea.vmem [#allocation9], 32
        %s281 = scalar_lea.vmem [#allocation9], 40
        %s282 = scalar_lea.vmem [#allocation9], 48
        %s283 = scalar_lea.vmem [#allocation9], 56
        %s284 = scalar_lea.vmem [#allocation9], 64
        %s285 = scalar_lea.vmem [#allocation9], 72
        %s286 = scalar_lea.vmem [#allocation9], 80
        %s287 = scalar_lea.vmem [#allocation9], 88
        %s288 = scalar_lea.vmem [#allocation9], 96
        %s289 = scalar_lea.vmem [#allocation9], 104
        %s290 = scalar_lea.vmem [#allocation9], 112
        %s291 = scalar_lea.vmem [#allocation9], 120
        %292 = vxpose.xlu0.b32.start [1/16] %v276, 128
        %293 = vxpose.xlu0.b32.cont [2/16] 0, 128
        %294 = vxpose.xlu0.b32.cont [3/16] 0, 128
        %295 = vxpose.xlu0.b32.cont [4/16] 0, 128
        %296 = vxpose.xlu0.b32.cont [5/16] 0, 128
        %297 = vxpose.xlu0.b32.cont [6/16] 0, 128
        %298 = vxpose.xlu0.b32.cont [7/16] 0, 128
        %299 = vxpose.xlu0.b32.cont [8/16] 0, 128
        %300 = vxpose.xlu0.b32.cont [9/16] 0, 128
        %301 = vxpose.xlu0.b32.cont [10/16] 0, 128
        %302 = vxpose.xlu0.b32.cont [11/16] 0, 128
        %303 = vxpose.xlu0.b32.cont [12/16] 0, 128
        %304 = vxpose.xlu0.b32.cont [13/16] 0, 128
        %305 = vxpose.xlu0.b32.cont [14/16] 0, 128
        %306 = vxpose.xlu0.b32.cont [15/16] 0, 128
        %307 = vxpose.xlu0.b32.end [16/16] 0, 128
        %v308 = vpop.trf.xlu0
        %v309 = vpop.trf.xlu0
        %v310 = vpop.trf.xlu0
        %v311 = vpop.trf.xlu0
        %v312 = vpop.trf.xlu0
        %v313 = vpop.trf.xlu0
        %v314 = vpop.trf.xlu0
        %v315 = vpop.trf.xlu0
        %v316 = vpop.trf.xlu0
        %v317 = vpop.trf.xlu0
        %v318 = vpop.trf.xlu0
        %v319 = vpop.trf.xlu0
        %v320 = vpop.trf.xlu0
        %v321 = vpop.trf.xlu0
        %v322 = vpop.trf.xlu0
        %v323 = vpop.trf.xlu0
        %324 = vst [vmem:[%s164] sm:$0x1] %v308
        %s326 = sshllo.u32 0, 2
        %v328 = vld [vmem:[#allocation2] sm:%s326]
        %s329 = sshllo.u32 0, 2
        %330 = vst [vmem:[%s139] sm:%s329] %v328
        %s332 = sshllo.u32 0, 2
        %v334 = vld [vmem:[#allocation4] sm:%s332]
        %s335 = sshllo.u32 0, 2
        %336 = vst [vmem:[%s146] sm:%s335] %v334
        %s338 = sshllo.u32 0, 2
        %v340 = vld [vmem:[#allocation7] sm:%s338]
        %s341 = sshllo.u32 0, 2
        %342 = vst [vmem:[%s152] sm:%s341] %v340
        %s343 = sand.u32 %s14, 1
        %s344 = sand.u32 %s14, 1
        %s345 = smul.addr %s344, 2
        %s346 = scalar_lea.vmem [#allocation3], %s345
        %s347 = sand.u32 %s24, 1
        %s348 = scalar_lea.sflag [#allocation6], %s347
        %s349 = sand.u32 %s24, 1
        %s350 = smul.addr %s349, 2
        %s351 = scalar_lea.vmem [#allocation5], %s350
        %s352 = sand.u32 %s52, 1
        %s353 = sand.u32 %s52, 1
        %s354 = smul.addr %s353, 2
        %s355 = scalar_lea.vmem [#allocation8], %s354
        %s356 = smul.addr %s14, 2
        %s357 = scalar_lea.vmem %s1, %s356
        // Predicated region
        $region59: #{custom-call.14} parent=49 // pred_check
          _
        $region60: #{custom-call.14} parent=49 // pred_check_branch
          %359 = sbr.rel (0) target = $region62
        $region61: #{custom-call.14} parent=49 // pred_region
          // Predicated region
          $region63: #{custom-call.14} parent=61 // pred_check
            _
          $region64: #{custom-call.14} parent=61 // pred_check_branch
            %361 = sbr.rel target = $region66
          $region65: #{custom-call.14} parent=61 // pred_region
            // Predicated region
            $region78: #{custom-call.14} parent=65 // pred_check
              _
            $region79: #{custom-call.14} parent=65 // pred_check_branch
              %376 = sbr.rel (0) target = $region81
            $region80: #{custom-call.14} parent=65 // pred_region
              loop: start=0, step=1, limit=1
              $region82: #{custom-call.14} parent=80 // loop_pre_header
                _
              $region83: #{custom-call.14} parent=80 // loop_header
                %s379 = sphi 0, %s383
                %p380 = scmp.ge.s32.totalorder %s379, 1
                %s384 = sphi %s346, %s346
                %s385 = sphi %s357, %s357
              $region84: #{custom-call.14} parent=80 // loop_header_branch
                %382 = sbr.rel (%p380) target = $region88
              $region85: #{custom-call.14} parent=80 // loop_body
                %v386 = vld [vmem:[%s384] sm:$0x3]
                %387 = vst [vmem:[%s385] sm:$0x3] %v386
              $region86: #{custom-call.14} parent=80 // loop_footer
                %s383 = sadd.s32 1, %s379
              $region87: #{custom-call.14} parent=80 // loop_footer_branch
                %378 = sbr.rel target = $region83
              $region88: #{custom-call.14} parent=80 // loop_exit
                _
            $region81: #{custom-call.14} parent=65 // pred_fallthru
              _
          $region66: #{custom-call.14} parent=61 // pred_fallthru
            _
          // Predicated region
          $region67: #{custom-call.14} parent=61 // pred_check
            _
          $region68: #{custom-call.14} parent=61 // pred_check_branch
            %363 = sbr.rel (0) target = $region70
          $region69: #{custom-call.14} parent=61 // pred_region
            loop: start=0, step=1, limit=1
            $region71: #{custom-call.14} parent=69 // loop_pre_header
              _
            $region72: #{custom-call.14} parent=69 // loop_header
              %s366 = sphi 0, %s370
              %p367 = scmp.ge.s32.totalorder %s366, 1
              %s371 = sphi %s346, %s346
              %s372 = sphi %s357, %s357
            $region73: #{custom-call.14} parent=69 // loop_header_branch
              %369 = sbr.rel (%p367) target = $region77
            $region74: #{custom-call.14} parent=69 // loop_body
              %v373 = vld [vmem:[%s371] sm:$0x3]
              %374 = vst [vmem:[%s372] sm:$0x3] %v373
            $region75: #{custom-call.14} parent=69 // loop_footer
              %s370 = sadd.s32 1, %s366
            $region76: #{custom-call.14} parent=69 // loop_footer_branch
              %365 = sbr.rel target = $region72
            $region77: #{custom-call.14} parent=69 // loop_exit
              _
          $region70: #{custom-call.14} parent=61 // pred_fallthru
            _
        $region62: #{custom-call.14} parent=49 // pred_fallthru
          _
        %388 = vnop
        // Predicated region
        $region89: #{custom-call.14} parent=49 // pred_check
          %p389 = pneg %p34
        $region90: #{custom-call.14} parent=49 // pred_check_branch
          %391 = sbr.rel (%p389) target = $region92
        $region91: #{custom-call.14} parent=49 // pred_region
          %s392 = sshrl.u32 %s14, 3
          %s394 = ssub.s32 32, 32
          %395 = vsyncadd %s348, %s394
          %s396 = smul.addr %s392, 32
          %s397 = scalar_lea.hbm %s2, %s396
          %s399 = sshll.u32 %s351, 4
          %s400 = int_to_ptr.vmem [resolvable:$true] %s399
          %402 = dma.vmem_to_hbm [thread:$0]  %s400, 32, %s397, %s348
        $region92: #{custom-call.14} parent=49 // pred_fallthru
          _
        // Predicated region
        $region93: #{custom-call.14} parent=49 // pred_check
          %p403 = pneg %p62
        $region94: #{custom-call.14} parent=49 // pred_check_branch
          %405 = sbr.rel (%p403) target = $region96
        $region95: #{custom-call.14} parent=49 // pred_region
          %s406 = sshrl.u32 %s14, 3
          %s407 = smul.addr %s406, 2
          %s408 = scalar_lea.vmem %s3, %s407
          // Predicated region
          $region97: #{custom-call.14} parent=95 // pred_check
            _
          $region98: #{custom-call.14} parent=95 // pred_check_branch
            %410 = sbr.rel (0) target = $region100
          $region99: #{custom-call.14} parent=95 // pred_region
            // Predicated region
            $region101: #{custom-call.14} parent=99 // pred_check
              _
            $region102: #{custom-call.14} parent=99 // pred_check_branch
              %412 = sbr.rel target = $region104
            $region103: #{custom-call.14} parent=99 // pred_region
              // Predicated region
              $region116: #{custom-call.14} parent=103 // pred_check
                _
              $region117: #{custom-call.14} parent=103 // pred_check_branch
                %427 = sbr.rel (0) target = $region119
              $region118: #{custom-call.14} parent=103 // pred_region
                loop: start=0, step=1, limit=1
                $region120: #{custom-call.14} parent=118 // loop_pre_header
                  _
                $region121: #{custom-call.14} parent=118 // loop_header
                  %s430 = sphi 0, %s434
                  %p431 = scmp.ge.s32.totalorder %s430, 1
                  %s435 = sphi %s355, %s355
                  %s436 = sphi %s408, %s408
                $region122: #{custom-call.14} parent=118 // loop_header_branch
                  %433 = sbr.rel (%p431) target = $region126
                $region123: #{custom-call.14} parent=118 // loop_body
                  %v437 = vld [vmem:[%s435] sm:$0x3]
                  %438 = vst [vmem:[%s436] sm:$0x3] %v437
                $region124: #{custom-call.14} parent=118 // loop_footer
                  %s434 = sadd.s32 1, %s430
                $region125: #{custom-call.14} parent=118 // loop_footer_branch
                  %429 = sbr.rel target = $region121
                $region126: #{custom-call.14} parent=118 // loop_exit
                  _
              $region119: #{custom-call.14} parent=103 // pred_fallthru
                _
            $region104: #{custom-call.14} parent=99 // pred_fallthru
              _
            // Predicated region
            $region105: #{custom-call.14} parent=99 // pred_check
              _
            $region106: #{custom-call.14} parent=99 // pred_check_branch
              %414 = sbr.rel (0) target = $region108
            $region107: #{custom-call.14} parent=99 // pred_region
              loop: start=0, step=1, limit=1
              $region109: #{custom-call.14} parent=107 // loop_pre_header
                _
              $region110: #{custom-call.14} parent=107 // loop_header
                %s417 = sphi 0, %s421
                %p418 = scmp.ge.s32.totalorder %s417, 1
                %s422 = sphi %s355, %s355
                %s423 = sphi %s408, %s408
              $region111: #{custom-call.14} parent=107 // loop_header_branch
                %420 = sbr.rel (%p418) target = $region115
              $region112: #{custom-call.14} parent=107 // loop_body
                %v424 = vld [vmem:[%s422] sm:$0x3]
                %425 = vst [vmem:[%s423] sm:$0x3] %v424
              $region113: #{custom-call.14} parent=107 // loop_footer
                %s421 = sadd.s32 1, %s417
              $region114: #{custom-call.14} parent=107 // loop_footer_branch
                %416 = sbr.rel target = $region110
              $region115: #{custom-call.14} parent=107 // loop_exit
                _
            $region108: #{custom-call.14} parent=99 // pred_fallthru
              _
          $region100: #{custom-call.14} parent=95 // pred_fallthru
            _
          %439 = vnop
        $region96: #{custom-call.14} parent=49 // pred_fallthru
          _
      $region50: #{custom-call.14} parent=5 // pred_fallthru
        _
      %p440 = scmp.le.s32.totalorder 2, %s9
      // Predicated region
      $region127: #{custom-call.14} parent=5 // pred_check
        %p441 = pneg %p440
      $region128: #{custom-call.14} parent=5 // pred_check_branch
        %443 = sbr.rel (%p441) target = $region130
      $region129: #{custom-call.14} parent=5 // pred_region
        %s444 = ssub.s32 %s9, 2
        %s445 = sand.u32 %s15, 1
        %s446 = sand.u32 %s15, 1
        %s447 = smul.addr %s446, 2
        %s448 = scalar_lea.vmem [#allocation3], %s447
        // Predicated region
        $region131: #{custom-call.14} parent=129 // pred_check
          %p449 = pneg %p40
        $region132: #{custom-call.14} parent=129 // pred_check_branch
          %451 = sbr.rel (%p449) target = $region134
        $region133: #{custom-call.14} parent=129 // pred_region
          %s452 = sand.u32 %s25, 1
          %s453 = scalar_lea.sflag [#allocation6], %s452
          %s454 = sand.u32 %s25, 1
          %s455 = smul.addr %s454, 2
          %s456 = scalar_lea.vmem [#allocation5], %s455
          %457 = dma.done %s453, 32
        $region134: #{custom-call.14} parent=129 // pred_fallthru
          _
        // Predicated region
        $region135: #{custom-call.14} parent=129 // pred_check
          %p458 = pneg %p68
        $region136: #{custom-call.14} parent=129 // pred_check_branch
          %460 = sbr.rel (%p458) target = $region138
        $region137: #{custom-call.14} parent=129 // pred_region
          %s461 = sand.u32 %s53, 1
          %s462 = sand.u32 %s53, 1
          %s463 = smul.addr %s462, 2
          %s464 = scalar_lea.vmem [#allocation8], %s463
        $region138: #{custom-call.14} parent=129 // pred_fallthru
          _
      $region130: #{custom-call.14} parent=5 // pred_fallthru
        _
    $region6: #{custom-call.14} parent=1 // loop_footer
      %s13 = sadd.s32 1, %s9
    $region7: #{custom-call.14} parent=1 // loop_footer_branch
      %8 = sbr.rel target = $region3
    $region8: #{custom-call.14} parent=1 // loop_exit
      _
    %465 = vsyncpa [#allocation6], 1
    %s466 = scalar_lea.sflag [#allocation6], 1
    %467 = vsyncpa %s466, 1

// kernel: custom-call.16
$region0: #{custom-call.16}
  %s0 = inlined_call_operand.vmem [shape: f32[2,1,2,2], index: 0, kind: input, shape index: {}]
  %s1 = inlined_call_operand.vmem [shape: f32[2,1,2,2], index: 1, kind: output, shape index: {}]
  $region1: #{custom-call.16} parent=0
    #allocation0 [shape = 'u8[4096]{0}', space=vmem, size = 0x1000, scoped, tag = 'operand span for operand 0']
    #allocation1 [shape = 'u8[2048]{0}', space=vmem, size = 0x800, scoped, tag = 'packed  for operand 0']
    #allocation2 [shape = 'u8[4096]{0}', space=vmem, size = 0x1000, scoped, tag = 'operand span for operand 1']
    #allocation3 [shape = 'u8[2048]{0}', space=vmem, size = 0x800, scoped, tag = 'packed  for operand 1']
    loop: start=0, step=1, limit=4
    $region2: #{custom-call.16} parent=1 // loop_pre_header
      _
    $region3: #{custom-call.16} parent=1 // loop_header
      %s3 = sphi 0, %s7
      %p4 = scmp.ge.s32.totalorder %s3, 4
      %s10 = sphi 0, %s36
      %s11 = sphi 0, %s32
      %s12 = sphi 0, %s28
      %s13 = sphi 0, %s24
      %s14 = sphi 0, %s10
      %s15 = sphi 0, %s11
      %s16 = sphi 0, %s12
      %s17 = sphi 0, %s13
      %s18 = sphi 0, %s14
      %s19 = sphi 0, %s15
      %s20 = sphi 0, %s16
      %s21 = sphi 0, %s17
    $region4: #{custom-call.16} parent=1 // loop_header_branch
      %6 = sbr.rel (%p4) target = $region8
    $region5: #{custom-call.16} parent=1 // loop_body
      %s8 = ssub.s32 %s3, 1
      %s9 = ssub.s32 %s3, 2
      %s22 = sadd.s32 1, %s13
      %p23 = scmp.ge.s32.totalorder %s22, 1
      %s24 = scalar_select %p23, 0, %s22
      %s25 = sadd.s32 1, %s12
      %s26 = scalar_select %p23, %s25, %s12
      %p27 = scmp.ge.s32.totalorder %s26, 1
      %s28 = scalar_select %p27, 0, %s26
      %s29 = sadd.s32 1, %s11
      %s30 = scalar_select %p27, %s29, %s11
      %p31 = scmp.ge.s32.totalorder %s30, 1
      %s32 = scalar_select %p31, 0, %s30
      %s33 = sadd.s32 1, %s10
      %s34 = scalar_select %p31, %s33, %s10
      %p35 = scmp.ge.s32.totalorder %s34, 2
      %s36 = scalar_select %p35, 0, %s34
      %p37 = scmp.le.s32.totalorder 1, %s3
      %p38 = scmp.lt.s32.totalorder %s3, 3
      %p39 = pnand %p37, %p38
      %p40 = pneg %p39
      // Predicated region
      $region9: #{custom-call.16} parent=5 // pred_check
        _
      $region10: #{custom-call.16} parent=5 // pred_check_branch
        %42 = sbr.rel (%p39) target = $region12
      $region11: #{custom-call.16} parent=5 // pred_region
        %s43 = ssub.s32 %s3, 1
      $region12: #{custom-call.16} parent=5 // pred_fallthru
        _
      %p44 = scmp.lt.s32.totalorder %s3, 2
      // Predicated region
      $region13: #{custom-call.16} parent=5 // pred_check
        %p45 = pneg %p44
      $region14: #{custom-call.16} parent=5 // pred_check_branch
        %47 = sbr.rel (%p45) target = $region16
      $region15: #{custom-call.16} parent=5 // pred_region
        %s48 = sand.u32 %s3, 1
        %s49 = sand.u32 %s3, 1
        %s50 = smul.addr %s49, 2
        %s51 = scalar_lea.vmem [#allocation1], %s50
        %s52 = sadd.s32 %s13, %s12
        %s53 = sadd.s32 %s52, %s11
        %s54 = sadd.s32 %s53, %s10
        %s55 = smul.addr %s54, 2
        %s56 = scalar_lea.vmem %s0, %s55
        // Predicated region
        $region17: #{custom-call.16} parent=15 // pred_check
          _
        $region18: #{custom-call.16} parent=15 // pred_check_branch
          %58 = sbr.rel (0) target = $region20
        $region19: #{custom-call.16} parent=15 // pred_region
          // Predicated region
          $region21: #{custom-call.16} parent=19 // pred_check
            _
          $region22: #{custom-call.16} parent=19 // pred_check_branch
            %60 = sbr.rel target = $region24
          $region23: #{custom-call.16} parent=19 // pred_region
            // Predicated region
            $region36: #{custom-call.16} parent=23 // pred_check
              _
            $region37: #{custom-call.16} parent=23 // pred_check_branch
              %75 = sbr.rel (0) target = $region39
            $region38: #{custom-call.16} parent=23 // pred_region
              loop: start=0, step=1, limit=1
              $region40: #{custom-call.16} parent=38 // loop_pre_header
                _
              $region41: #{custom-call.16} parent=38 // loop_header
                %s78 = sphi 0, %s82
                %p79 = scmp.ge.s32.totalorder %s78, 1
                %s83 = sphi %s56, %s56
                %s84 = sphi %s51, %s51
              $region42: #{custom-call.16} parent=38 // loop_header_branch
                %81 = sbr.rel (%p79) target = $region46
              $region43: #{custom-call.16} parent=38 // loop_body
                %v85 = vld [vmem:[%s83] sm:$0x3]
                %86 = vst [vmem:[%s84] sm:$0x3] %v85
              $region44: #{custom-call.16} parent=38 // loop_footer
                %s82 = sadd.s32 1, %s78
              $region45: #{custom-call.16} parent=38 // loop_footer_branch
                %77 = sbr.rel target = $region41
              $region46: #{custom-call.16} parent=38 // loop_exit
                _
            $region39: #{custom-call.16} parent=23 // pred_fallthru
              _
          $region24: #{custom-call.16} parent=19 // pred_fallthru
            _
          // Predicated region
          $region25: #{custom-call.16} parent=19 // pred_check
            _
          $region26: #{custom-call.16} parent=19 // pred_check_branch
            %62 = sbr.rel (0) target = $region28
          $region27: #{custom-call.16} parent=19 // pred_region
            loop: start=0, step=1, limit=1
            $region29: #{custom-call.16} parent=27 // loop_pre_header
              _
            $region30: #{custom-call.16} parent=27 // loop_header
              %s65 = sphi 0, %s69
              %p66 = scmp.ge.s32.totalorder %s65, 1
              %s70 = sphi %s56, %s56
              %s71 = sphi %s51, %s51
            $region31: #{custom-call.16} parent=27 // loop_header_branch
              %68 = sbr.rel (%p66) target = $region35
            $region32: #{custom-call.16} parent=27 // loop_body
              %v72 = vld [vmem:[%s70] sm:$0x3]
              %73 = vst [vmem:[%s71] sm:$0x3] %v72
            $region33: #{custom-call.16} parent=27 // loop_footer
              %s69 = sadd.s32 1, %s65
            $region34: #{custom-call.16} parent=27 // loop_footer_branch
              %64 = sbr.rel target = $region30
            $region35: #{custom-call.16} parent=27 // loop_exit
              _
          $region28: #{custom-call.16} parent=19 // pred_fallthru
            _
        $region20: #{custom-call.16} parent=15 // pred_fallthru
          _
        %87 = vnop
      $region16: #{custom-call.16} parent=5 // pred_fallthru
        _
      %p88 = scmp.le.s32.totalorder 1, %s3
      %p89 = scmp.lt.s32.totalorder %s3, 3
      %p90 = pnand %p88, %p89
      %p91 = pneg %p90
      // Predicated region
      $region47: #{custom-call.16} parent=5 // pred_check
        _
      $region48: #{custom-call.16} parent=5 // pred_check_branch
        %93 = sbr.rel (%p90) target = $region50
      $region49: #{custom-call.16} parent=5 // pred_region
        #allocation4 [shape = 'f32[2,2]{1,0}', space=vmem, size = 0x1000, scoped, tag = 'rescaled input a']
        %s94 = ssub.s32 %s3, 1
        %s95 = sand.u32 %s8, 1
        %s96 = sand.u32 %s8, 1
        %s97 = smul.addr %s96, 2
        %s98 = scalar_lea.vmem [#allocation1], %s97
        %s99 = sand.u32 %s8, 1
        %s100 = sand.u32 %s8, 1
        %s101 = smul.addr %s100, 2
        %s102 = scalar_lea.vmem [#allocation1], %s101
        %s103 = sand.u32 %s8, 1
        %s104 = sand.u32 %s8, 1
        %s105 = smul.addr %s104, 2
        %s106 = scalar_lea.vmem [#allocation3], %s105
        %s108 = sshllo.u32 0, 2
        %v109 = vld [vmem:[%s102] sm:%s108]
        %110 = vst [vmem:[#allocation0] sm:%s108] %v109
        %v111 = vlaneseq
        %v112 = vand.u32 %v111, 127
        %vm113 = vcmp.lt.s32.totalorder %v112, 2
        %v114 = vlaneseq
        %v115 = vshrl.u32 %v114, 7
        %vm117 = vcmp.eq.s32.totalorder %v115, %v112
        %v118 = vld [vmem:[#allocation0] sm:$0xff]
        %v119 = vsel %vm117, %v118, 0.0
        %120 = vadd.xlane.f32.xlu0 %v119
        %v121 = vpop.xlane.xlu0 %120
        %vm122 = vcmp.ge.s32.totalorder %v115, %v112
        %vm123 = vmand %vm122, %vm113
        %v124 = vsel %vm123, %v118, 0.0
        %v125 = vrcp.pop %v121
        %v126 = vmul.f32 %v124, %v125
        %127 = vst [vmem:[#allocation4] sm:$0xff] %v126
        %v128 = vlaneseq
        %v129 = vand.u32 %v128, 127
        %v130 = vlaneseq
        %v131 = vshrl.u32 %v130, 7
        %vm133 = vcmp.eq.s32.totalorder %v129, %v131
        %v134 = vlaneseq
        %v135 = vand.u32 %v134, 127
        %vm136 = vcmp.eq.s32.totalorder %v135, 0
        %v137 = vsel %vm136, 1.0, -1.0
        %v138 = vsel %vm133, %v137, 0.0
        %s139 = scalar_lea.vmem [#allocation4], 1
        %v140 = vld [vmem:[%s139] ss:$0 sm:$0xff]
        %v141 = vxor.u32 %v140, 2147483648
        %v142 = vlaneseq
        %v143 = vand.u32 %v142, 127
        %vm144 = vcmp.eq.s32.totalorder %v143, 1
        %v145 = vmul.f32 %v141, %v138
        %146 = vadd.xlane.f32.xlu0 %v145
        %v147 = vpop.xlane.xlu0 %146
        %v148 = vsel %vm144, %v147, %v138
        %v149 = vrcp.pop %v121
        %v150 = vmul.f32 %v148, %v149
        %vm151 = vweird.f32 %v121
        %v152 = vsel %vm151, %v148, %v150
        %153 = vst [vmem:[#allocation2] sm:$0xff] %v152
        %s155 = sshllo.u32 0, 2
        %v157 = vld [vmem:[#allocation2] sm:%s155]
        %s158 = sshllo.u32 0, 2
        %159 = vst [vmem:[%s106] sm:%s158] %v157
        %s160 = sand.u32 %s8, 1
        %s161 = sand.u32 %s8, 1
        %s162 = smul.addr %s161, 2
        %s163 = scalar_lea.vmem [#allocation3], %s162
        %s164 = sadd.s32 %s17, %s16
        %s165 = sadd.s32 %s164, %s15
        %s166 = sadd.s32 %s165, %s14
        %s167 = smul.addr %s166, 2
        %s168 = scalar_lea.vmem %s1, %s167
        // Predicated region
        $region51: #{custom-call.16} parent=49 // pred_check
          _
        $region52: #{custom-call.16} parent=49 // pred_check_branch
          %170 = sbr.rel (0) target = $region54
        $region53: #{custom-call.16} parent=49 // pred_region
          // Predicated region
          $region55: #{custom-call.16} parent=53 // pred_check
            _
          $region56: #{custom-call.16} parent=53 // pred_check_branch
            %172 = sbr.rel target = $region58
          $region57: #{custom-call.16} parent=53 // pred_region
            // Predicated region
            $region70: #{custom-call.16} parent=57 // pred_check
              _
            $region71: #{custom-call.16} parent=57 // pred_check_branch
              %187 = sbr.rel (0) target = $region73
            $region72: #{custom-call.16} parent=57 // pred_region
              loop: start=0, step=1, limit=1
              $region74: #{custom-call.16} parent=72 // loop_pre_header
                _
              $region75: #{custom-call.16} parent=72 // loop_header
                %s190 = sphi 0, %s194
                %p191 = scmp.ge.s32.totalorder %s190, 1
                %s195 = sphi %s163, %s163
                %s196 = sphi %s168, %s168
              $region76: #{custom-call.16} parent=72 // loop_header_branch
                %193 = sbr.rel (%p191) target = $region80
              $region77: #{custom-call.16} parent=72 // loop_body
                %v197 = vld [vmem:[%s195] sm:$0x3]
                %198 = vst [vmem:[%s196] sm:$0x3] %v197
              $region78: #{custom-call.16} parent=72 // loop_footer
                %s194 = sadd.s32 1, %s190
              $region79: #{custom-call.16} parent=72 // loop_footer_branch
                %189 = sbr.rel target = $region75
              $region80: #{custom-call.16} parent=72 // loop_exit
                _
            $region73: #{custom-call.16} parent=57 // pred_fallthru
              _
          $region58: #{custom-call.16} parent=53 // pred_fallthru
            _
          // Predicated region
          $region59: #{custom-call.16} parent=53 // pred_check
            _
          $region60: #{custom-call.16} parent=53 // pred_check_branch
            %174 = sbr.rel (0) target = $region62
          $region61: #{custom-call.16} parent=53 // pred_region
            loop: start=0, step=1, limit=1
            $region63: #{custom-call.16} parent=61 // loop_pre_header
              _
            $region64: #{custom-call.16} parent=61 // loop_header
              %s177 = sphi 0, %s181
              %p178 = scmp.ge.s32.totalorder %s177, 1
              %s182 = sphi %s163, %s163
              %s183 = sphi %s168, %s168
            $region65: #{custom-call.16} parent=61 // loop_header_branch
              %180 = sbr.rel (%p178) target = $region69
            $region66: #{custom-call.16} parent=61 // loop_body
              %v184 = vld [vmem:[%s182] sm:$0x3]
              %185 = vst [vmem:[%s183] sm:$0x3] %v184
            $region67: #{custom-call.16} parent=61 // loop_footer
              %s181 = sadd.s32 1, %s177
            $region68: #{custom-call.16} parent=61 // loop_footer_branch
              %176 = sbr.rel target = $region64
            $region69: #{custom-call.16} parent=61 // loop_exit
              _
          $region62: #{custom-call.16} parent=53 // pred_fallthru
            _
        $region54: #{custom-call.16} parent=49 // pred_fallthru
          _
        %199 = vnop
      $region50: #{custom-call.16} parent=5 // pred_fallthru
        _
      %p200 = scmp.le.s32.totalorder 2, %s3
      // Predicated region
      $region81: #{custom-call.16} parent=5 // pred_check
        %p201 = pneg %p200
      $region82: #{custom-call.16} parent=5 // pred_check_branch
        %203 = sbr.rel (%p201) target = $region84
      $region83: #{custom-call.16} parent=5 // pred_region
        %s204 = ssub.s32 %s3, 2
        %s205 = sand.u32 %s9, 1
        %s206 = sand.u32 %s9, 1
        %s207 = smul.addr %s206, 2
        %s208 = scalar_lea.vmem [#allocation3], %s207
      $region84: #{custom-call.16} parent=5 // pred_fallthru
        _
    $region6: #{custom-call.16} parent=1 // loop_footer
      %s7 = sadd.s32 1, %s3
    $region7: #{custom-call.16} parent=1 // loop_footer_branch
      %2 = sbr.rel target = $region3
    $region8: #{custom-call.16} parent=1 // loop_exit
      _

// kernel: custom-call.15
$region0: #{custom-call.15}
  %s0 = inlined_call_operand.vmem [shape: f32[2,1,2,2], index: 0, kind: input, shape index: {}]
  %s1 = inlined_call_operand.vmem [shape: f32[2,1,2,2], index: 1, kind: output, shape index: {}]
  $region1: #{custom-call.15} parent=0
    #allocation0 [shape = 'u8[4096]{0}', space=vmem, size = 0x1000, scoped, tag = 'operand span for operand 0']
    #allocation1 [shape = 'u8[2048]{0}', space=vmem, size = 0x800, scoped, tag = 'packed  for operand 0']
    #allocation2 [shape = 'u8[4096]{0}', space=vmem, size = 0x1000, scoped, tag = 'operand span for operand 1']
    #allocation3 [shape = 'u8[2048]{0}', space=vmem, size = 0x800, scoped, tag = 'packed  for operand 1']
    loop: start=0, step=1, limit=4
    $region2: #{custom-call.15} parent=1 // loop_pre_header
      _
    $region3: #{custom-call.15} parent=1 // loop_header
      %s3 = sphi 0, %s7
      %p4 = scmp.ge.s32.totalorder %s3, 4
      %s10 = sphi 0, %s36
      %s11 = sphi 0, %s32
      %s12 = sphi 0, %s28
      %s13 = sphi 0, %s24
      %s14 = sphi 0, %s10
      %s15 = sphi 0, %s11
      %s16 = sphi 0, %s12
      %s17 = sphi 0, %s13
      %s18 = sphi 0, %s14
      %s19 = sphi 0, %s15
      %s20 = sphi 0, %s16
      %s21 = sphi 0, %s17
    $region4: #{custom-call.15} parent=1 // loop_header_branch
      %6 = sbr.rel (%p4) target = $region8
    $region5: #{custom-call.15} parent=1 // loop_body
      %s8 = ssub.s32 %s3, 1
      %s9 = ssub.s32 %s3, 2
      %s22 = sadd.s32 1, %s13
      %p23 = scmp.ge.s32.totalorder %s22, 1
      %s24 = scalar_select %p23, 0, %s22
      %s25 = sadd.s32 1, %s12
      %s26 = scalar_select %p23, %s25, %s12
      %p27 = scmp.ge.s32.totalorder %s26, 1
      %s28 = scalar_select %p27, 0, %s26
      %s29 = sadd.s32 1, %s11
      %s30 = scalar_select %p27, %s29, %s11
      %p31 = scmp.ge.s32.totalorder %s30, 1
      %s32 = scalar_select %p31, 0, %s30
      %s33 = sadd.s32 1, %s10
      %s34 = scalar_select %p31, %s33, %s10
      %p35 = scmp.ge.s32.totalorder %s34, 2
      %s36 = scalar_select %p35, 0, %s34
      %p37 = scmp.le.s32.totalorder 1, %s3
      %p38 = scmp.lt.s32.totalorder %s3, 3
      %p39 = pnand %p37, %p38
      %p40 = pneg %p39
      // Predicated region
      $region9: #{custom-call.15} parent=5 // pred_check
        _
      $region10: #{custom-call.15} parent=5 // pred_check_branch
        %42 = sbr.rel (%p39) target = $region12
      $region11: #{custom-call.15} parent=5 // pred_region
        %s43 = ssub.s32 %s3, 1
      $region12: #{custom-call.15} parent=5 // pred_fallthru
        _
      %p44 = scmp.lt.s32.totalorder %s3, 2
      // Predicated region
      $region13: #{custom-call.15} parent=5 // pred_check
        %p45 = pneg %p44
      $region14: #{custom-call.15} parent=5 // pred_check_branch
        %47 = sbr.rel (%p45) target = $region16
      $region15: #{custom-call.15} parent=5 // pred_region
        %s48 = sand.u32 %s3, 1
        %s49 = sand.u32 %s3, 1
        %s50 = smul.addr %s49, 2
        %s51 = scalar_lea.vmem [#allocation1], %s50
        %s52 = sadd.s32 %s13, %s12
        %s53 = sadd.s32 %s52, %s11
        %s54 = sadd.s32 %s53, %s10
        %s55 = smul.addr %s54, 2
        %s56 = scalar_lea.vmem %s0, %s55
        // Predicated region
        $region17: #{custom-call.15} parent=15 // pred_check
          _
        $region18: #{custom-call.15} parent=15 // pred_check_branch
          %58 = sbr.rel (0) target = $region20
        $region19: #{custom-call.15} parent=15 // pred_region
          // Predicated region
          $region21: #{custom-call.15} parent=19 // pred_check
            _
          $region22: #{custom-call.15} parent=19 // pred_check_branch
            %60 = sbr.rel target = $region24
          $region23: #{custom-call.15} parent=19 // pred_region
            // Predicated region
            $region36: #{custom-call.15} parent=23 // pred_check
              _
            $region37: #{custom-call.15} parent=23 // pred_check_branch
              %75 = sbr.rel (0) target = $region39
            $region38: #{custom-call.15} parent=23 // pred_region
              loop: start=0, step=1, limit=1
              $region40: #{custom-call.15} parent=38 // loop_pre_header
                _
              $region41: #{custom-call.15} parent=38 // loop_header
                %s78 = sphi 0, %s82
                %p79 = scmp.ge.s32.totalorder %s78, 1
                %s83 = sphi %s56, %s56
                %s84 = sphi %s51, %s51
              $region42: #{custom-call.15} parent=38 // loop_header_branch
                %81 = sbr.rel (%p79) target = $region46
              $region43: #{custom-call.15} parent=38 // loop_body
                %v85 = vld [vmem:[%s83] sm:$0x3]
                %86 = vst [vmem:[%s84] sm:$0x3] %v85
              $region44: #{custom-call.15} parent=38 // loop_footer
                %s82 = sadd.s32 1, %s78
              $region45: #{custom-call.15} parent=38 // loop_footer_branch
                %77 = sbr.rel target = $region41
              $region46: #{custom-call.15} parent=38 // loop_exit
                _
            $region39: #{custom-call.15} parent=23 // pred_fallthru
              _
          $region24: #{custom-call.15} parent=19 // pred_fallthru
            _
          // Predicated region
          $region25: #{custom-call.15} parent=19 // pred_check
            _
          $region26: #{custom-call.15} parent=19 // pred_check_branch
            %62 = sbr.rel (0) target = $region28
          $region27: #{custom-call.15} parent=19 // pred_region
            loop: start=0, step=1, limit=1
            $region29: #{custom-call.15} parent=27 // loop_pre_header
              _
            $region30: #{custom-call.15} parent=27 // loop_header
              %s65 = sphi 0, %s69
              %p66 = scmp.ge.s32.totalorder %s65, 1
              %s70 = sphi %s56, %s56
              %s71 = sphi %s51, %s51
            $region31: #{custom-call.15} parent=27 // loop_header_branch
              %68 = sbr.rel (%p66) target = $region35
            $region32: #{custom-call.15} parent=27 // loop_body
              %v72 = vld [vmem:[%s70] sm:$0x3]
              %73 = vst [vmem:[%s71] sm:$0x3] %v72
            $region33: #{custom-call.15} parent=27 // loop_footer
              %s69 = sadd.s32 1, %s65
            $region34: #{custom-call.15} parent=27 // loop_footer_branch
              %64 = sbr.rel target = $region30
            $region35: #{custom-call.15} parent=27 // loop_exit
              _
          $region28: #{custom-call.15} parent=19 // pred_fallthru
            _
        $region20: #{custom-call.15} parent=15 // pred_fallthru
          _
        %87 = vnop
      $region16: #{custom-call.15} parent=5 // pred_fallthru
        _
      %p88 = scmp.le.s32.totalorder 1, %s3
      %p89 = scmp.lt.s32.totalorder %s3, 3
      %p90 = pnand %p88, %p89
      %p91 = pneg %p90
      // Predicated region
      $region47: #{custom-call.15} parent=5 // pred_check
        _
      $region48: #{custom-call.15} parent=5 // pred_check_branch
        %93 = sbr.rel (%p90) target = $region50
      $region49: #{custom-call.15} parent=5 // pred_region
        #allocation4 [shape = 'f32[2,2]{1,0}', space=vmem, size = 0x1000, scoped, tag = 'rescaled input a']
        %s94 = ssub.s32 %s3, 1
        %s95 = sand.u32 %s8, 1
        %s96 = sand.u32 %s8, 1
        %s97 = smul.addr %s96, 2
        %s98 = scalar_lea.vmem [#allocation1], %s97
        %s99 = sand.u32 %s8, 1
        %s100 = sand.u32 %s8, 1
        %s101 = smul.addr %s100, 2
        %s102 = scalar_lea.vmem [#allocation1], %s101
        %s103 = sand.u32 %s8, 1
        %s104 = sand.u32 %s8, 1
        %s105 = smul.addr %s104, 2
        %s106 = scalar_lea.vmem [#allocation3], %s105
        %s108 = sshllo.u32 0, 2
        %v109 = vld [vmem:[%s102] sm:%s108]
        %110 = vst [vmem:[#allocation0] sm:%s108] %v109
        %v111 = vlaneseq
        %v112 = vand.u32 %v111, 127
        %vm113 = vcmp.lt.s32.totalorder %v112, 2
        %v114 = vlaneseq
        %v115 = vshrl.u32 %v114, 7
        %vm117 = vcmp.eq.s32.totalorder %v115, %v112
        %v118 = vld [vmem:[#allocation0] sm:$0xff]
        %v119 = vsel %vm117, %v118, 0.0
        %120 = vadd.xlane.f32.xlu0 %v119
        %v121 = vpop.xlane.xlu0 %120
        %vm122 = vcmp.le.s32.totalorder %v115, %v112
        %vm123 = vmand %vm122, %vm113
        %v124 = vsel %vm123, %v118, 0.0
        %v125 = vrcp.pop %v121
        %v126 = vmul.f32 %v124, %v125
        %127 = vst [vmem:[#allocation4] sm:$0xff] %v126
        %v128 = vlaneseq
        %v129 = vand.u32 %v128, 127
        %v130 = vlaneseq
        %v131 = vshrl.u32 %v130, 7
        %vm133 = vcmp.eq.s32.totalorder %v129, %v131
        %v134 = vlaneseq
        %v135 = vand.u32 %v134, 127
        %vm136 = vcmp.eq.s32.totalorder %v135, 1
        %v137 = vsel %vm136, 1.0, -1.0
        %v138 = vsel %vm133, %v137, 0.0
        %v139 = vld [vmem:[#allocation4] ss:$0 sm:$0xff]
        %v140 = vxor.u32 %v139, 2147483648
        %v141 = vlaneseq
        %v142 = vand.u32 %v141, 127
        %vm143 = vcmp.eq.s32.totalorder %v142, 0
        %v144 = vmul.f32 %v140, %v138
        %145 = vadd.xlane.f32.xlu0 %v144
        %v146 = vpop.xlane.xlu0 %145
        %v147 = vsel %vm143, %v146, %v138
        %v148 = vrcp.pop %v121
        %v149 = vmul.f32 %v147, %v148
        %vm150 = vweird.f32 %v121
        %v151 = vsel %vm150, %v147, %v149
        %152 = vst [vmem:[#allocation2] sm:$0xff] %v151
        %s154 = sshllo.u32 0, 2
        %v156 = vld [vmem:[#allocation2] sm:%s154]
        %s157 = sshllo.u32 0, 2
        %158 = vst [vmem:[%s106] sm:%s157] %v156
        %s159 = sand.u32 %s8, 1
        %s160 = sand.u32 %s8, 1
        %s161 = smul.addr %s160, 2
        %s162 = scalar_lea.vmem [#allocation3], %s161
        %s163 = sadd.s32 %s17, %s16
        %s164 = sadd.s32 %s163, %s15
        %s165 = sadd.s32 %s164, %s14
        %s166 = smul.addr %s165, 2
        %s167 = scalar_lea.vmem %s1, %s166
        // Predicated region
        $region51: #{custom-call.15} parent=49 // pred_check
          _
        $region52: #{custom-call.15} parent=49 // pred_check_branch
          %169 = sbr.rel (0) target = $region54
        $region53: #{custom-call.15} parent=49 // pred_region
          // Predicated region
          $region55: #{custom-call.15} parent=53 // pred_check
            _
          $region56: #{custom-call.15} parent=53 // pred_check_branch
            %171 = sbr.rel target = $region58
          $region57: #{custom-call.15} parent=53 // pred_region
            // Predicated region
            $region70: #{custom-call.15} parent=57 // pred_check
              _
            $region71: #{custom-call.15} parent=57 // pred_check_branch
              %186 = sbr.rel (0) target = $region73
            $region72: #{custom-call.15} parent=57 // pred_region
              loop: start=0, step=1, limit=1
              $region74: #{custom-call.15} parent=72 // loop_pre_header
                _
              $region75: #{custom-call.15} parent=72 // loop_header
                %s189 = sphi 0, %s193
                %p190 = scmp.ge.s32.totalorder %s189, 1
                %s194 = sphi %s162, %s162
                %s195 = sphi %s167, %s167
              $region76: #{custom-call.15} parent=72 // loop_header_branch
                %192 = sbr.rel (%p190) target = $region80
              $region77: #{custom-call.15} parent=72 // loop_body
                %v196 = vld [vmem:[%s194] sm:$0x3]
                %197 = vst [vmem:[%s195] sm:$0x3] %v196
              $region78: #{custom-call.15} parent=72 // loop_footer
                %s193 = sadd.s32 1, %s189
              $region79: #{custom-call.15} parent=72 // loop_footer_branch
                %188 = sbr.rel target = $region75
              $region80: #{custom-call.15} parent=72 // loop_exit
                _
            $region73: #{custom-call.15} parent=57 // pred_fallthru
              _
          $region58: #{custom-call.15} parent=53 // pred_fallthru
            _
          // Predicated region
          $region59: #{custom-call.15} parent=53 // pred_check
            _
          $region60: #{custom-call.15} parent=53 // pred_check_branch
            %173 = sbr.rel (0) target = $region62
          $region61: #{custom-call.15} parent=53 // pred_region
            loop: start=0, step=1, limit=1
            $region63: #{custom-call.15} parent=61 // loop_pre_header
              _
            $region64: #{custom-call.15} parent=61 // loop_header
              %s176 = sphi 0, %s180
              %p177 = scmp.ge.s32.totalorder %s176, 1
              %s181 = sphi %s162, %s162
              %s182 = sphi %s167, %s167
            $region65: #{custom-call.15} parent=61 // loop_header_branch
              %179 = sbr.rel (%p177) target = $region69
            $region66: #{custom-call.15} parent=61 // loop_body
              %v183 = vld [vmem:[%s181] sm:$0x3]
              %184 = vst [vmem:[%s182] sm:$0x3] %v183
            $region67: #{custom-call.15} parent=61 // loop_footer
              %s180 = sadd.s32 1, %s176
            $region68: #{custom-call.15} parent=61 // loop_footer_branch
              %175 = sbr.rel target = $region64
            $region69: #{custom-call.15} parent=61 // loop_exit
              _
          $region62: #{custom-call.15} parent=53 // pred_fallthru
            _
        $region54: #{custom-call.15} parent=49 // pred_fallthru
          _
        %198 = vnop
      $region50: #{custom-call.15} parent=5 // pred_fallthru
        _
      %p199 = scmp.le.s32.totalorder 2, %s3
      // Predicated region
      $region81: #{custom-call.15} parent=5 // pred_check
        %p200 = pneg %p199
      $region82: #{custom-call.15} parent=5 // pred_check_branch
        %202 = sbr.rel (%p200) target = $region84
      $region83: #{custom-call.15} parent=5 // pred_region
        %s203 = ssub.s32 %s3, 2
        %s204 = sand.u32 %s9, 1
        %s205 = sand.u32 %s9, 1
        %s206 = smul.addr %s205, 2
        %s207 = scalar_lea.vmem [#allocation3], %s206
      $region84: #{custom-call.15} parent=5 // pred_fallthru
        _
    $region6: #{custom-call.15} parent=1 // loop_footer
      %s7 = sadd.s32 1, %s3
    $region7: #{custom-call.15} parent=1 // loop_footer_branch
      %2 = sbr.rel target = $region3
    $region8: #{custom-call.15} parent=1 // loop_exit
      _

// kernel: stain_augmentor_forward.3
$region0: #{stain_augmentor_forward.3}
  #allocation0 [shape = 'u32[]', space=smem, size = 0x4, offset = 0x4, fixed_abs, tag = 'smem constant byte address 0x4 - core index']
  #allocation1 [shape = 'u32[144,128]{1,0:T(1,128)}', space=vmem, size = 0x12000, scoped, tag = 'internal scratch']
  %s0 = inlined_call_operand.vmem [shape: s32[2], index: 0, kind: input, shape index: {}]
  %s1 = inlined_call_operand.vmem [shape: f32[2,16], index: 1, kind: input, shape index: {}]
  %s2 = inlined_call_operand.vmem [shape: f32[2,3,16,16], index: 2, kind: input, shape index: {}]
  %s3 = inlined_call_operand.hbm [shape: f32[2,3,16,16], index: 3, kind: output, shape index: {}]
  %s4 = sld [smem:[#allocation0]]
  $region65: #{stain_augmentor_forward.3} parent=0
    _
  %s6 = ssub.s32 1, %s4
  %s7 = scalar_select 0, %s6, %s4
  $region1: #{stain_augmentor_forward.3} parent=0
    #allocation2 [shape = 'u8[512]{0}', space=smem, size = 0x200, scoped, tag = 'input window, operand 0, single buffered']
    #allocation3 [shape = 's32[2]{0}', space=sflag, size = 0x8, scoped, tag = 'scoped memory for stain_augmentor_forward.3']
    #allocation4 [shape = 's32[2]{0}', space=sflag, size = 0x8, scoped, tag = 'scoped memory for stain_augmentor_forward.3']
    #allocation5 [shape = 'u8[1024]{0}', space=smem, size = 0x400, scoped, tag = 'input window, operand 1, single buffered']
    #allocation6 [shape = 's32[1]{0}', space=sflag, size = 0x4, scoped, tag = 'scoped memory for stain_augmentor_forward.3']
    #allocation7 [shape = 'u8[49152]{0}', space=vmem, size = 0xc000, scoped, tag = 'output window, operand 0']
    %8 = vsyncpa [#allocation4], 0
    %9 = vsyncpa [#allocation6], 0
    %10 = vsyncpa [#allocation3], 0
    %s11 = scalar_lea.sflag [#allocation3], 1
    %12 = vsyncpa %s11, 0
    loop: start=0, step=1, limit=4
    $region2: #{stain_augmentor_forward.3} parent=1 // loop_pre_header
      _
    $region3: #{stain_augmentor_forward.3} parent=1 // loop_header
      %s14 = sphi 0, %s18
      %p15 = scmp.ge.s32.totalorder %s14, 4
      %s21 = sphi 0, %s33
      %s22 = sphi 0, %s29
      %s23 = sphi 0, %s21
      %s24 = sphi 0, %s22
      %s25 = sphi 0, %s23
      %s26 = sphi 0, %s24
      %s34 = sphi 0, %s34
      %s36 = sphi 0, %s34
      %s37 = sphi 0, %s36
      %s51 = sphi 0, %s37
      %s55 = sphi 0, %s55
      %s57 = sphi 0, %s55
      %s58 = sphi 0, %s57
      %s72 = sphi 0, %s58
      %s80 = sphi 0, %s82
      %s83 = sphi 0, %s80
      %s84 = sphi 0, %s83
      %s100 = sphi 0, %s84
      %s108 = sphi 0, %s110
      %s111 = sphi 0, %s108
      %s112 = sphi 0, %s111
      %s128 = sphi 0, %s112
    $region4: #{stain_augmentor_forward.3} parent=1 // loop_header_branch
      %17 = sbr.rel (%p15) target = $region8
    $region5: #{stain_augmentor_forward.3} parent=1 // loop_body
      %s19 = ssub.s32 %s14, 1
      %s20 = ssub.s32 %s14, 2
      %s27 = sadd.s32 1, %s22
      %p28 = scmp.ge.s32.totalorder %s27, 1
      %s29 = scalar_select %p28, 0, %s27
      %s30 = sadd.s32 1, %s21
      %s31 = scalar_select %p28, %s30, %s21
      %p32 = scmp.ge.s32.totalorder %s31, 2
      %s33 = scalar_select %p32, 0, %s31
      %s35 = sadd.s32 %s34, 1
      %p38 = scmp.eq.s32.totalorder %s14, 1
      %p39 = scmp.ne.s32.totalorder %s34, %s36
      %p40 = scmp.eq.s32.totalorder %s14, 0
      %p41 = por %p39, %p40
      %p42 = scmp.ne.s32.totalorder %s34, %s36
      %p43 = scmp.eq.s32.totalorder %s19, 1
      %p44 = por %p42, %p43
      %p45 = scmp.ne.s32.totalorder %s36, %s37
      %p46 = scmp.eq.s32.totalorder %s19, 0
      %p47 = por %p45, %p46
      %p48 = scmp.ne.s32.totalorder %s36, %s37
      %p49 = scmp.eq.s32.totalorder %s20, 1
      %p50 = por %p48, %p49
      %p52 = scmp.ne.s32.totalorder %s37, %s51
      %p53 = scmp.eq.s32.totalorder %s20, 0
      %p54 = por %p52, %p53
      %s56 = sadd.s32 %s55, 1
      %p59 = scmp.eq.s32.totalorder %s14, 1
      %p60 = scmp.ne.s32.totalorder %s55, %s57
      %p61 = scmp.eq.s32.totalorder %s14, 0
      %p62 = por %p60, %p61
      %p63 = scmp.ne.s32.totalorder %s55, %s57
      %p64 = scmp.eq.s32.totalorder %s19, 1
      %p65 = por %p63, %p64
      %p66 = scmp.ne.s32.totalorder %s57, %s58
      %p67 = scmp.eq.s32.totalorder %s19, 0
      %p68 = por %p66, %p67
      %p69 = scmp.ne.s32.totalorder %s57, %s58
      %p70 = scmp.eq.s32.totalorder %s20, 1
      %p71 = por %p69, %p70
      %p73 = scmp.ne.s32.totalorder %s58, %s72
      %p74 = scmp.eq.s32.totalorder %s20, 0
      %p75 = por %p73, %p74
      %s76 = ssub.s32 %s21, %s33
      %s77 = ssub.s32 %s22, %s29
      %s78 = sor.u32 %s76, %s77
      %p79 = scmp.eq.s32.totalorder %s78, 0
      %s81 = sadd.s32 %s80, 1
      %s82 = scalar_select %p79, %s80, %s81
      %p85 = pneg %p79
      %p86 = scmp.eq.s32.totalorder %s14, 1
      %p87 = por %p85, %p86
      %p88 = scmp.ne.s32.totalorder %s80, %s83
      %p89 = scmp.eq.s32.totalorder %s14, 0
      %p90 = por %p88, %p89
      %p91 = scmp.ne.s32.totalorder %s80, %s83
      %p92 = scmp.eq.s32.totalorder %s19, 1
      %p93 = por %p91, %p92
      %p94 = scmp.ne.s32.totalorder %s83, %s84
      %p95 = scmp.eq.s32.totalorder %s19, 0
      %p96 = por %p94, %p95
      %p97 = scmp.ne.s32.totalorder %s83, %s84
      %p98 = scmp.eq.s32.totalorder %s20, 1
      %p99 = por %p97, %p98
      %p101 = scmp.ne.s32.totalorder %s84, %s100
      %p102 = scmp.eq.s32.totalorder %s20, 0
      %p103 = por %p101, %p102
      %s104 = ssub.s32 %s21, %s33
      %s105 = ssub.s32 %s22, %s29
      %s106 = sor.u32 %s104, %s105
      %p107 = scmp.eq.s32.totalorder %s106, 0
      %s109 = sadd.s32 %s108, 1
      %s110 = scalar_select %p107, %s108, %s109
      %p113 = pneg %p107
      %p114 = scmp.eq.s32.totalorder %s14, 1
      %p115 = por %p113, %p114
      %p116 = scmp.ne.s32.totalorder %s108, %s111
      %p117 = scmp.eq.s32.totalorder %s14, 0
      %p118 = por %p116, %p117
      %p119 = scmp.ne.s32.totalorder %s108, %s111
      %p120 = scmp.eq.s32.totalorder %s19, 1
      %p121 = por %p119, %p120
      %p122 = scmp.ne.s32.totalorder %s111, %s112
      %p123 = scmp.eq.s32.totalorder %s19, 0
      %p124 = por %p122, %p123
      %p125 = scmp.ne.s32.totalorder %s111, %s112
      %p126 = scmp.eq.s32.totalorder %s20, 1
      %p127 = por %p125, %p126
      %p129 = scmp.ne.s32.totalorder %s112, %s128
      %p130 = scmp.eq.s32.totalorder %s20, 0
      %p131 = por %p129, %p130
      %p132 = scmp.le.s32.totalorder 1, %s14
      %p133 = scmp.lt.s32.totalorder %s14, 3
      %p134 = pnand %p132, %p133
      %p135 = pneg %p134
      // Predicated region
      $region9: #{stain_augmentor_forward.3} parent=5 // pred_check
        _
      $region10: #{stain_augmentor_forward.3} parent=5 // pred_check_branch
        %137 = sbr.rel (%p134) target = $region12
      $region11: #{stain_augmentor_forward.3} parent=5 // pred_region
        %s138 = ssub.s32 %s14, 1
        // Predicated region
        $region13: #{stain_augmentor_forward.3} parent=11 // pred_check
          %p139 = pneg %p47
        $region14: #{stain_augmentor_forward.3} parent=11 // pred_check_branch
          %141 = sbr.rel (%p139) target = $region16
        $region15: #{stain_augmentor_forward.3} parent=11 // pred_region
          %s143 = ssub.s32 16, 16
          %144 = vsyncadd [#allocation4], %s143
          %s146 = sshll.u32 %s0, 4
          %s147 = int_to_ptr.vmem [resolvable:$true] %s146
          %149 = dma.vmem_to_smem %s147, 16, [#allocation2], [#allocation4]
        $region16: #{stain_augmentor_forward.3} parent=11 // pred_fallthru
          _
        // Predicated region
        $region17: #{stain_augmentor_forward.3} parent=11 // pred_check
          %p150 = pneg %p68
        $region18: #{stain_augmentor_forward.3} parent=11 // pred_check_branch
          %152 = sbr.rel (%p150) target = $region20
        $region19: #{stain_augmentor_forward.3} parent=11 // pred_region
          %s154 = ssub.s32 32, 32
          %155 = vsyncadd [#allocation6], %s154
          %s157 = sshll.u32 %s1, 4
          %s158 = int_to_ptr.vmem [resolvable:$true] %s157
          %160 = dma.vmem_to_smem %s158, 32, [#allocation5], [#allocation6]
        $region20: #{stain_augmentor_forward.3} parent=11 // pred_fallthru
          _
      $region12: #{stain_augmentor_forward.3} parent=5 // pred_fallthru
        _
      %p161 = scmp.lt.s32.totalorder %s14, 2
      // Predicated region
      $region21: #{stain_augmentor_forward.3} parent=5 // pred_check
        %p162 = pneg %p161
      $region22: #{stain_augmentor_forward.3} parent=5 // pred_check_branch
        %164 = sbr.rel (%p162) target = $region24
      $region23: #{stain_augmentor_forward.3} parent=5 // pred_region
        // Predicated region
        $region25: #{stain_augmentor_forward.3} parent=23 // pred_check
          %p165 = pneg %p90
        $region26: #{stain_augmentor_forward.3} parent=23 // pred_check_branch
          %167 = sbr.rel (%p165) target = $region28
        $region27: #{stain_augmentor_forward.3} parent=23 // pred_region
          %s168 = smul.u32 2, %s22
          %p169 = scmp.lt.s32.totalorder %s21, 1
          %s170 = scalar_select %p169, %s21, 1
          %p171 = scmp.lt.s32.totalorder %s168, 1
          %s172 = scalar_select %p171, %s168, 1
          %s173 = smul.addr %s170, 6
          %s174 = sadd.s32 %s172, %s173
          %s175 = smul.addr %s174, 8
          %s176 = scalar_lea.vmem %s2, %s175
          %s177 = smul.u32 2, %s22
        $region28: #{stain_augmentor_forward.3} parent=23 // pred_fallthru
          _
      $region24: #{stain_augmentor_forward.3} parent=5 // pred_fallthru
        _
      %p178 = scmp.le.s32.totalorder 1, %s14
      %p179 = scmp.lt.s32.totalorder %s14, 3
      %p180 = pnand %p178, %p179
      %p181 = pneg %p180
      // Predicated region
      $region29: #{stain_augmentor_forward.3} parent=5 // pred_check
        _
      $region30: #{stain_augmentor_forward.3} parent=5 // pred_check_branch
        %183 = sbr.rel (%p180) target = $region32
      $region31: #{stain_augmentor_forward.3} parent=5 // pred_region
        %s184 = ssub.s32 %s14, 1
        // Predicated region
        $region33: #{stain_augmentor_forward.3} parent=31 // pred_check
          %p185 = pneg %p47
        $region34: #{stain_augmentor_forward.3} parent=31 // pred_check_branch
          %187 = sbr.rel (%p185) target = $region36
        $region35: #{stain_augmentor_forward.3} parent=31 // pred_region
          %188 = dma.done [#allocation4], 16
        $region36: #{stain_augmentor_forward.3} parent=31 // pred_fallthru
          _
        // Predicated region
        $region37: #{stain_augmentor_forward.3} parent=31 // pred_check
          %p189 = pneg %p68
        $region38: #{stain_augmentor_forward.3} parent=31 // pred_check_branch
          %191 = sbr.rel (%p189) target = $region40
        $region39: #{stain_augmentor_forward.3} parent=31 // pred_region
          %192 = dma.done [#allocation6], 32
        $region40: #{stain_augmentor_forward.3} parent=31 // pred_fallthru
          _
        %193 = sfence
        %p194 = pneg %p47
        %p195 = pneg %p44
        %p196 = pneg %p68
        %p197 = pneg %p65
        %s198 = smul.u32 2, %s24
        %p199 = scmp.lt.s32.totalorder %s23, 1
        %s200 = scalar_select %p199, %s23, 1
        %p201 = scmp.lt.s32.totalorder %s198, 1
        %s202 = scalar_select %p201, %s198, 1
        %s203 = smul.addr %s200, 6
        %s204 = sadd.s32 %s202, %s203
        %s205 = smul.addr %s204, 8
        %s206 = scalar_lea.vmem %s2, %s205
        %p207 = pneg %p96
        %p208 = pneg %p93
        %p209 = pneg %p124
        %p210 = pneg %p121
        %s211 = sand.u32 %s111, 1
        %s212 = scalar_lea.sflag [#allocation3], %s211
        %s213 = sand.u32 %s111, 1
        %s214 = smul.addr %s213, 48
        %s215 = scalar_lea.vmem [#allocation7], %s214
        %s216 = smul.u32 2, %s24
        %p217 = scmp.lt.s32.totalorder %s23, 1
        %s218 = scalar_select %p217, %s23, 1
        %p219 = scmp.lt.s32.totalorder %s216, 1
        %s220 = scalar_select %p219, %s216, 1
        %s221 = smul.addr %s218, 6
        %s222 = sadd.s32 %s220, %s221
        %s223 = smul.addr %s222, 8
        %s224 = scalar_lea.vmem %s2, %s223
        %s225 = smul.u32 2, %s24
        %s226 = smul.u32 2, %s24
        %s227 = sld [smem:[#allocation2 + %s23]]
        %p228 = scmp.eq.s32.totalorder %s227, 2
        // Predicated region
        $region41: #{stain_augmentor_forward.3} parent=31 // pred_check
          %p229 = pneg %p228
        $region42: #{stain_augmentor_forward.3} parent=31 // pred_check_branch
          %231 = sbr.rel (%p229) target = $region44
        $region43: #{stain_augmentor_forward.3} parent=31 // pred_region
          %v232 = vld [vmem:[%s224] sm:$0xff]
          %v233 = vld [vmem:[%s224 + $0x8] sm:$0xff]
          %v234 = vld [vmem:[%s224 + $0x10] sm:$0xff]
          %v235 = vld [vmem:[%s224 + $0x18] sm:$0xff]
          %v236 = vld [vmem:[%s224 + $0x20] sm:$0xff]
          %v237 = vld [vmem:[%s224 + $0x28] sm:$0xff]
          %vm238 = vcmask 130048
          %239 = vst.msk [vmem:[%s215] sm:$0xff] %vm238, %v232
          %240 = vst.msk [vmem:[%s215 + $0x8] sm:$0xff] %vm238, %v233
          %241 = vst.msk [vmem:[%s215 + $0x10] sm:$0xff] %vm238, %v234
          %242 = vst.msk [vmem:[%s215 + $0x18] sm:$0xff] %vm238, %v235
          %243 = vst.msk [vmem:[%s215 + $0x20] sm:$0xff] %vm238, %v236
          %244 = vst.msk [vmem:[%s215 + $0x28] sm:$0xff] %vm238, %v237
        $region44: #{stain_augmentor_forward.3} parent=31 // pred_fallthru
          _
        %p245 = scmp.eq.s32.totalorder %s227, 1
        // Predicated region
        $region45: #{stain_augmentor_forward.3} parent=31 // pred_check
          %p246 = pneg %p245
        $region46: #{stain_augmentor_forward.3} parent=31 // pred_check_branch
          %248 = sbr.rel (%p246) target = $region48
        $region47: #{stain_augmentor_forward.3} parent=31 // pred_region
          %v249 = vld [vmem:[%s224] sm:$0xff]
          %v250 = vld [vmem:[%s224 + $0x8] sm:$0xff]
          %v251 = vld [vmem:[%s224 + $0x10] sm:$0xff]
          %v252 = vld [vmem:[%s224 + $0x18] sm:$0xff]
          %v253 = vld [vmem:[%s224 + $0x20] sm:$0xff]
          %v254 = vld [vmem:[%s224 + $0x28] sm:$0xff]
          %v255 = vmul.f32 %v249, 255.0
          %v256 = vmul.f32 %v250, 255.0
          %v257 = vmul.f32 %v251, 255.0
          %v258 = vmul.f32 %v252, 255.0
          %v259 = vmul.f32 %v253, 255.0
          %v260 = vmul.f32 %v254, 255.0
          %v261 = vfloor.f32 %v255
          %v262 = vfloor.f32 %v256
          %v263 = vfloor.f32 %v257
          %v264 = vfloor.f32 %v258
          %v265 = vfloor.f32 %v259
          %v266 = vfloor.f32 %v260
          %v267 = vmul.f32 %v261, 0.003921569
          %v268 = vmul.f32 %v262, 0.003921569
          %v269 = vmul.f32 %v263, 0.003921569
          %v270 = vmul.f32 %v264, 0.003921569
          %v271 = vmul.f32 %v265, 0.003921569
          %v272 = vmul.f32 %v266, 0.003921569
          %vm273 = vcmask 130048
          %274 = vst.msk [vmem:[%s215] sm:$0xff] %vm273, %v267
          %275 = vst.msk [vmem:[%s215 + $0x8] sm:$0xff] %vm273, %v268
          %276 = vst.msk [vmem:[%s215 + $0x10] sm:$0xff] %vm273, %v269
          %277 = vst.msk [vmem:[%s215 + $0x18] sm:$0xff] %vm273, %v270
          %278 = vst.msk [vmem:[%s215 + $0x20] sm:$0xff] %vm273, %v271
          %279 = vst.msk [vmem:[%s215 + $0x28] sm:$0xff] %vm273, %v272
        $region48: #{stain_augmentor_forward.3} parent=31 // pred_fallthru
          _
        %p280 = scmp.eq.s32.totalorder %s227, 0
        // Predicated region
        $region49: #{stain_augmentor_forward.3} parent=31 // pred_check
          %p281 = pneg %p280
        $region50: #{stain_augmentor_forward.3} parent=31 // pred_check_branch
          %283 = sbr.rel (%p281) target = $region52
        $region51: #{stain_augmentor_forward.3} parent=31 // pred_region
          %s284 = smul.u32 %s23, 128
          %s285 = sld [smem:[#allocation5 + %s284]]
          %s286 = ssub.f32 0.0, %s285
          %s287 = sadd.s32 %s284, 1
          %s288 = sld [smem:[#allocation5 + %s287]]
          %s289 = ssub.f32 0.0, %s288
          %s290 = sadd.s32 %s284, 2
          %s291 = sld [smem:[#allocation5 + %s290]]
          %s292 = ssub.f32 0.0, %s291
          %s293 = sadd.s32 %s284, 3
          %s294 = sld [smem:[#allocation5 + %s293]]
          %s295 = ssub.f32 0.0, %s294
          %s296 = sadd.s32 %s284, 4
          %s297 = sld [smem:[#allocation5 + %s296]]
          %s298 = ssub.f32 0.0, %s297
          %s299 = sadd.s32 %s284, 5
          %s300 = sld [smem:[#allocation5 + %s299]]
          %s301 = ssub.f32 0.0, %s300
          %s302 = sadd.s32 %s284, 6
          %s303 = sld [smem:[#allocation5 + %s302]]
          %s304 = sadd.s32 %s284, 7
          %s305 = sld [smem:[#allocation5 + %s304]]
          %s306 = sadd.s32 %s284, 8
          %s307 = sld [smem:[#allocation5 + %s306]]
          %s308 = sadd.s32 %s284, 9
          %s309 = sld [smem:[#allocation5 + %s308]]
          %s310 = sadd.s32 %s284, 10
          %s311 = sld [smem:[#allocation5 + %s310]]
          %s312 = ssub.f32 0.0, %s311
          %s313 = sadd.s32 %s284, 11
          %s314 = sld [smem:[#allocation5 + %s313]]
          %s315 = ssub.f32 0.0, %s314
          %s316 = sadd.s32 %s284, 12
          %s317 = sld [smem:[#allocation5 + %s316]]
          %s318 = ssub.f32 0.0, %s317
          %s319 = sadd.s32 %s284, 13
          %s320 = sld [smem:[#allocation5 + %s319]]
          %s321 = ssub.f32 0.0, %s320
          %s322 = sadd.s32 %s284, 14
          %s323 = sld [smem:[#allocation5 + %s322]]
          %s324 = ssub.f32 0.0, %s323
          %s325 = sadd.s32 %s284, 15
          %s326 = sld [smem:[#allocation5 + %s325]]
          %s327 = ssub.f32 0.0, %s326
          %v328 = vld [vmem:[%s224] sm:$0xff]
          %v329 = vld [vmem:[%s224 + $0x8] sm:$0xff]
          %v330 = vmul.f32 %v328, 1.0625
          %v331 = vmul.f32 %v329, 1.0625
          %v332 = vmax.f32 %v330, 0.003921569
          %v333 = vmax.f32 %v331, 0.003921569
          %v334 = vmin.f32 %v332, 1.0
          %v335 = vmin.f32 %v333, 1.0
          %v336 = vlog2.pop %v334
          %v337 = vmul.f32 %v336, 0.6931472
          %v338 = vlog2.pop %v335
          %v339 = vmul.f32 %v338, 0.6931472
          %v340 = vstv %s286
          %v341 = vmul.f32 %v340, %v337
          %v342 = vmul.f32 %v340, %v339
          %v343 = vstv %s295
          %v344 = vmul.f32 %v343, %v337
          %v345 = vmul.f32 %v343, %v339
          %s346 = scalar_lea.vmem %s224, 16
          %v347 = vld [vmem:[%s346] sm:$0xff]
          %v348 = vld [vmem:[%s346 + $0x8] sm:$0xff]
          %v349 = vmul.f32 %v347, 1.0625
          %v350 = vmul.f32 %v348, 1.0625
          %v351 = vmax.f32 %v349, 0.003921569
          %v352 = vmax.f32 %v350, 0.003921569
          %v353 = vmin.f32 %v351, 1.0
          %v354 = vmin.f32 %v352, 1.0
          %v355 = vlog2.pop %v353
          %v356 = vmul.f32 %v355, 0.6931472
          %v357 = vlog2.pop %v354
          %v358 = vmul.f32 %v357, 0.6931472
          %v359 = vstv %s289
          %v360 = vmul.f32 %v359, %v356
          %v361 = vmul.f32 %v359, %v358
          %v362 = vadd.f32 %v341, %v360
          %v363 = vadd.f32 %v342, %v361
          %v364 = vstv %s298
          %v365 = vmul.f32 %v364, %v356
          %v366 = vmul.f32 %v364, %v358
          %v367 = vadd.f32 %v344, %v365
          %v368 = vadd.f32 %v345, %v366
          %s369 = scalar_lea.vmem %s224, 32
          %v370 = vld [vmem:[%s369] sm:$0xff]
          %v371 = vld [vmem:[%s369 + $0x8] sm:$0xff]
          %v372 = vmul.f32 %v370, 1.0625
          %v373 = vmul.f32 %v371, 1.0625
          %v374 = vmax.f32 %v372, 0.003921569
          %v375 = vmax.f32 %v373, 0.003921569
          %v376 = vmin.f32 %v374, 1.0
          %v377 = vmin.f32 %v375, 1.0
          %v378 = vlog2.pop %v376
          %v379 = vmul.f32 %v378, 0.6931472
          %v380 = vlog2.pop %v377
          %v381 = vmul.f32 %v380, 0.6931472
          %v382 = vstv %s292
          %v383 = vmul.f32 %v382, %v379
          %v384 = vmul.f32 %v382, %v381
          %v385 = vadd.f32 %v362, %v383
          %v386 = vadd.f32 %v363, %v384
          %v387 = vstv %s301
          %v388 = vmul.f32 %v387, %v379
          %v389 = vmul.f32 %v387, %v381
          %v390 = vadd.f32 %v367, %v388
          %v391 = vadd.f32 %v368, %v389
          %vm392 = vcmp.gt.f32.partialorder %v385, 0.2
          %vm393 = vcmp.gt.f32.partialorder %v386, 0.2
          %v394 = vstv %s303
          %v395 = vmul.f32 %v385, %v394
          %v396 = vmul.f32 %v386, %v394
          %v397 = vstv %s305
          %v398 = vadd.f32 %v395, %v397
          %v399 = vadd.f32 %v396, %v397
          %v400 = vsel %vm392, %v398, %v385
          %v401 = vsel %vm393, %v399, %v386
          %vm402 = vcmp.gt.f32.partialorder %v390, 0.2
          %vm403 = vcmp.gt.f32.partialorder %v391, 0.2
          %v404 = vstv %s307
          %v405 = vmul.f32 %v390, %v404
          %v406 = vmul.f32 %v391, %v404
          %v407 = vstv %s309
          %v408 = vadd.f32 %v405, %v407
          %v409 = vadd.f32 %v406, %v407
          %v410 = vsel %vm402, %v408, %v390
          %v411 = vsel %vm403, %v409, %v391
          %v412 = vstv %s312
          %v413 = vmul.f32 %v412, %v400
          %v414 = vmul.f32 %v412, %v401
          %v415 = vstv %s315
          %v416 = vmul.f32 %v415, %v410
          %v417 = vmul.f32 %v415, %v411
          %v418 = vadd.f32 %v413, %v416
          %v419 = vadd.f32 %v414, %v417
          %v420 = vmul.f32 %v418, 1.442695
          %v421 = vpow.pop %v420
          %v422 = vmul.f32 %v419, 1.442695
          %v423 = vpow.pop %v422
          %v424 = vmul.f32 %v421, 240.0
          %v425 = vmul.f32 %v423, 240.0
          %v426 = vmin.f32 %v424, 255.0
          %v427 = vmin.f32 %v425, 255.0
          %v428 = vround.ne.pseudo %v426
          %v429 = vround.ne.pseudo %v427
          %v430 = vmul.f32 %v428, 0.003921569
          %v431 = vmul.f32 %v429, 0.003921569
          %vm432 = vcmask 130048
          %433 = vst.msk [vmem:[%s215] sm:$0xff] %vm432, %v430
          %434 = vst.msk [vmem:[%s215 + $0x8] sm:$0xff] %vm432, %v431
          %v435 = vstv %s318
          %v436 = vmul.f32 %v435, %v400
          %v437 = vmul.f32 %v435, %v401
          %v438 = vstv %s321
          %v439 = vmul.f32 %v438, %v410
          %v440 = vmul.f32 %v438, %v411
          %v441 = vadd.f32 %v436, %v439
          %v442 = vadd.f32 %v437, %v440
          %v443 = vmul.f32 %v441, 1.442695
          %v444 = vpow.pop %v443
          %v445 = vmul.f32 %v442, 1.442695
          %v446 = vpow.pop %v445
          %v447 = vmul.f32 %v444, 240.0
          %v448 = vmul.f32 %v446, 240.0
          %v449 = vmin.f32 %v447, 255.0
          %v450 = vmin.f32 %v448, 255.0
          %v451 = vround.ne.pseudo %v449
          %v452 = vround.ne.pseudo %v450
          %v453 = vmul.f32 %v451, 0.003921569
          %v454 = vmul.f32 %v452, 0.003921569
          %s455 = scalar_lea.vmem %s215, 16 [#allocation7]
          %456 = vst.msk [vmem:[%s455] sm:$0xff] %vm432, %v453
          %457 = vst.msk [vmem:[%s455 + $0x8] sm:$0xff] %vm432, %v454
          %v458 = vstv %s324
          %v459 = vmul.f32 %v458, %v400
          %v460 = vmul.f32 %v458, %v401
          %v461 = vstv %s327
          %v462 = vmul.f32 %v461, %v410
          %v463 = vmul.f32 %v461, %v411
          %v464 = vadd.f32 %v459, %v462
          %v465 = vadd.f32 %v460, %v463
          %v466 = vmul.f32 %v464, 1.442695
          %v467 = vpow.pop %v466
          %v468 = vmul.f32 %v465, 1.442695
          %v469 = vpow.pop %v468
          %v470 = vmul.f32 %v467, 240.0
          %v471 = vmul.f32 %v469, 240.0
          %v472 = vmin.f32 %v470, 255.0
          %v473 = vmin.f32 %v471, 255.0
          %v474 = vround.ne.pseudo %v472
          %v475 = vround.ne.pseudo %v473
          %v476 = vmul.f32 %v474, 0.003921569
          %v477 = vmul.f32 %v475, 0.003921569
          %s478 = scalar_lea.vmem %s215, 32 [#allocation7]
          %479 = vst.msk [vmem:[%s478] sm:$0xff] %vm432, %v476
          %480 = vst.msk [vmem:[%s478 + $0x8] sm:$0xff] %vm432, %v477
        $region52: #{stain_augmentor_forward.3} parent=31 // pred_fallthru
          _
        %s481 = sand.u32 %s111, 1
        %s482 = scalar_lea.sflag [#allocation3], %s481
        %s483 = sand.u32 %s111, 1
        %s484 = smul.addr %s483, 48
        %s485 = scalar_lea.vmem [#allocation7], %s484
        // Predicated region
        $region53: #{stain_augmentor_forward.3} parent=31 // pred_check
          %p486 = pneg %p121
        $region54: #{stain_augmentor_forward.3} parent=31 // pred_check_branch
          %488 = sbr.rel (%p486) target = $region56
        $region55: #{stain_augmentor_forward.3} parent=31 // pred_region
          %s489 = smul.u32 2, %s24
          %s491 = ssub.s32 768, 768
          %492 = vsyncadd %s482, %s491
          %s493 = smul.addr %s23, 6
          %s494 = sadd.s32 %s489, %s493
          %s495 = smul.addr %s494, 128
          %s496 = scalar_lea.hbm %s3, %s495
          %s497 = sshll.u32 %s485, 4
          %s498 = int_to_ptr.vmem [resolvable:$true] %s497
          %503 = dma.vmem_to_hbm [thread:$0]  %s498, 768, %s496, %s482, 128, 128, 8
        $region56: #{stain_augmentor_forward.3} parent=31 // pred_fallthru
          _
      $region32: #{stain_augmentor_forward.3} parent=5 // pred_fallthru
        _
      %p504 = scmp.le.s32.totalorder 2, %s14
      // Predicated region
      $region57: #{stain_augmentor_forward.3} parent=5 // pred_check
        %p505 = pneg %p504
      $region58: #{stain_augmentor_forward.3} parent=5 // pred_check_branch
        %507 = sbr.rel (%p505) target = $region60
      $region59: #{stain_augmentor_forward.3} parent=5 // pred_region
        %s508 = ssub.s32 %s14, 2
        // Predicated region
        $region61: #{stain_augmentor_forward.3} parent=59 // pred_check
          %p509 = pneg %p127
        $region62: #{stain_augmentor_forward.3} parent=59 // pred_check_branch
          %511 = sbr.rel (%p509) target = $region64
        $region63: #{stain_augmentor_forward.3} parent=59 // pred_region
          %s512 = sand.u32 %s112, 1
          %s513 = scalar_lea.sflag [#allocation3], %s512
          %s514 = sand.u32 %s112, 1
          %s515 = smul.addr %s514, 48
          %s516 = scalar_lea.vmem [#allocation7], %s515
          %517 = dma.done %s513, 768
        $region64: #{stain_augmentor_forward.3} parent=59 // pred_fallthru
          _
      $region60: #{stain_augmentor_forward.3} parent=5 // pred_fallthru
        _
    $region6: #{stain_augmentor_forward.3} parent=1 // loop_footer
      %s18 = sadd.s32 1, %s14
    $region7: #{stain_augmentor_forward.3} parent=1 // loop_footer_branch
      %13 = sbr.rel target = $region3
    $region8: #{stain_augmentor_forward.3} parent=1 // loop_exit
      _
    %518 = vsyncpa [#allocation3], 1
    %s519 = scalar_lea.sflag [#allocation3], 1
    %520 = vsyncpa %s519, 1
    %521 = vsyncpa [#allocation4], 1
    %s522 = scalar_lea.sflag [#allocation4], 1
    %523 = vsyncpa %s522, 1
    %524 = vsyncpa [#allocation6], 1

</llo_original>
